<compile_context>
chip_gen: v5e
topology: v5e:2x2
jax: 0.10.0
libtpu: 0.0.40
codegen_flags: <defaults>
</compile_context>

<pallas_src>
import functools
import math

import jax
import jax.numpy as jnp
from jax.experimental import pallas as pl
from jax.experimental.pallas import tpu as pltpu


# ----------------------------------------------------------------------------
# helpers
# ----------------------------------------------------------------------------
def _round_up(x, m):
    return (x + m - 1) // m * m


# Safe on all generations (>= scoped default on v5e/v6e/v7x, << physical).
_MOSAIC_PARAMS = pltpu.CompilerParams(
    dimension_semantics=("parallel",),
    vmem_limit_bytes=32 * 1024 * 1024,
)


# ----------------------------------------------------------------------------
# Pallas kernels
# ----------------------------------------------------------------------------
def _mm_bias_kernel(a_ref, w_ref, b_ref, o_ref):
    """o = a @ w + b.  a:(tm,K) bf16, w:(K,Cp) bf16, b:(1,Cp) f32 -> o:(tm,Cp) f32."""
    acc = jnp.dot(a_ref[...], w_ref[...], preferred_element_type=jnp.float32)
    o_ref[...] = acc + b_ref[...]


def _mm_mask_bias_kernel(a_ref, m_ref, w_ref, b_ref, o_ref, *, cin):
    """o = (a * mask_broadcast_over_Cin) @ w + b.

    a: (tm, Cin*kh*kw) bf16 im2col patches (Cin-major, tap-minor).
    m: (tm, kh*kw) f32 per-tap deform mask; broadcast over Cin in-kernel so the
       full (M, K) mask is never materialized in HBM.
    """
    m = m_ref[...]                                    # (tm, khkw) f32
    mk = jnp.concatenate([m] * cin, axis=-1)          # (tm, Cin*khkw) f32
    am = (a_ref[...].astype(jnp.float32) * mk).astype(jnp.bfloat16)
    acc = jnp.dot(am, w_ref[...], preferred_element_type=jnp.float32)
    o_ref[...] = acc + b_ref[...]


def _in_kernel(x_ref, o_ref, *, eps, relu):
    """InstanceNorm (+optional ReLU) over H*W for one sample: block (1, HW, C)."""
    x = x_ref[...]
    mean = jnp.mean(x, axis=1, keepdims=True)
    var = jnp.mean(jnp.square(x - mean), axis=1, keepdims=True)
    y = (x - mean) * jax.lax.rsqrt(var + eps)
    if relu:
        y = jnp.maximum(y, 0.0)
    o_ref[...] = y


def _in_residual_kernel(x_ref, xorg_ref, o_ref, *, eps):
    """ResBlock tail fused: o = x_org + 0.1 * InstanceNorm(x)  (no activation)."""
    x = x_ref[...]
    mean = jnp.mean(x, axis=1, keepdims=True)
    var = jnp.mean(jnp.square(x - mean), axis=1, keepdims=True)
    y = (x - mean) * jax.lax.rsqrt(var + eps)
    o_ref[...] = xorg_ref[...] + 0.1 * y


# ----------------------------------------------------------------------------
# Wrappers (im2col / padding glue in plain JAX, hot path in Pallas)
# ----------------------------------------------------------------------------
def _im2col_nhwc(x, kh, kw, stride, pad):
    """x: (N,H,W,C) -> A: (N*Ho*Wo, C*kh*kw)  (K ordered Cin-major, tap-minor)."""
    N, H, W, C = x.shape
    xp = jnp.pad(x, ((0, 0), (pad, pad), (pad, pad), (0, 0)))
    Ho = (H + 2 * pad - kh) // stride + 1
    Wo = (W + 2 * pad - kw) // stride + 1
    cols = []
    for i in range(kh):
        for j in range(kw):
            cols.append(xp[:, i:i + stride * (Ho - 1) + 1:stride,
                           j:j + stride * (Wo - 1) + 1:stride, :])
    p = jnp.stack(cols, axis=-1)                      # (N, Ho, Wo, C, kh*kw)
    return p.reshape(N * Ho * Wo, C * kh * kw), Ho, Wo
    # TODO(synk): longer term replace wrapper-side im2col with an in-kernel
    # per-tap accumulation (grid over kh*kw) to avoid the kh*kw HBM blow-up.


def _pick_tm(M):
    m8 = _round_up(max(M, 8), 8)
    if m8 >= 1024:
        return 512
    if m8 >= 512:
        return 256        # keep >= 2 grid steps so v7x megacore has work to shard
    return m8             # single block for small M


def _conv_matmul(A_bf16, weight, bias, mask=None):
    """Conv as im2col matmul: (A [* mask]) @ W.T + b  via Pallas.

    A_bf16: (M, K) bf16, K = Cin*kh*kw (Cin-major, tap-minor).
    weight: (Cout, Cin, kh, kw) f32;  bias: (Cout,) f32.
    mask  : optional (M, kh*kw) f32 deform mask (broadcast over Cin in-kernel).
    Returns (M, Cout) f32.
    """
    M, K = A_bf16.shape
    Cout, cin = weight.shape[0], weight.shape[1]

    # Lane-dense output: pad Cout up to a multiple of 128 (unmasked stores),
    # slice the pad off afterwards.
    Cp = _round_up(Cout, 128)
    Wm = weight.reshape(Cout, K).T.astype(jnp.bfloat16)          # (K, Cout) bf16
    Wp = jnp.pad(Wm, ((0, 0), (0, Cp - Cout)))
    bp = jnp.pad(bias.astype(jnp.float32), (0, Cp - Cout)).reshape(1, Cp)

    tm = _pick_tm(M)
    Mp = _round_up(M, tm)
    if Mp != M:
        A_bf16 = jnp.pad(A_bf16, ((0, Mp - M), (0, 0)))
        if mask is not None:
            mask = jnp.pad(mask, ((0, Mp - M), (0, 0)))

    grid = (Mp // tm,)
    out_shape = jax.ShapeDtypeStruct((Mp, Cp), jnp.float32)
    a_spec = pl.BlockSpec((tm, K), lambda i: (i, 0))
    w_spec = pl.BlockSpec((K, Cp), lambda i: (0, 0))
    b_spec = pl.BlockSpec((1, Cp), lambda i: (0, 0))
    o_spec = pl.BlockSpec((tm, Cp), lambda i: (i, 0))

    if mask is None:
        out = pl.pallas_call(
            _mm_bias_kernel,
            out_shape=out_shape,
            grid=grid,
            in_specs=[a_spec, w_spec, b_spec],
            out_specs=o_spec,
            compiler_params=_MOSAIC_PARAMS,
        )(A_bf16, Wp, bp)
    else:
        khkw = mask.shape[1]
        assert cin * khkw == K, (cin, khkw, K)
        m_spec = pl.BlockSpec((tm, khkw), lambda i: (i, 0))
        out = pl.pallas_call(
            functools.partial(_mm_mask_bias_kernel, cin=cin),
            out_shape=out_shape,
            grid=grid,
            in_specs=[a_spec, m_spec, w_spec, b_spec],
            out_specs=o_spec,
            compiler_params=_MOSAIC_PARAMS,
        )(A_bf16, mask, Wp, bp)

    return out[:M, :Cout]


def conv2d_nhwc(x_nhwc, weight, bias, stride, pad):
    """Plain zero-padded conv, NHWC in / NHWC out."""
    N = x_nhwc.shape[0]
    Cout, _, kh, kw = weight.shape
    A, Ho, Wo = _im2col_nhwc(x_nhwc, kh, kw, stride, pad)
    out = _conv_matmul(A.astype(jnp.bfloat16), weight, bias)
    return out.reshape(N, Ho, Wo, Cout)


def instance_norm_nhwc(x_nhwc, eps=1e-5, relu=True):
    N, H, W, C = x_nhwc.shape
    x3 = x_nhwc.reshape(N, H * W, C)
    spec = pl.BlockSpec((1, H * W, C), lambda n: (n, 0, 0))
    out = pl.pallas_call(
        functools.partial(_in_kernel, eps=eps, relu=relu),
        out_shape=jax.ShapeDtypeStruct(x3.shape, x3.dtype),
        grid=(N,),
        in_specs=[spec],
        out_specs=spec,
        compiler_params=_MOSAIC_PARAMS,
    )(x3)
    return out.reshape(N, H, W, C)


def instance_norm_residual_nhwc(h_nhwc, x_org_nhwc, eps=1e-5):
    """x_org + 0.1 * InstanceNorm(h)  — fused ResBlock tail."""
    N, H, W, C = h_nhwc.shape
    h3 = h_nhwc.reshape(N, H * W, C)
    x3 = x_org_nhwc.reshape(N, H * W, C)
    spec = pl.BlockSpec((1, H * W, C), lambda n: (n, 0, 0))
    out = pl.pallas_call(
        functools.partial(_in_residual_kernel, eps=eps),
        out_shape=jax.ShapeDtypeStruct(h3.shape, h3.dtype),
        grid=(N,),
        in_specs=[spec, spec],
        out_specs=spec,
        compiler_params=_MOSAIC_PARAMS,
    )(h3, x3)
    return out.reshape(N, H, W, C)


# ----------------------------------------------------------------------------
# ModulatedDeformConvPack forward (offset/mask conv + modulated conv), NHWC
# ----------------------------------------------------------------------------
def dcn_pack_forward(p, x_nhwc, k, stride, pad):
    N = x_nhwc.shape[0]
    khkw = k * k

    # im2col computed ONCE per stage and shared by both convs.
    A, Ho, Wo = _im2col_nhwc(x_nhwc, k, k, stride, pad)
    A = A.astype(jnp.bfloat16)

    # conv_offset_mask (zero-initialized) through the plain matmul kernel.
    om = _conv_matmul(A, p["om_w"], p["om_b"])               # (M, 3*k*k)
    # offsets om[:, :2*k*k] are identically zero at init and are discarded by
    # ContentEncoder; only the mask channels are consumed.
    mask = jax.nn.sigmoid(om[:, 2 * khkw:])                  # (M, k*k), == 0.5 at init

    # Modulated deformable conv with zero offsets == regular conv with
    # mask-modulated im2col patches (modulation applied inside the kernel).
    out = _conv_matmul(A, p["w"], p["b"], mask=mask)         # (M, Cout)
    Cout = p["w"].shape[0]
    return out.reshape(N, Ho, Wo, Cout)


# ----------------------------------------------------------------------------
# Parameter init (matches the module's init shapes/distributions)
# ----------------------------------------------------------------------------
def _conv_init(key, cin, cout, k):
    ka, kb = jax.random.split(key)
    fan_in = cin * k * k
    bound = 1.0 / math.sqrt(fan_in)   # kaiming_uniform(a=sqrt(5)) weight bound == 1/sqrt(fan_in)
    return {
        "w": jax.random.uniform(ka, (cout, cin, k, k), jnp.float32, -bound, bound),
        "b": jax.random.uniform(kb, (cout,), jnp.float32, -bound, bound),
    }


def _dcn_init(key, cin, cout, k):
    p = _conv_init(key, cin, cout, k)
    # conv_offset_mask: deformable_groups(=1) * 3 * k * k output channels, zero-init.
    p["om_w"] = jnp.zeros((3 * k * k, cin, k, k), jnp.float32)
    p["om_b"] = jnp.zeros((3 * k * k,), jnp.float32)
    return p


def init_content_encoder(key, num_features, model_channels, n_res):
    mc = model_channels
    keys = jax.random.split(key, 4 + 2 * n_res)
    params = {
        "dcn1": _dcn_init(keys[0], num_features, mc // 2, 7),
        "dcn2": _dcn_init(keys[1], mc // 2, mc, 4),
        "dcn3": _dcn_init(keys[2], mc, mc * 2, 4),
        "dcn4": _dcn_init(keys[3], mc * 2, mc * 4, 4),
        "res": [],
    }
    dim = mc * 4
    for i in range(n_res):
        params["res"].append({
            "conv1": _conv_init(keys[4 + 2 * i], dim, dim, 3),
            "conv2": _conv_init(keys[5 + 2 * i], dim, dim, 3),
        })
    return params


# ----------------------------------------------------------------------------
# ContentEncoder forward (NCHW module I/O, NHWC internally)
# ----------------------------------------------------------------------------
def content_encoder_forward(params, x_nchw):
    x = jnp.transpose(x_nchw, (0, 2, 3, 1))          # single transpose in

    def stage(p, x, k, stride, pad):
        y = dcn_pack_forward(p, x, k, stride, pad)
        return instance_norm_nhwc(y, relu=True)      # IN + ReLU

    x = stage(params["dcn1"], x, 7, 1, 3)
    skip1 = x
    x = stage(params["dcn2"], x, 4, 2, 1)
    skip2 = x
    x = stage(params["dcn3"], x, 4, 2, 1)
    skip3 = x
    x = stage(params["dcn4"], x, 4, 2, 1)

    # ResBlocks(n_res, mc*4, norm='in', act='relu', pad='zero')
    for rb in params["res"]:
        x_org = x
        h = conv2d_nhwc(x, rb["conv1"]["w"], rb["conv1"]["b"], 1, 1)
        h = instance_norm_nhwc(h, relu=True)                 # Conv2dBlock(norm='in', act='relu')
        h = conv2d_nhwc(h, rb["conv2"]["w"], rb["conv2"]["b"], 1, 1)
        x = instance_norm_residual_nhwc(h, x_org)            # x_org + 0.1 * IN(h)  (act='none')

    def to_nchw(t):
        return jnp.transpose(t, (0, 3, 1, 2))                # transpose only at the boundary

    return [to_nchw(x), to_nchw(skip1), to_nchw(skip2), to_nchw(skip3)]


# ----------------------------------------------------------------------------
if __name__ == "__main__":
    num_features = 4
    model_channels = 8
    n_res = 1

    key = jax.random.PRNGKey(0)
    kp, kx = jax.random.split(key)
    params = init_content_encoder(kp, num_features, model_channels, n_res)

    x = jax.random.normal(kx, (2, num_features, 16, 16), jnp.float32)   # NCHW

    fwd = jax.jit(content_encoder_forward)
    outs = fwd(params, x)
    outs = jax.block_until_ready(outs)

    # sanity on shapes implied by the module
    assert outs[0].shape == (2, model_channels * 4, 2, 2)
    assert outs[1].shape == (2, model_channels // 2, 16, 16)
    assert outs[2].shape == (2, model_channels, 8, 8)
    assert outs[3].shape == (2, model_channels * 2, 4, 4)
    assert all(bool(jnp.all(jnp.isfinite(o))) for o in outs)

    print("KERNEL_OK")
</pallas_src>

<mosaic_0001>
module attributes {stable_mosaic.version = 11 : i64} {
  func.func @_mm_bias_kernel(%arg0: i32, %arg1: memref<256x196xbf16, #tpu.memory_space<vmem>>, %arg2: memref<196x256xbf16, #tpu.memory_space<vmem>>, %arg3: memref<1x256xf32, #tpu.memory_space<vmem>>, %arg4: memref<256x256xf32, #tpu.memory_space<vmem>>) attributes {dimension_semantics = [#tpu.dimension_semantics<parallel>], iteration_bounds = array<i64: 2>, scalar_prefetch = 0 : i64, scratch_operands = 0 : i64, tpu.core_type = #tpu.core_type<tc>, window_params = [{transform_indices = @transform_0, window_bounds = array<i64: 256, 196>}, {pipeline_mode = #tpu.pipeline_mode<synchronous>, transform_indices = @transform_1, window_bounds = array<i64: 196, 256>}, {pipeline_mode = #tpu.pipeline_mode<synchronous>, transform_indices = @transform_2, window_bounds = array<i64: 1, 256>}, {transform_indices = @transform_3, window_bounds = array<i64: 256, 256>}]} {
    %c0 = arith.constant 0 : index
    %c0_0 = arith.constant 0 : index
    %0 = vector.load %arg1[%c0, %c0_0] : memref<256x196xbf16, #tpu.memory_space<vmem>>, vector<256x196xbf16>
    %c0_1 = arith.constant 0 : index
    %c0_2 = arith.constant 0 : index
    %1 = vector.load %arg2[%c0_1, %c0_2] : memref<196x256xbf16, #tpu.memory_space<vmem>>, vector<196x256xbf16>
    %cst = arith.constant dense<0.000000e+00> : vector<256x256xf32>
    %2 = tpu.matmul %0, %1, %cst {dimension_numbers = #tpu.dot_dimension_numbers<[1], [0], [0], [1], [0, 0, 1, 1], [], []>} : vector<256x196xbf16>, vector<196x256xbf16>, vector<256x256xf32> -> vector<256x256xf32>
    %c0_3 = arith.constant 0 : index
    %c0_4 = arith.constant 0 : index
    %3 = vector.load %arg3[%c0_3, %c0_4] : memref<1x256xf32, #tpu.memory_space<vmem>>, vector<1x256xf32>
    %4 = vector.broadcast %3 : vector<1x256xf32> to vector<256x256xf32>
    %5 = arith.addf %2, %4 : vector<256x256xf32>
    %c0_5 = arith.constant 0 : index
    %c0_6 = arith.constant 0 : index
    %6 = vector.load %arg4[%c0_5, %c0_6] : memref<256x256xf32, #tpu.memory_space<vmem>>, vector<256x256xf32>
    tpu.vector_store %arg4[%c0_5, %c0_6], %5 {strides = array<i32>} : memref<256x256xf32, #tpu.memory_space<vmem>>, vector<256x256xf32>,
    return
  }
  func.func @transform_0(%arg0: i32) -> (i32, i32) {
    %c0_i32 = arith.constant 0 : i32
    %c0_i32_0 = arith.constant 0 : i32
    return %arg0, %c0_i32 : i32, i32
  }
  func.func @transform_1(%arg0: i32) -> (i32, i32) {
    %c0_i32 = arith.constant 0 : i32
    %c0_i32_0 = arith.constant 0 : i32
    %c0_i32_1 = arith.constant 0 : i32
    return %c0_i32, %c0_i32_0 : i32, i32
  }
  func.func @transform_2(%arg0: i32) -> (i32, i32) {
    %c0_i32 = arith.constant 0 : i32
    %c0_i32_0 = arith.constant 0 : i32
    %c0_i32_1 = arith.constant 0 : i32
    return %c0_i32, %c0_i32_0 : i32, i32
  }
  func.func @transform_3(%arg0: i32) -> (i32, i32) {
    %c0_i32 = arith.constant 0 : i32
    %c0_i32_0 = arith.constant 0 : i32
    return %arg0, %c0_i32 : i32, i32
  }
}

module attributes {stable_mosaic.version = 11 : i64} {
  func.func @_mm_mask_bias_kernel(%arg0: i32, %arg1: memref<256x196xbf16, #tpu.memory_space<vmem>>, %arg2: memref<256x49xf32, #tpu.memory_space<vmem>>, %arg3: memref<196x128xbf16, #tpu.memory_space<vmem>>, %arg4: memref<1x128xf32, #tpu.memory_space<vmem>>, %arg5: memref<256x128xf32, #tpu.memory_space<vmem>>) attributes {dimension_semantics = [#tpu.dimension_semantics<parallel>], iteration_bounds = array<i64: 2>, scalar_prefetch = 0 : i64, scratch_operands = 0 : i64, tpu.core_type = #tpu.core_type<tc>, window_params = [{transform_indices = @transform_0, window_bounds = array<i64: 256, 196>}, {transform_indices = @transform_1, window_bounds = array<i64: 256, 49>}, {pipeline_mode = #tpu.pipeline_mode<synchronous>, transform_indices = @transform_2, window_bounds = array<i64: 196, 128>}, {pipeline_mode = #tpu.pipeline_mode<synchronous>, transform_indices = @transform_3, window_bounds = array<i64: 1, 128>}, {transform_indices = @transform_4, window_bounds = array<i64: 256, 128>}]} {
    %c0 = arith.constant 0 : index
    %c0_0 = arith.constant 0 : index
    %0 = vector.load %arg2[%c0, %c0_0] : memref<256x49xf32, #tpu.memory_space<vmem>>, vector<256x49xf32>
    %1 = tpu.concatenate %0, %0, %0, %0 in 1 : vector<256x49xf32>, vector<256x49xf32>, vector<256x49xf32>, vector<256x49xf32> -> vector<256x196xf32>
    %c0_1 = arith.constant 0 : index
    %c0_2 = arith.constant 0 : index
    %2 = vector.load %arg1[%c0_1, %c0_2] : memref<256x196xbf16, #tpu.memory_space<vmem>>, vector<256x196xbf16>
    %3 = arith.extf %2 : vector<256x196xbf16> to vector<256x196xf32>
    %4 = arith.mulf %3, %1 : vector<256x196xf32>
    %5 = arith.truncf %4 : vector<256x196xf32> to vector<256x196xbf16>
    %c0_3 = arith.constant 0 : index
    %c0_4 = arith.constant 0 : index
    %6 = vector.load %arg3[%c0_3, %c0_4] : memref<196x128xbf16, #tpu.memory_space<vmem>>, vector<196x128xbf16>
    %cst = arith.constant dense<0.000000e+00> : vector<256x128xf32>
    %7 = tpu.matmul %5, %6, %cst {dimension_numbers = #tpu.dot_dimension_numbers<[1], [0], [0], [1], [0, 0, 1, 1], [], []>} : vector<256x196xbf16>, vector<196x128xbf16>, vector<256x128xf32> -> vector<256x128xf32>
    %c0_5 = arith.constant 0 : index
    %c0_6 = arith.constant 0 : index
    %8 = vector.load %arg4[%c0_5, %c0_6] : memref<1x128xf32, #tpu.memory_space<vmem>>, vector<1x128xf32>
    %9 = vector.broadcast %8 : vector<1x128xf32> to vector<256x128xf32>
    %10 = arith.addf %7, %9 : vector<256x128xf32>
    %c0_7 = arith.constant 0 : index
    %c0_8 = arith.constant 0 : index
    %11 = vector.load %arg5[%c0_7, %c0_8] : memref<256x128xf32, #tpu.memory_space<vmem>>, vector<256x128xf32>
    tpu.vector_store %arg5[%c0_7, %c0_8], %10 {strides = array<i32>} : memref<256x128xf32, #tpu.memory_space<vmem>>, vector<256x128xf32>,
    return
  }
  func.func @transform_0(%arg0: i32) -> (i32, i32) {
    %c0_i32 = arith.constant 0 : i32
    %c0_i32_0 = arith.constant 0 : i32
    return %arg0, %c0_i32 : i32, i32
  }
  func.func @transform_1(%arg0: i32) -> (i32, i32) {
    %c0_i32 = arith.constant 0 : i32
    %c0_i32_0 = arith.constant 0 : i32
    return %arg0, %c0_i32 : i32, i32
  }
  func.func @transform_2(%arg0: i32) -> (i32, i32) {
    %c0_i32 = arith.constant 0 : i32
    %c0_i32_0 = arith.constant 0 : i32
    %c0_i32_1 = arith.constant 0 : i32
    return %c0_i32, %c0_i32_0 : i32, i32
  }
  func.func @transform_3(%arg0: i32) -> (i32, i32) {
    %c0_i32 = arith.constant 0 : i32
    %c0_i32_0 = arith.constant 0 : i32
    %c0_i32_1 = arith.constant 0 : i32
    return %c0_i32, %c0_i32_0 : i32, i32
  }
  func.func @transform_4(%arg0: i32) -> (i32, i32) {
    %c0_i32 = arith.constant 0 : i32
    %c0_i32_0 = arith.constant 0 : i32
    return %arg0, %c0_i32 : i32, i32
  }
}

module attributes {stable_mosaic.version = 11 : i64} {
  func.func @_in_kernel(%arg0: i32, %arg1: memref<1x256x4xf32, #tpu.memory_space<vmem>>, %arg2: memref<1x256x4xf32, #tpu.memory_space<vmem>>) attributes {dimension_semantics = [#tpu.dimension_semantics<parallel>], iteration_bounds = array<i64: 2>, scalar_prefetch = 0 : i64, scratch_operands = 0 : i64, tpu.core_type = #tpu.core_type<tc>, window_params = [{transform_indices = @transform_0, window_bounds = array<i64: 1, 256, 4>}, {transform_indices = @transform_1, window_bounds = array<i64: 1, 256, 4>}]} {
    %c0 = arith.constant 0 : index
    %c0_0 = arith.constant 0 : index
    %c0_1 = arith.constant 0 : index
    %0 = vector.load %arg1[%c0, %c0_0, %c0_1] : memref<1x256x4xf32, #tpu.memory_space<vmem>>, vector<1x256x4xf32>
    %cst = arith.constant dense<0.000000e+00> : vector<1x4xf32>
    %1 = vector.multi_reduction <add>, %0, %cst [1] : vector<1x256x4xf32> to vector<1x4xf32>
    %2 = vector.shape_cast %1 : vector<1x4xf32> to vector<1x1x4xf32>
    %cst_2 = arith.constant 2.560000e+02 : f32
    %3 = vector.broadcast %cst_2 : f32 to vector<1x1x4xf32>
    %4 = arith.divf %2, %3 : vector<1x1x4xf32>
    %5 = vector.broadcast %4 : vector<1x1x4xf32> to vector<1x256x4xf32>
    %6 = arith.subf %0, %5 : vector<1x256x4xf32>
    %7 = arith.mulf %6, %6 : vector<1x256x4xf32>
    %cst_3 = arith.constant dense<0.000000e+00> : vector<1x4xf32>
    %8 = vector.multi_reduction <add>, %7, %cst_3 [1] : vector<1x256x4xf32> to vector<1x4xf32>
    %9 = vector.shape_cast %8 : vector<1x4xf32> to vector<1x1x4xf32>
    %cst_4 = arith.constant 2.560000e+02 : f32
    %10 = vector.broadcast %cst_4 : f32 to vector<1x1x4xf32>
    %11 = arith.divf %9, %10 : vector<1x1x4xf32>
    %12 = vector.broadcast %4 : vector<1x1x4xf32> to vector<1x256x4xf32>
    %13 = arith.subf %0, %12 : vector<1x256x4xf32>
    %cst_5 = arith.constant 9.99999974E-6 : f32
    %14 = vector.broadcast %cst_5 : f32 to vector<1x1x4xf32>
    %15 = arith.addf %11, %14 : vector<1x1x4xf32>
    %16 = math.rsqrt %15 : vector<1x1x4xf32>
    %17 = vector.broadcast %16 : vector<1x1x4xf32> to vector<1x256x4xf32>
    %18 = arith.mulf %13, %17 : vector<1x256x4xf32>
    %cst_6 = arith.constant 0.000000e+00 : f32
    %19 = vector.broadcast %cst_6 : f32 to vector<1x256x4xf32>
    %20 = arith.maximumf %18, %19 : vector<1x256x4xf32>
    %c0_7 = arith.constant 0 : index
    %c0_8 = arith.constant 0 : index
    %c0_9 = arith.constant 0 : index
    %21 = vector.load %arg2[%c0_7, %c0_8, %c0_9] : memref<1x256x4xf32, #tpu.memory_space<vmem>>, vector<1x256x4xf32>
    tpu.vector_store %arg2[%c0_7, %c0_8, %c0_9], %20 {strides = array<i32>} : memref<1x256x4xf32, #tpu.memory_space<vmem>>, vector<1x256x4xf32>,
    return
  }
  func.func @transform_0(%arg0: i32) -> (i32, i32, i32) {
    %c0_i32 = arith.constant 0 : i32
    %c0_i32_0 = arith.constant 0 : i32
    %c0_i32_1 = arith.constant 0 : i32
    return %arg0, %c0_i32, %c0_i32_0 : i32, i32, i32
  }
  func.func @transform_1(%arg0: i32) -> (i32, i32, i32) {
    %c0_i32 = arith.constant 0 : i32
    %c0_i32_0 = arith.constant 0 : i32
    %c0_i32_1 = arith.constant 0 : i32
    return %arg0, %c0_i32, %c0_i32_0 : i32, i32, i32
  }
}

module attributes {stable_mosaic.version = 11 : i64} {
  func.func @_mm_bias_kernel(%arg0: i32, %arg1: memref<128x64xbf16, #tpu.memory_space<vmem>>, %arg2: memref<64x128xbf16, #tpu.memory_space<vmem>>, %arg3: memref<1x128xf32, #tpu.memory_space<vmem>>, %arg4: memref<128x128xf32, #tpu.memory_space<vmem>>) attributes {dimension_semantics = [#tpu.dimension_semantics<parallel>], iteration_bounds = array<i64: 1>, scalar_prefetch = 0 : i64, scratch_operands = 0 : i64, tpu.core_type = #tpu.core_type<tc>, window_params = [{transform_indices = @transform_0, window_bounds = array<i64: 128, 64>}, {pipeline_mode = #tpu.pipeline_mode<synchronous>, transform_indices = @transform_1, window_bounds = array<i64: 64, 128>}, {pipeline_mode = #tpu.pipeline_mode<synchronous>, transform_indices = @transform_2, window_bounds = array<i64: 1, 128>}, {transform_indices = @transform_3, window_bounds = array<i64: 128, 128>}]} {
    %c0 = arith.constant 0 : index
    %c0_0 = arith.constant 0 : index
    %0 = vector.load %arg1[%c0, %c0_0] : memref<128x64xbf16, #tpu.memory_space<vmem>>, vector<128x64xbf16>
    %c0_1 = arith.constant 0 : index
    %c0_2 = arith.constant 0 : index
    %1 = vector.load %arg2[%c0_1, %c0_2] : memref<64x128xbf16, #tpu.memory_space<vmem>>, vector<64x128xbf16>
    %cst = arith.constant dense<0.000000e+00> : vector<128x128xf32>
    %2 = tpu.matmul %0, %1, %cst {dimension_numbers = #tpu.dot_dimension_numbers<[1], [0], [0], [1], [0, 0, 1, 1], [], []>} : vector<128x64xbf16>, vector<64x128xbf16>, vector<128x128xf32> -> vector<128x128xf32>
    %c0_3 = arith.constant 0 : index
    %c0_4 = arith.constant 0 : index
    %3 = vector.load %arg3[%c0_3, %c0_4] : memref<1x128xf32, #tpu.memory_space<vmem>>, vector<1x128xf32>
    %4 = vector.broadcast %3 : vector<1x128xf32> to vector<128x128xf32>
    %5 = arith.addf %2, %4 : vector<128x128xf32>
    %c0_5 = arith.constant 0 : index
    %c0_6 = arith.constant 0 : index
    %6 = vector.load %arg4[%c0_5, %c0_6] : memref<128x128xf32, #tpu.memory_space<vmem>>, vector<128x128xf32>
    tpu.vector_store %arg4[%c0_5, %c0_6], %5 {strides = array<i32>} : memref<128x128xf32, #tpu.memory_space<vmem>>, vector<128x128xf32>,
    return
  }
  func.func @transform_0(%arg0: i32) -> (i32, i32) {
    %c0_i32 = arith.constant 0 : i32
    %c0_i32_0 = arith.constant 0 : i32
    return %arg0, %c0_i32 : i32, i32
  }
  func.func @transform_1(%arg0: i32) -> (i32, i32) {
    %c0_i32 = arith.constant 0 : i32
    %c0_i32_0 = arith.constant 0 : i32
    %c0_i32_1 = arith.constant 0 : i32
    return %c0_i32, %c0_i32_0 : i32, i32
  }
  func.func @transform_2(%arg0: i32) -> (i32, i32) {
    %c0_i32 = arith.constant 0 : i32
    %c0_i32_0 = arith.constant 0 : i32
    %c0_i32_1 = arith.constant 0 : i32
    return %c0_i32, %c0_i32_0 : i32, i32
  }
  func.func @transform_3(%arg0: i32) -> (i32, i32) {
    %c0_i32 = arith.constant 0 : i32
    %c0_i32_0 = arith.constant 0 : i32
    return %arg0, %c0_i32 : i32, i32
  }
}

module attributes {stable_mosaic.version = 11 : i64} {
  func.func @_in_kernel(%arg0: i32, %arg1: memref<1x64x8xf32, #tpu.memory_space<vmem>>, %arg2: memref<1x64x8xf32, #tpu.memory_space<vmem>>) attributes {dimension_semantics = [#tpu.dimension_semantics<parallel>], iteration_bounds = array<i64: 2>, scalar_prefetch = 0 : i64, scratch_operands = 0 : i64, tpu.core_type = #tpu.core_type<tc>, window_params = [{transform_indices = @transform_0, window_bounds = array<i64: 1, 64, 8>}, {transform_indices = @transform_1, window_bounds = array<i64: 1, 64, 8>}]} {
    %c0 = arith.constant 0 : index
    %c0_0 = arith.constant 0 : index
    %c0_1 = arith.constant 0 : index
    %0 = vector.load %arg1[%c0, %c0_0, %c0_1] : memref<1x64x8xf32, #tpu.memory_space<vmem>>, vector<1x64x8xf32>
    %cst = arith.constant dense<0.000000e+00> : vector<1x8xf32>
    %1 = vector.multi_reduction <add>, %0, %cst [1] : vector<1x64x8xf32> to vector<1x8xf32>
    %2 = vector.shape_cast %1 : vector<1x8xf32> to vector<1x1x8xf32>
    %cst_2 = arith.constant 6.400000e+01 : f32
    %3 = vector.broadcast %cst_2 : f32 to vector<1x1x8xf32>
    %4 = arith.divf %2, %3 : vector<1x1x8xf32>
    %5 = vector.broadcast %4 : vector<1x1x8xf32> to vector<1x64x8xf32>
    %6 = arith.subf %0, %5 : vector<1x64x8xf32>
    %7 = arith.mulf %6, %6 : vector<1x64x8xf32>
    %cst_3 = arith.constant dense<0.000000e+00> : vector<1x8xf32>
    %8 = vector.multi_reduction <add>, %7, %cst_3 [1] : vector<1x64x8xf32> to vector<1x8xf32>
    %9 = vector.shape_cast %8 : vector<1x8xf32> to vector<1x1x8xf32>
    %cst_4 = arith.constant 6.400000e+01 : f32
    %10 = vector.broadcast %cst_4 : f32 to vector<1x1x8xf32>
    %11 = arith.divf %9, %10 : vector<1x1x8xf32>
    %12 = vector.broadcast %4 : vector<1x1x8xf32> to vector<1x64x8xf32>
    %13 = arith.subf %0, %12 : vector<1x64x8xf32>
    %cst_5 = arith.constant 9.99999974E-6 : f32
    %14 = vector.broadcast %cst_5 : f32 to vector<1x1x8xf32>
    %15 = arith.addf %11, %14 : vector<1x1x8xf32>
    %16 = math.rsqrt %15 : vector<1x1x8xf32>
    %17 = vector.broadcast %16 : vector<1x1x8xf32> to vector<1x64x8xf32>
    %18 = arith.mulf %13, %17 : vector<1x64x8xf32>
    %cst_6 = arith.constant 0.000000e+00 : f32
    %19 = vector.broadcast %cst_6 : f32 to vector<1x64x8xf32>
    %20 = arith.maximumf %18, %19 : vector<1x64x8xf32>
    %c0_7 = arith.constant 0 : index
    %c0_8 = arith.constant 0 : index
    %c0_9 = arith.constant 0 : index
    %21 = vector.load %arg2[%c0_7, %c0_8, %c0_9] : memref<1x64x8xf32, #tpu.memory_space<vmem>>, vector<1x64x8xf32>
    tpu.vector_store %arg2[%c0_7, %c0_8, %c0_9], %20 {strides = array<i32>} : memref<1x64x8xf32, #tpu.memory_space<vmem>>, vector<1x64x8xf32>,
    return
  }
  func.func @transform_0(%arg0: i32) -> (i32, i32, i32) {
    %c0_i32 = arith.constant 0 : i32
    %c0_i32_0 = arith.constant 0 : i32
    %c0_i32_1 = arith.constant 0 : i32
    return %arg0, %c0_i32, %c0_i32_0 : i32, i32, i32
  }
  func.func @transform_1(%arg0: i32) -> (i32, i32, i32) {
    %c0_i32 = arith.constant 0 : i32
    %c0_i32_0 = arith.constant 0 : i32
    %c0_i32_1 = arith.constant 0 : i32
    return %arg0, %c0_i32, %c0_i32_0 : i32, i32, i32
  }
}

module attributes {stable_mosaic.version = 11 : i64} {
  func.func @_mm_mask_bias_kernel(%arg0: i32, %arg1: memref<128x64xbf16, #tpu.memory_space<vmem>>, %arg2: memref<128x16xf32, #tpu.memory_space<vmem>>, %arg3: memref<64x128xbf16, #tpu.memory_space<vmem>>, %arg4: memref<1x128xf32, #tpu.memory_space<vmem>>, %arg5: memref<128x128xf32, #tpu.memory_space<vmem>>) attributes {dimension_semantics = [#tpu.dimension_semantics<parallel>], iteration_bounds = array<i64: 1>, scalar_prefetch = 0 : i64, scratch_operands = 0 : i64, tpu.core_type = #tpu.core_type<tc>, window_params = [{transform_indices = @transform_0, window_bounds = array<i64: 128, 64>}, {transform_indices = @transform_1, window_bounds = array<i64: 128, 16>}, {pipeline_mode = #tpu.pipeline_mode<synchronous>, transform_indices = @transform_2, window_bounds = array<i64: 64, 128>}, {pipeline_mode = #tpu.pipeline_mode<synchronous>, transform_indices = @transform_3, window_bounds = array<i64: 1, 128>}, {transform_indices = @transform_4, window_bounds = array<i64: 128, 128>}]} {
    %c0 = arith.constant 0 : index
    %c0_0 = arith.constant 0 : index
    %0 = vector.load %arg2[%c0, %c0_0] : memref<128x16xf32, #tpu.memory_space<vmem>>, vector<128x16xf32>
    %1 = tpu.concatenate %0, %0, %0, %0 in 1 : vector<128x16xf32>, vector<128x16xf32>, vector<128x16xf32>, vector<128x16xf32> -> vector<128x64xf32>
    %c0_1 = arith.constant 0 : index
    %c0_2 = arith.constant 0 : index
    %2 = vector.load %arg1[%c0_1, %c0_2] : memref<128x64xbf16, #tpu.memory_space<vmem>>, vector<128x64xbf16>
    %3 = arith.extf %2 : vector<128x64xbf16> to vector<128x64xf32>
    %4 = arith.mulf %3, %1 : vector<128x64xf32>
    %5 = arith.truncf %4 : vector<128x64xf32> to vector<128x64xbf16>
    %c0_3 = arith.constant 0 : index
    %c0_4 = arith.constant 0 : index
    %6 = vector.load %arg3[%c0_3, %c0_4] : memref<64x128xbf16, #tpu.memory_space<vmem>>, vector<64x128xbf16>
    %cst = arith.constant dense<0.000000e+00> : vector<128x128xf32>
    %7 = tpu.matmul %5, %6, %cst {dimension_numbers = #tpu.dot_dimension_numbers<[1], [0], [0], [1], [0, 0, 1, 1], [], []>} : vector<128x64xbf16>, vector<64x128xbf16>, vector<128x128xf32> -> vector<128x128xf32>
    %c0_5 = arith.constant 0 : index
    %c0_6 = arith.constant 0 : index
    %8 = vector.load %arg4[%c0_5, %c0_6] : memref<1x128xf32, #tpu.memory_space<vmem>>, vector<1x128xf32>
    %9 = vector.broadcast %8 : vector<1x128xf32> to vector<128x128xf32>
    %10 = arith.addf %7, %9 : vector<128x128xf32>
    %c0_7 = arith.constant 0 : index
    %c0_8 = arith.constant 0 : index
    %11 = vector.load %arg5[%c0_7, %c0_8] : memref<128x128xf32, #tpu.memory_space<vmem>>, vector<128x128xf32>
    tpu.vector_store %arg5[%c0_7, %c0_8], %10 {strides = array<i32>} : memref<128x128xf32, #tpu.memory_space<vmem>>, vector<128x128xf32>,
    return
  }
  func.func @transform_0(%arg0: i32) -> (i32, i32) {
    %c0_i32 = arith.constant 0 : i32
    %c0_i32_0 = arith.constant 0 : i32
    return %arg0, %c0_i32 : i32, i32
  }
  func.func @transform_1(%arg0: i32) -> (i32, i32) {
    %c0_i32 = arith.constant 0 : i32
    %c0_i32_0 = arith.constant 0 : i32
    return %arg0, %c0_i32 : i32, i32
  }
  func.func @transform_2(%arg0: i32) -> (i32, i32) {
    %c0_i32 = arith.constant 0 : i32
    %c0_i32_0 = arith.constant 0 : i32
    %c0_i32_1 = arith.constant 0 : i32
    return %c0_i32, %c0_i32_0 : i32, i32
  }
  func.func @transform_3(%arg0: i32) -> (i32, i32) {
    %c0_i32 = arith.constant 0 : i32
    %c0_i32_0 = arith.constant 0 : i32
    %c0_i32_1 = arith.constant 0 : i32
    return %c0_i32, %c0_i32_0 : i32, i32
  }
  func.func @transform_4(%arg0: i32) -> (i32, i32) {
    %c0_i32 = arith.constant 0 : i32
    %c0_i32_0 = arith.constant 0 : i32
    return %arg0, %c0_i32 : i32, i32
  }
}

module attributes {stable_mosaic.version = 11 : i64} {
  func.func @_mm_bias_kernel(%arg0: i32, %arg1: memref<32x128xbf16, #tpu.memory_space<vmem>>, %arg2: memref<128x128xbf16, #tpu.memory_space<vmem>>, %arg3: memref<1x128xf32, #tpu.memory_space<vmem>>, %arg4: memref<32x128xf32, #tpu.memory_space<vmem>>) attributes {dimension_semantics = [#tpu.dimension_semantics<parallel>], iteration_bounds = array<i64: 1>, scalar_prefetch = 0 : i64, scratch_operands = 0 : i64, tpu.core_type = #tpu.core_type<tc>, window_params = [{transform_indices = @transform_0, window_bounds = array<i64: 32, 128>}, {pipeline_mode = #tpu.pipeline_mode<synchronous>, transform_indices = @transform_1, window_bounds = array<i64: 128, 128>}, {pipeline_mode = #tpu.pipeline_mode<synchronous>, transform_indices = @transform_2, window_bounds = array<i64: 1, 128>}, {transform_indices = @transform_3, window_bounds = array<i64: 32, 128>}]} {
    %c0 = arith.constant 0 : index
    %c0_0 = arith.constant 0 : index
    %0 = vector.load %arg1[%c0, %c0_0] : memref<32x128xbf16, #tpu.memory_space<vmem>>, vector<32x128xbf16>
    %c0_1 = arith.constant 0 : index
    %c0_2 = arith.constant 0 : index
    %1 = vector.load %arg2[%c0_1, %c0_2] : memref<128x128xbf16, #tpu.memory_space<vmem>>, vector<128x128xbf16>
    %cst = arith.constant dense<0.000000e+00> : vector<32x128xf32>
    %2 = tpu.matmul %0, %1, %cst {dimension_numbers = #tpu.dot_dimension_numbers<[1], [0], [0], [1], [0, 0, 1, 1], [], []>} : vector<32x128xbf16>, vector<128x128xbf16>, vector<32x128xf32> -> vector<32x128xf32>
    %c0_3 = arith.constant 0 : index
    %c0_4 = arith.constant 0 : index
    %3 = vector.load %arg3[%c0_3, %c0_4] : memref<1x128xf32, #tpu.memory_space<vmem>>, vector<1x128xf32>
    %4 = vector.broadcast %3 : vector<1x128xf32> to vector<32x128xf32>
    %5 = arith.addf %2, %4 : vector<32x128xf32>
    %c0_5 = arith.constant 0 : index
    %c0_6 = arith.constant 0 : index
    %6 = vector.load %arg4[%c0_5, %c0_6] : memref<32x128xf32, #tpu.memory_space<vmem>>, vector<32x128xf32>
    tpu.vector_store %arg4[%c0_5, %c0_6], %5 {strides = array<i32>} : memref<32x128xf32, #tpu.memory_space<vmem>>, vector<32x128xf32>,
    return
  }
  func.func @transform_0(%arg0: i32) -> (i32, i32) {
    %c0_i32 = arith.constant 0 : i32
    %c0_i32_0 = arith.constant 0 : i32
    return %arg0, %c0_i32 : i32, i32
  }
  func.func @transform_1(%arg0: i32) -> (i32, i32) {
    %c0_i32 = arith.constant 0 : i32
    %c0_i32_0 = arith.constant 0 : i32
    %c0_i32_1 = arith.constant 0 : i32
    return %c0_i32, %c0_i32_0 : i32, i32
  }
  func.func @transform_2(%arg0: i32) -> (i32, i32) {
    %c0_i32 = arith.constant 0 : i32
    %c0_i32_0 = arith.constant 0 : i32
    %c0_i32_1 = arith.constant 0 : i32
    return %c0_i32, %c0_i32_0 : i32, i32
  }
  func.func @transform_3(%arg0: i32) -> (i32, i32) {
    %c0_i32 = arith.constant 0 : i32
    %c0_i32_0 = arith.constant 0 : i32
    return %arg0, %c0_i32 : i32, i32
  }
}

module attributes {stable_mosaic.version = 11 : i64} {
  func.func @_in_kernel(%arg0: i32, %arg1: memref<1x16x16xf32, #tpu.memory_space<vmem>>, %arg2: memref<1x16x16xf32, #tpu.memory_space<vmem>>) attributes {dimension_semantics = [#tpu.dimension_semantics<parallel>], iteration_bounds = array<i64: 2>, scalar_prefetch = 0 : i64, scratch_operands = 0 : i64, tpu.core_type = #tpu.core_type<tc>, window_params = [{transform_indices = @transform_0, window_bounds = array<i64: 1, 16, 16>}, {transform_indices = @transform_1, window_bounds = array<i64: 1, 16, 16>}]} {
    %c0 = arith.constant 0 : index
    %c0_0 = arith.constant 0 : index
    %c0_1 = arith.constant 0 : index
    %0 = vector.load %arg1[%c0, %c0_0, %c0_1] : memref<1x16x16xf32, #tpu.memory_space<vmem>>, vector<1x16x16xf32>
    %cst = arith.constant dense<0.000000e+00> : vector<1x16xf32>
    %1 = vector.multi_reduction <add>, %0, %cst [1] : vector<1x16x16xf32> to vector<1x16xf32>
    %2 = vector.shape_cast %1 : vector<1x16xf32> to vector<1x1x16xf32>
    %cst_2 = arith.constant 1.600000e+01 : f32
    %3 = vector.broadcast %cst_2 : f32 to vector<1x1x16xf32>
    %4 = arith.divf %2, %3 : vector<1x1x16xf32>
    %5 = vector.broadcast %4 : vector<1x1x16xf32> to vector<1x16x16xf32>
    %6 = arith.subf %0, %5 : vector<1x16x16xf32>
    %7 = arith.mulf %6, %6 : vector<1x16x16xf32>
    %cst_3 = arith.constant dense<0.000000e+00> : vector<1x16xf32>
    %8 = vector.multi_reduction <add>, %7, %cst_3 [1] : vector<1x16x16xf32> to vector<1x16xf32>
    %9 = vector.shape_cast %8 : vector<1x16xf32> to vector<1x1x16xf32>
    %cst_4 = arith.constant 1.600000e+01 : f32
    %10 = vector.broadcast %cst_4 : f32 to vector<1x1x16xf32>
    %11 = arith.divf %9, %10 : vector<1x1x16xf32>
    %12 = vector.broadcast %4 : vector<1x1x16xf32> to vector<1x16x16xf32>
    %13 = arith.subf %0, %12 : vector<1x16x16xf32>
    %cst_5 = arith.constant 9.99999974E-6 : f32
    %14 = vector.broadcast %cst_5 : f32 to vector<1x1x16xf32>
    %15 = arith.addf %11, %14 : vector<1x1x16xf32>
    %16 = math.rsqrt %15 : vector<1x1x16xf32>
    %17 = vector.broadcast %16 : vector<1x1x16xf32> to vector<1x16x16xf32>
    %18 = arith.mulf %13, %17 : vector<1x16x16xf32>
    %cst_6 = arith.constant 0.000000e+00 : f32
    %19 = vector.broadcast %cst_6 : f32 to vector<1x16x16xf32>
    %20 = arith.maximumf %18, %19 : vector<1x16x16xf32>
    %c0_7 = arith.constant 0 : index
    %c0_8 = arith.constant 0 : index
    %c0_9 = arith.constant 0 : index
    %21 = vector.load %arg2[%c0_7, %c0_8, %c0_9] : memref<1x16x16xf32, #tpu.memory_space<vmem>>, vector<1x16x16xf32>
    tpu.vector_store %arg2[%c0_7, %c0_8, %c0_9], %20 {strides = array<i32>} : memref<1x16x16xf32, #tpu.memory_space<vmem>>, vector<1x16x16xf32>,
    return
  }
  func.func @transform_0(%arg0: i32) -> (i32, i32, i32) {
    %c0_i32 = arith.constant 0 : i32
    %c0_i32_0 = arith.constant 0 : i32
    %c0_i32_1 = arith.constant 0 : i32
    return %arg0, %c0_i32, %c0_i32_0 : i32, i32, i32
  }
  func.func @transform_1(%arg0: i32) -> (i32, i32, i32) {
    %c0_i32 = arith.constant 0 : i32
    %c0_i32_0 = arith.constant 0 : i32
    %c0_i32_1 = arith.constant 0 : i32
    return %arg0, %c0_i32, %c0_i32_0 : i32, i32, i32
  }
}

module attributes {stable_mosaic.version = 11 : i64} {
  func.func @_mm_mask_bias_kernel(%arg0: i32, %arg1: memref<32x128xbf16, #tpu.memory_space<vmem>>, %arg2: memref<32x16xf32, #tpu.memory_space<vmem>>, %arg3: memref<128x128xbf16, #tpu.memory_space<vmem>>, %arg4: memref<1x128xf32, #tpu.memory_space<vmem>>, %arg5: memref<32x128xf32, #tpu.memory_space<vmem>>) attributes {dimension_semantics = [#tpu.dimension_semantics<parallel>], iteration_bounds = array<i64: 1>, scalar_prefetch = 0 : i64, scratch_operands = 0 : i64, tpu.core_type = #tpu.core_type<tc>, window_params = [{transform_indices = @transform_0, window_bounds = array<i64: 32, 128>}, {transform_indices = @transform_1, window_bounds = array<i64: 32, 16>}, {pipeline_mode = #tpu.pipeline_mode<synchronous>, transform_indices = @transform_2, window_bounds = array<i64: 128, 128>}, {pipeline_mode = #tpu.pipeline_mode<synchronous>, transform_indices = @transform_3, window_bounds = array<i64: 1, 128>}, {transform_indices = @transform_4, window_bounds = array<i64: 32, 128>}]} {
    %c0 = arith.constant 0 : index
    %c0_0 = arith.constant 0 : index
    %0 = vector.load %arg2[%c0, %c0_0] : memref<32x16xf32, #tpu.memory_space<vmem>>, vector<32x16xf32>
    %1 = tpu.concatenate %0, %0, %0, %0, %0, %0, %0, %0 in 1 : vector<32x16xf32>, vector<32x16xf32>, vector<32x16xf32>, vector<32x16xf32>, vector<32x16xf32>, vector<32x16xf32>, vector<32x16xf32>, vector<32x16xf32> -> vector<32x128xf32>
    %c0_1 = arith.constant 0 : index
    %c0_2 = arith.constant 0 : index
    %2 = vector.load %arg1[%c0_1, %c0_2] : memref<32x128xbf16, #tpu.memory_space<vmem>>, vector<32x128xbf16>
    %3 = arith.extf %2 : vector<32x128xbf16> to vector<32x128xf32>
    %4 = arith.mulf %3, %1 : vector<32x128xf32>
    %5 = arith.truncf %4 : vector<32x128xf32> to vector<32x128xbf16>
    %c0_3 = arith.constant 0 : index
    %c0_4 = arith.constant 0 : index
    %6 = vector.load %arg3[%c0_3, %c0_4] : memref<128x128xbf16, #tpu.memory_space<vmem>>, vector<128x128xbf16>
    %cst = arith.constant dense<0.000000e+00> : vector<32x128xf32>
    %7 = tpu.matmul %5, %6, %cst {dimension_numbers = #tpu.dot_dimension_numbers<[1], [0], [0], [1], [0, 0, 1, 1], [], []>} : vector<32x128xbf16>, vector<128x128xbf16>, vector<32x128xf32> -> vector<32x128xf32>
    %c0_5 = arith.constant 0 : index
    %c0_6 = arith.constant 0 : index
    %8 = vector.load %arg4[%c0_5, %c0_6] : memref<1x128xf32, #tpu.memory_space<vmem>>, vector<1x128xf32>
    %9 = vector.broadcast %8 : vector<1x128xf32> to vector<32x128xf32>
    %10 = arith.addf %7, %9 : vector<32x128xf32>
    %c0_7 = arith.constant 0 : index
    %c0_8 = arith.constant 0 : index
    %11 = vector.load %arg5[%c0_7, %c0_8] : memref<32x128xf32, #tpu.memory_space<vmem>>, vector<32x128xf32>
    tpu.vector_store %arg5[%c0_7, %c0_8], %10 {strides = array<i32>} : memref<32x128xf32, #tpu.memory_space<vmem>>, vector<32x128xf32>,
    return
  }
  func.func @transform_0(%arg0: i32) -> (i32, i32) {
    %c0_i32 = arith.constant 0 : i32
    %c0_i32_0 = arith.constant 0 : i32
    return %arg0, %c0_i32 : i32, i32
  }
  func.func @transform_1(%arg0: i32) -> (i32, i32) {
    %c0_i32 = arith.constant 0 : i32
    %c0_i32_0 = arith.constant 0 : i32
    return %arg0, %c0_i32 : i32, i32
  }
  func.func @transform_2(%arg0: i32) -> (i32, i32) {
    %c0_i32 = arith.constant 0 : i32
    %c0_i32_0 = arith.constant 0 : i32
    %c0_i32_1 = arith.constant 0 : i32
    return %c0_i32, %c0_i32_0 : i32, i32
  }
  func.func @transform_3(%arg0: i32) -> (i32, i32) {
    %c0_i32 = arith.constant 0 : i32
    %c0_i32_0 = arith.constant 0 : i32
    %c0_i32_1 = arith.constant 0 : i32
    return %c0_i32, %c0_i32_0 : i32, i32
  }
  func.func @transform_4(%arg0: i32) -> (i32, i32) {
    %c0_i32 = arith.constant 0 : i32
    %c0_i32_0 = arith.constant 0 : i32
    return %arg0, %c0_i32 : i32, i32
  }
}

module attributes {stable_mosaic.version = 11 : i64} {
  func.func @_mm_bias_kernel(%arg0: i32, %arg1: memref<8x256xbf16, #tpu.memory_space<vmem>>, %arg2: memref<256x128xbf16, #tpu.memory_space<vmem>>, %arg3: memref<1x128xf32, #tpu.memory_space<vmem>>, %arg4: memref<8x128xf32, #tpu.memory_space<vmem>>) attributes {dimension_semantics = [#tpu.dimension_semantics<parallel>], iteration_bounds = array<i64: 1>, scalar_prefetch = 0 : i64, scratch_operands = 0 : i64, tpu.core_type = #tpu.core_type<tc>, window_params = [{transform_indices = @transform_0, window_bounds = array<i64: 8, 256>}, {pipeline_mode = #tpu.pipeline_mode<synchronous>, transform_indices = @transform_1, window_bounds = array<i64: 256, 128>}, {pipeline_mode = #tpu.pipeline_mode<synchronous>, transform_indices = @transform_2, window_bounds = array<i64: 1, 128>}, {transform_indices = @transform_3, window_bounds = array<i64: 8, 128>}]} {
    %c0 = arith.constant 0 : index
    %c0_0 = arith.constant 0 : index
    %0 = vector.load %arg1[%c0, %c0_0] : memref<8x256xbf16, #tpu.memory_space<vmem>>, vector<8x256xbf16>
    %c0_1 = arith.constant 0 : index
    %c0_2 = arith.constant 0 : index
    %1 = vector.load %arg2[%c0_1, %c0_2] : memref<256x128xbf16, #tpu.memory_space<vmem>>, vector<256x128xbf16>
    %cst = arith.constant dense<0.000000e+00> : vector<8x128xf32>
    %2 = tpu.matmul %0, %1, %cst {dimension_numbers = #tpu.dot_dimension_numbers<[1], [0], [0], [1], [0, 0, 1, 1], [], []>} : vector<8x256xbf16>, vector<256x128xbf16>, vector<8x128xf32> -> vector<8x128xf32>
    %c0_3 = arith.constant 0 : index
    %c0_4 = arith.constant 0 : index
    %3 = vector.load %arg3[%c0_3, %c0_4] : memref<1x128xf32, #tpu.memory_space<vmem>>, vector<1x128xf32>
    %4 = vector.broadcast %3 : vector<1x128xf32> to vector<8x128xf32>
    %5 = arith.addf %2, %4 : vector<8x128xf32>
    %c0_5 = arith.constant 0 : index
    %c0_6 = arith.constant 0 : index
    %6 = vector.load %arg4[%c0_5, %c0_6] : memref<8x128xf32, #tpu.memory_space<vmem>>, vector<8x128xf32>
    tpu.vector_store %arg4[%c0_5, %c0_6], %5 {strides = array<i32>} : memref<8x128xf32, #tpu.memory_space<vmem>>, vector<8x128xf32>,
    return
  }
  func.func @transform_0(%arg0: i32) -> (i32, i32) {
    %c0_i32 = arith.constant 0 : i32
    %c0_i32_0 = arith.constant 0 : i32
    return %arg0, %c0_i32 : i32, i32
  }
  func.func @transform_1(%arg0: i32) -> (i32, i32) {
    %c0_i32 = arith.constant 0 : i32
    %c0_i32_0 = arith.constant 0 : i32
    %c0_i32_1 = arith.constant 0 : i32
    return %c0_i32, %c0_i32_0 : i32, i32
  }
  func.func @transform_2(%arg0: i32) -> (i32, i32) {
    %c0_i32 = arith.constant 0 : i32
    %c0_i32_0 = arith.constant 0 : i32
    %c0_i32_1 = arith.constant 0 : i32
    return %c0_i32, %c0_i32_0 : i32, i32
  }
  func.func @transform_3(%arg0: i32) -> (i32, i32) {
    %c0_i32 = arith.constant 0 : i32
    %c0_i32_0 = arith.constant 0 : i32
    return %arg0, %c0_i32 : i32, i32
  }
}

module attributes {stable_mosaic.version = 11 : i64} {
  func.func @_mm_mask_bias_kernel(%arg0: i32, %arg1: memref<8x256xbf16, #tpu.memory_space<vmem>>, %arg2: memref<8x16xf32, #tpu.memory_space<vmem>>, %arg3: memref<256x128xbf16, #tpu.memory_space<vmem>>, %arg4: memref<1x128xf32, #tpu.memory_space<vmem>>, %arg5: memref<8x128xf32, #tpu.memory_space<vmem>>) attributes {dimension_semantics = [#tpu.dimension_semantics<parallel>], iteration_bounds = array<i64: 1>, scalar_prefetch = 0 : i64, scratch_operands = 0 : i64, tpu.core_type = #tpu.core_type<tc>, window_params = [{transform_indices = @transform_0, window_bounds = array<i64: 8, 256>}, {transform_indices = @transform_1, window_bounds = array<i64: 8, 16>}, {pipeline_mode = #tpu.pipeline_mode<synchronous>, transform_indices = @transform_2, window_bounds = array<i64: 256, 128>}, {pipeline_mode = #tpu.pipeline_mode<synchronous>, transform_indices = @transform_3, window_bounds = array<i64: 1, 128>}, {transform_indices = @transform_4, window_bounds = array<i64: 8, 128>}]} {
    %c0 = arith.constant 0 : index
    %c0_0 = arith.constant 0 : index
    %0 = vector.load %arg2[%c0, %c0_0] : memref<8x16xf32, #tpu.memory_space<vmem>>, vector<8x16xf32>
    %1 = tpu.concatenate %0, %0, %0, %0, %0, %0, %0, %0, %0, %0, %0, %0, %0, %0, %0, %0 in 1 : vector<8x16xf32>, vector<8x16xf32>, vector<8x16xf32>, vector<8x16xf32>, vector<8x16xf32>, vector<8x16xf32>, vector<8x16xf32>, vector<8x16xf32>, vector<8x16xf32>, vector<8x16xf32>, vector<8x16xf32>, vector<8x16xf32>, vector<8x16xf32>, vector<8x16xf32>, vector<8x16xf32>, vector<8x16xf32> -> vector<8x256xf32>
    %c0_1 = arith.constant 0 : index
    %c0_2 = arith.constant 0 : index
    %2 = vector.load %arg1[%c0_1, %c0_2] : memref<8x256xbf16, #tpu.memory_space<vmem>>, vector<8x256xbf16>
    %3 = arith.extf %2 : vector<8x256xbf16> to vector<8x256xf32>
    %4 = arith.mulf %3, %1 : vector<8x256xf32>
    %5 = arith.truncf %4 : vector<8x256xf32> to vector<8x256xbf16>
    %c0_3 = arith.constant 0 : index
    %c0_4 = arith.constant 0 : index
    %6 = vector.load %arg3[%c0_3, %c0_4] : memref<256x128xbf16, #tpu.memory_space<vmem>>, vector<256x128xbf16>
    %cst = arith.constant dense<0.000000e+00> : vector<8x128xf32>
    %7 = tpu.matmul %5, %6, %cst {dimension_numbers = #tpu.dot_dimension_numbers<[1], [0], [0], [1], [0, 0, 1, 1], [], []>} : vector<8x256xbf16>, vector<256x128xbf16>, vector<8x128xf32> -> vector<8x128xf32>
    %c0_5 = arith.constant 0 : index
    %c0_6 = arith.constant 0 : index
    %8 = vector.load %arg4[%c0_5, %c0_6] : memref<1x128xf32, #tpu.memory_space<vmem>>, vector<1x128xf32>
    %9 = vector.broadcast %8 : vector<1x128xf32> to vector<8x128xf32>
    %10 = arith.addf %7, %9 : vector<8x128xf32>
    %c0_7 = arith.constant 0 : index
    %c0_8 = arith.constant 0 : index
    %11 = vector.load %arg5[%c0_7, %c0_8] : memref<8x128xf32, #tpu.memory_space<vmem>>, vector<8x128xf32>
    tpu.vector_store %arg5[%c0_7, %c0_8], %10 {strides = array<i32>} : memref<8x128xf32, #tpu.memory_space<vmem>>, vector<8x128xf32>,
    return
  }
  func.func @transform_0(%arg0: i32) -> (i32, i32) {
    %c0_i32 = arith.constant 0 : i32
    %c0_i32_0 = arith.constant 0 : i32
    return %arg0, %c0_i32 : i32, i32
  }
  func.func @transform_1(%arg0: i32) -> (i32, i32) {
    %c0_i32 = arith.constant 0 : i32
    %c0_i32_0 = arith.constant 0 : i32
    return %arg0, %c0_i32 : i32, i32
  }
  func.func @transform_2(%arg0: i32) -> (i32, i32) {
    %c0_i32 = arith.constant 0 : i32
    %c0_i32_0 = arith.constant 0 : i32
    %c0_i32_1 = arith.constant 0 : i32
    return %c0_i32, %c0_i32_0 : i32, i32
  }
  func.func @transform_3(%arg0: i32) -> (i32, i32) {
    %c0_i32 = arith.constant 0 : i32
    %c0_i32_0 = arith.constant 0 : i32
    %c0_i32_1 = arith.constant 0 : i32
    return %c0_i32, %c0_i32_0 : i32, i32
  }
  func.func @transform_4(%arg0: i32) -> (i32, i32) {
    %c0_i32 = arith.constant 0 : i32
    %c0_i32_0 = arith.constant 0 : i32
    return %arg0, %c0_i32 : i32, i32
  }
}

module attributes {stable_mosaic.version = 11 : i64} {
  func.func @_in_kernel(%arg0: i32, %arg1: memref<1x4x32xf32, #tpu.memory_space<vmem>>, %arg2: memref<1x4x32xf32, #tpu.memory_space<vmem>>) attributes {dimension_semantics = [#tpu.dimension_semantics<parallel>], iteration_bounds = array<i64: 2>, scalar_prefetch = 0 : i64, scratch_operands = 0 : i64, tpu.core_type = #tpu.core_type<tc>, window_params = [{transform_indices = @transform_0, window_bounds = array<i64: 1, 4, 32>}, {transform_indices = @transform_1, window_bounds = array<i64: 1, 4, 32>}]} {
    %c0 = arith.constant 0 : index
    %c0_0 = arith.constant 0 : index
    %c0_1 = arith.constant 0 : index
    %0 = vector.load %arg1[%c0, %c0_0, %c0_1] : memref<1x4x32xf32, #tpu.memory_space<vmem>>, vector<1x4x32xf32>
    %cst = arith.constant dense<0.000000e+00> : vector<1x32xf32>
    %1 = vector.multi_reduction <add>, %0, %cst [1] : vector<1x4x32xf32> to vector<1x32xf32>
    %2 = vector.shape_cast %1 : vector<1x32xf32> to vector<1x1x32xf32>
    %cst_2 = arith.constant 4.000000e+00 : f32
    %3 = vector.broadcast %cst_2 : f32 to vector<1x1x32xf32>
    %4 = arith.divf %2, %3 : vector<1x1x32xf32>
    %5 = vector.broadcast %4 : vector<1x1x32xf32> to vector<1x4x32xf32>
    %6 = arith.subf %0, %5 : vector<1x4x32xf32>
    %7 = arith.mulf %6, %6 : vector<1x4x32xf32>
    %cst_3 = arith.constant dense<0.000000e+00> : vector<1x32xf32>
    %8 = vector.multi_reduction <add>, %7, %cst_3 [1] : vector<1x4x32xf32> to vector<1x32xf32>
    %9 = vector.shape_cast %8 : vector<1x32xf32> to vector<1x1x32xf32>
    %cst_4 = arith.constant 4.000000e+00 : f32
    %10 = vector.broadcast %cst_4 : f32 to vector<1x1x32xf32>
    %11 = arith.divf %9, %10 : vector<1x1x32xf32>
    %12 = vector.broadcast %4 : vector<1x1x32xf32> to vector<1x4x32xf32>
    %13 = arith.subf %0, %12 : vector<1x4x32xf32>
    %cst_5 = arith.constant 9.99999974E-6 : f32
    %14 = vector.broadcast %cst_5 : f32 to vector<1x1x32xf32>
    %15 = arith.addf %11, %14 : vector<1x1x32xf32>
    %16 = math.rsqrt %15 : vector<1x1x32xf32>
    %17 = vector.broadcast %16 : vector<1x1x32xf32> to vector<1x4x32xf32>
    %18 = arith.mulf %13, %17 : vector<1x4x32xf32>
    %cst_6 = arith.constant 0.000000e+00 : f32
    %19 = vector.broadcast %cst_6 : f32 to vector<1x4x32xf32>
    %20 = arith.maximumf %18, %19 : vector<1x4x32xf32>
    %c0_7 = arith.constant 0 : index
    %c0_8 = arith.constant 0 : index
    %c0_9 = arith.constant 0 : index
    %21 = vector.load %arg2[%c0_7, %c0_8, %c0_9] : memref<1x4x32xf32, #tpu.memory_space<vmem>>, vector<1x4x32xf32>
    tpu.vector_store %arg2[%c0_7, %c0_8, %c0_9], %20 {strides = array<i32>} : memref<1x4x32xf32, #tpu.memory_space<vmem>>, vector<1x4x32xf32>,
    return
  }
  func.func @transform_0(%arg0: i32) -> (i32, i32, i32) {
    %c0_i32 = arith.constant 0 : i32
    %c0_i32_0 = arith.constant 0 : i32
    %c0_i32_1 = arith.constant 0 : i32
    return %arg0, %c0_i32, %c0_i32_0 : i32, i32, i32
  }
  func.func @transform_1(%arg0: i32) -> (i32, i32, i32) {
    %c0_i32 = arith.constant 0 : i32
    %c0_i32_0 = arith.constant 0 : i32
    %c0_i32_1 = arith.constant 0 : i32
    return %arg0, %c0_i32, %c0_i32_0 : i32, i32, i32
  }
}

module attributes {stable_mosaic.version = 11 : i64} {
  func.func @_mm_bias_kernel(%arg0: i32, %arg1: memref<8x288xbf16, #tpu.memory_space<vmem>>, %arg2: memref<288x128xbf16, #tpu.memory_space<vmem>>, %arg3: memref<1x128xf32, #tpu.memory_space<vmem>>, %arg4: memref<8x128xf32, #tpu.memory_space<vmem>>) attributes {dimension_semantics = [#tpu.dimension_semantics<parallel>], iteration_bounds = array<i64: 1>, scalar_prefetch = 0 : i64, scratch_operands = 0 : i64, tpu.core_type = #tpu.core_type<tc>, window_params = [{transform_indices = @transform_0, window_bounds = array<i64: 8, 288>}, {pipeline_mode = #tpu.pipeline_mode<synchronous>, transform_indices = @transform_1, window_bounds = array<i64: 288, 128>}, {pipeline_mode = #tpu.pipeline_mode<synchronous>, transform_indices = @transform_2, window_bounds = array<i64: 1, 128>}, {transform_indices = @transform_3, window_bounds = array<i64: 8, 128>}]} {
    %c0 = arith.constant 0 : index
    %c0_0 = arith.constant 0 : index
    %0 = vector.load %arg1[%c0, %c0_0] : memref<8x288xbf16, #tpu.memory_space<vmem>>, vector<8x288xbf16>
    %c0_1 = arith.constant 0 : index
    %c0_2 = arith.constant 0 : index
    %1 = vector.load %arg2[%c0_1, %c0_2] : memref<288x128xbf16, #tpu.memory_space<vmem>>, vector<288x128xbf16>
    %cst = arith.constant dense<0.000000e+00> : vector<8x128xf32>
    %2 = tpu.matmul %0, %1, %cst {dimension_numbers = #tpu.dot_dimension_numbers<[1], [0], [0], [1], [0, 0, 1, 1], [], []>} : vector<8x288xbf16>, vector<288x128xbf16>, vector<8x128xf32> -> vector<8x128xf32>
    %c0_3 = arith.constant 0 : index
    %c0_4 = arith.constant 0 : index
    %3 = vector.load %arg3[%c0_3, %c0_4] : memref<1x128xf32, #tpu.memory_space<vmem>>, vector<1x128xf32>
    %4 = vector.broadcast %3 : vector<1x128xf32> to vector<8x128xf32>
    %5 = arith.addf %2, %4 : vector<8x128xf32>
    %c0_5 = arith.constant 0 : index
    %c0_6 = arith.constant 0 : index
    %6 = vector.load %arg4[%c0_5, %c0_6] : memref<8x128xf32, #tpu.memory_space<vmem>>, vector<8x128xf32>
    tpu.vector_store %arg4[%c0_5, %c0_6], %5 {strides = array<i32>} : memref<8x128xf32, #tpu.memory_space<vmem>>, vector<8x128xf32>,
    return
  }
  func.func @transform_0(%arg0: i32) -> (i32, i32) {
    %c0_i32 = arith.constant 0 : i32
    %c0_i32_0 = arith.constant 0 : i32
    return %arg0, %c0_i32 : i32, i32
  }
  func.func @transform_1(%arg0: i32) -> (i32, i32) {
    %c0_i32 = arith.constant 0 : i32
    %c0_i32_0 = arith.constant 0 : i32
    %c0_i32_1 = arith.constant 0 : i32
    return %c0_i32, %c0_i32_0 : i32, i32
  }
  func.func @transform_2(%arg0: i32) -> (i32, i32) {
    %c0_i32 = arith.constant 0 : i32
    %c0_i32_0 = arith.constant 0 : i32
    %c0_i32_1 = arith.constant 0 : i32
    return %c0_i32, %c0_i32_0 : i32, i32
  }
  func.func @transform_3(%arg0: i32) -> (i32, i32) {
    %c0_i32 = arith.constant 0 : i32
    %c0_i32_0 = arith.constant 0 : i32
    return %arg0, %c0_i32 : i32, i32
  }
}

module attributes {stable_mosaic.version = 11 : i64} {
  func.func @_in_residual_kernel(%arg0: i32, %arg1: memref<1x4x32xf32, #tpu.memory_space<vmem>>, %arg2: memref<1x4x32xf32, #tpu.memory_space<vmem>>, %arg3: memref<1x4x32xf32, #tpu.memory_space<vmem>>) attributes {dimension_semantics = [#tpu.dimension_semantics<parallel>], iteration_bounds = array<i64: 2>, scalar_prefetch = 0 : i64, scratch_operands = 0 : i64, tpu.core_type = #tpu.core_type<tc>, window_params = [{transform_indices = @transform_0, window_bounds = array<i64: 1, 4, 32>}, {transform_indices = @transform_1, window_bounds = array<i64: 1, 4, 32>}, {transform_indices = @transform_2, window_bounds = array<i64: 1, 4, 32>}]} {
    %c0 = arith.constant 0 : index
    %c0_0 = arith.constant 0 : index
    %c0_1 = arith.constant 0 : index
    %0 = vector.load %arg1[%c0, %c0_0, %c0_1] : memref<1x4x32xf32, #tpu.memory_space<vmem>>, vector<1x4x32xf32>
    %cst = arith.constant dense<0.000000e+00> : vector<1x32xf32>
    %1 = vector.multi_reduction <add>, %0, %cst [1] : vector<1x4x32xf32> to vector<1x32xf32>
    %2 = vector.shape_cast %1 : vector<1x32xf32> to vector<1x1x32xf32>
    %cst_2 = arith.constant 4.000000e+00 : f32
    %3 = vector.broadcast %cst_2 : f32 to vector<1x1x32xf32>
    %4 = arith.divf %2, %3 : vector<1x1x32xf32>
    %5 = vector.broadcast %4 : vector<1x1x32xf32> to vector<1x4x32xf32>
    %6 = arith.subf %0, %5 : vector<1x4x32xf32>
    %7 = arith.mulf %6, %6 : vector<1x4x32xf32>
    %cst_3 = arith.constant dense<0.000000e+00> : vector<1x32xf32>
    %8 = vector.multi_reduction <add>, %7, %cst_3 [1] : vector<1x4x32xf32> to vector<1x32xf32>
    %9 = vector.shape_cast %8 : vector<1x32xf32> to vector<1x1x32xf32>
    %cst_4 = arith.constant 4.000000e+00 : f32
    %10 = vector.broadcast %cst_4 : f32 to vector<1x1x32xf32>
    %11 = arith.divf %9, %10 : vector<1x1x32xf32>
    %12 = vector.broadcast %4 : vector<1x1x32xf32> to vector<1x4x32xf32>
    %13 = arith.subf %0, %12 : vector<1x4x32xf32>
    %cst_5 = arith.constant 9.99999974E-6 : f32
    %14 = vector.broadcast %cst_5 : f32 to vector<1x1x32xf32>
    %15 = arith.addf %11, %14 : vector<1x1x32xf32>
    %16 = math.rsqrt %15 : vector<1x1x32xf32>
    %17 = vector.broadcast %16 : vector<1x1x32xf32> to vector<1x4x32xf32>
    %18 = arith.mulf %13, %17 : vector<1x4x32xf32>
    %c0_6 = arith.constant 0 : index
    %c0_7 = arith.constant 0 : index
    %c0_8 = arith.constant 0 : index
    %19 = vector.load %arg2[%c0_6, %c0_7, %c0_8] : memref<1x4x32xf32, #tpu.memory_space<vmem>>, vector<1x4x32xf32>
    %cst_9 = arith.constant 1.000000e-01 : f32
    %20 = vector.broadcast %cst_9 : f32 to vector<1x4x32xf32>
    %21 = arith.mulf %20, %18 : vector<1x4x32xf32>
    %22 = arith.addf %19, %21 : vector<1x4x32xf32>
    %c0_10 = arith.constant 0 : index
    %c0_11 = arith.constant 0 : index
    %c0_12 = arith.constant 0 : index
    %23 = vector.load %arg3[%c0_10, %c0_11, %c0_12] : memref<1x4x32xf32, #tpu.memory_space<vmem>>, vector<1x4x32xf32>
    tpu.vector_store %arg3[%c0_10, %c0_11, %c0_12], %22 {strides = array<i32>} : memref<1x4x32xf32, #tpu.memory_space<vmem>>, vector<1x4x32xf32>,
    return
  }
  func.func @transform_0(%arg0: i32) -> (i32, i32, i32) {
    %c0_i32 = arith.constant 0 : i32
    %c0_i32_0 = arith.constant 0 : i32
    %c0_i32_1 = arith.constant 0 : i32
    return %arg0, %c0_i32, %c0_i32_0 : i32, i32, i32
  }
  func.func @transform_1(%arg0: i32) -> (i32, i32, i32) {
    %c0_i32 = arith.constant 0 : i32
    %c0_i32_0 = arith.constant 0 : i32
    %c0_i32_1 = arith.constant 0 : i32
    return %arg0, %c0_i32, %c0_i32_0 : i32, i32, i32
  }
  func.func @transform_2(%arg0: i32) -> (i32, i32, i32) {
    %c0_i32 = arith.constant 0 : i32
    %c0_i32_0 = arith.constant 0 : i32
    %c0_i32_1 = arith.constant 0 : i32
    return %arg0, %c0_i32, %c0_i32_0 : i32, i32, i32
  }
}

</mosaic_0001>

<llo_original>
// kernel: content_encoder_forward.16
$region0: #{content_encoder_forward.16}
  #allocation0 [shape = 'u32[]', space=smem, size = 0x4, offset = 0x4, fixed_abs, tag = 'smem constant byte address 0x4 - core index']
  #allocation1 [shape = 'u32[72,128]{1,0:T(1,128)}', space=vmem, size = 0x9000, scoped, tag = 'internal scratch']
  %s0 = inlined_call_operand.vmem [shape: bf16[512,196], index: 0, kind: input, shape index: {}]
  %s1 = inlined_call_operand.vmem [shape: bf16[196,256], index: 1, kind: input, shape index: {}]
  %s2 = inlined_call_operand.vmem [shape: f32[1,256], index: 2, kind: input, shape index: {}]
  %s3 = inlined_call_operand.vmem [shape: f32[512,256], index: 3, kind: output, shape index: {}]
  %s4 = sld [smem:[#allocation0]]
  $region45: #{content_encoder_forward.16} parent=0
    _
  %s6 = ssub.s32 1, %s4
  %s7 = scalar_select 0, %s6, %s4
  loop: start=0, step=1, limit=4
  $region2: #{content_encoder_forward.16} parent=0 // loop_pre_header
    _
  $region3: #{content_encoder_forward.16} parent=0 // loop_header
    %s9 = sphi 0, %s13
    %p10 = scmp.ge.s32.totalorder %s9, 4
    %s19 = sphi 0, %s21
    %s22 = sphi 0, %s19
    %s23 = sphi 0, %s22
    %s39 = sphi 0, %s23
    %s43 = sphi 0, %s43
    %s45 = sphi 0, %s43
    %s46 = sphi 0, %s45
    %s60 = sphi 0, %s46
    %s64 = sphi 0, %s64
    %s66 = sphi 0, %s64
    %s67 = sphi 0, %s66
    %s81 = sphi 0, %s67
    %s87 = sphi 0, %s89
    %s90 = sphi 0, %s87
    %s91 = sphi 0, %s90
    %s107 = sphi 0, %s91
  $region4: #{content_encoder_forward.16} parent=0 // loop_header_branch
    %12 = sbr.rel (%p10) target = $region8
  $region5: #{content_encoder_forward.16} parent=0 // loop_body
    %s14 = ssub.s32 %s9, 1
    %s15 = ssub.s32 %s9, 2
    %s16 = sadd.s32 %s9, 1
    %s17 = ssub.s32 %s9, %s16
    %p18 = scmp.eq.s32.totalorder %s17, 0
    %s20 = sadd.s32 %s19, 1
    %s21 = scalar_select %p18, %s19, %s20
    %p24 = pneg %p18
    %p25 = scmp.eq.s32.totalorder %s9, 1
    %p26 = por %p24, %p25
    %p27 = scmp.ne.s32.totalorder %s19, %s22
    %p28 = scmp.eq.s32.totalorder %s9, 0
    %p29 = por %p27, %p28
    %p30 = scmp.ne.s32.totalorder %s19, %s22
    %p31 = scmp.eq.s32.totalorder %s14, 1
    %p32 = por %p30, %p31
    %p33 = scmp.ne.s32.totalorder %s22, %s23
    %p34 = scmp.eq.s32.totalorder %s14, 0
    %p35 = por %p33, %p34
    %p36 = scmp.ne.s32.totalorder %s22, %s23
    %p37 = scmp.eq.s32.totalorder %s15, 1
    %p38 = por %p36, %p37
    %p40 = scmp.ne.s32.totalorder %s23, %s39
    %p41 = scmp.eq.s32.totalorder %s15, 0
    %p42 = por %p40, %p41
    %s44 = sadd.s32 %s43, 1
    %p47 = scmp.eq.s32.totalorder %s9, 1
    %p48 = scmp.ne.s32.totalorder %s43, %s45
    %p49 = scmp.eq.s32.totalorder %s9, 0
    %p50 = por %p48, %p49
    %p51 = scmp.ne.s32.totalorder %s43, %s45
    %p52 = scmp.eq.s32.totalorder %s14, 1
    %p53 = por %p51, %p52
    %p54 = scmp.ne.s32.totalorder %s45, %s46
    %p55 = scmp.eq.s32.totalorder %s14, 0
    %p56 = por %p54, %p55
    %p57 = scmp.ne.s32.totalorder %s45, %s46
    %p58 = scmp.eq.s32.totalorder %s15, 1
    %p59 = por %p57, %p58
    %p61 = scmp.ne.s32.totalorder %s46, %s60
    %p62 = scmp.eq.s32.totalorder %s15, 0
    %p63 = por %p61, %p62
    %s65 = sadd.s32 %s64, 1
    %p68 = scmp.eq.s32.totalorder %s9, 1
    %p69 = scmp.ne.s32.totalorder %s64, %s66
    %p70 = scmp.eq.s32.totalorder %s9, 0
    %p71 = por %p69, %p70
    %p72 = scmp.ne.s32.totalorder %s64, %s66
    %p73 = scmp.eq.s32.totalorder %s14, 1
    %p74 = por %p72, %p73
    %p75 = scmp.ne.s32.totalorder %s66, %s67
    %p76 = scmp.eq.s32.totalorder %s14, 0
    %p77 = por %p75, %p76
    %p78 = scmp.ne.s32.totalorder %s66, %s67
    %p79 = scmp.eq.s32.totalorder %s15, 1
    %p80 = por %p78, %p79
    %p82 = scmp.ne.s32.totalorder %s67, %s81
    %p83 = scmp.eq.s32.totalorder %s15, 0
    %p84 = por %p82, %p83
    %s85 = ssub.s32 %s9, %s16
    %p86 = scmp.eq.s32.totalorder %s85, 0
    %s88 = sadd.s32 %s87, 1
    %s89 = scalar_select %p86, %s87, %s88
    %p92 = pneg %p86
    %p93 = scmp.eq.s32.totalorder %s9, 1
    %p94 = por %p92, %p93
    %p95 = scmp.ne.s32.totalorder %s87, %s90
    %p96 = scmp.eq.s32.totalorder %s9, 0
    %p97 = por %p95, %p96
    %p98 = scmp.ne.s32.totalorder %s87, %s90
    %p99 = scmp.eq.s32.totalorder %s14, 1
    %p100 = por %p98, %p99
    %p101 = scmp.ne.s32.totalorder %s90, %s91
    %p102 = scmp.eq.s32.totalorder %s14, 0
    %p103 = por %p101, %p102
    %p104 = scmp.ne.s32.totalorder %s90, %s91
    %p105 = scmp.eq.s32.totalorder %s15, 1
    %p106 = por %p104, %p105
    %p108 = scmp.ne.s32.totalorder %s91, %s107
    %p109 = scmp.eq.s32.totalorder %s15, 0
    %p110 = por %p108, %p109
    %p111 = scmp.le.s32.totalorder 1, %s9
    %p112 = scmp.lt.s32.totalorder %s9, 3
    %p113 = pnand %p111, %p112
    %p114 = pneg %p113
    // Predicated region
    $region9: #{content_encoder_forward.16} parent=5 // pred_check
      _
    $region10: #{content_encoder_forward.16} parent=5 // pred_check_branch
      %116 = sbr.rel (%p113) target = $region12
    $region11: #{content_encoder_forward.16} parent=5 // pred_region
      %s117 = ssub.s32 %s9, 1
      // Predicated region
      $region13: #{content_encoder_forward.16} parent=11 // pred_check
        %p118 = pneg %p56
      $region14: #{content_encoder_forward.16} parent=11 // pred_check_branch
        %120 = sbr.rel (%p118) target = $region16
      $region15: #{content_encoder_forward.16} parent=11 // pred_region
        _
      $region16: #{content_encoder_forward.16} parent=11 // pred_fallthru
        _
      // Predicated region
      $region17: #{content_encoder_forward.16} parent=11 // pred_check
        %p121 = pneg %p77
      $region18: #{content_encoder_forward.16} parent=11 // pred_check_branch
        %123 = sbr.rel (%p121) target = $region20
      $region19: #{content_encoder_forward.16} parent=11 // pred_region
        _
      $region20: #{content_encoder_forward.16} parent=11 // pred_fallthru
        _
    $region12: #{content_encoder_forward.16} parent=5 // pred_fallthru
      _
    %p124 = scmp.lt.s32.totalorder %s9, 2
    // Predicated region
    $region21: #{content_encoder_forward.16} parent=5 // pred_check
      %p125 = pneg %p124
    $region22: #{content_encoder_forward.16} parent=5 // pred_check_branch
      %127 = sbr.rel (%p125) target = $region24
    $region23: #{content_encoder_forward.16} parent=5 // pred_region
      // Predicated region
      $region25: #{content_encoder_forward.16} parent=23 // pred_check
        %p128 = pneg %p29
      $region26: #{content_encoder_forward.16} parent=23 // pred_check_branch
        %130 = sbr.rel (%p128) target = $region28
      $region27: #{content_encoder_forward.16} parent=23 // pred_region
        %s131 = smul.u32 32, %s9
        %p132 = scmp.lt.s32.totalorder %s131, 63
        %s133 = scalar_select %p132, %s131, 63
        %s134 = smul.addr %s133, 2
        %s135 = smul.addr %s134, 4
        %s136 = scalar_lea.vmem %s0, %s135
        %s137 = smul.u32 32, %s9
      $region28: #{content_encoder_forward.16} parent=23 // pred_fallthru
        _
    $region24: #{content_encoder_forward.16} parent=5 // pred_fallthru
      _
    %p138 = scmp.le.s32.totalorder 1, %s9
    %p139 = scmp.lt.s32.totalorder %s9, 3
    %p140 = pnand %p138, %p139
    %p141 = pneg %p140
    // Predicated region
    $region29: #{content_encoder_forward.16} parent=5 // pred_check
      _
    $region30: #{content_encoder_forward.16} parent=5 // pred_check_branch
      %143 = sbr.rel (%p140) target = $region32
    $region31: #{content_encoder_forward.16} parent=5 // pred_region
      %s144 = ssub.s32 %s9, 1
      %s145 = smul.u32 32, %s14
      %p146 = scmp.lt.s32.totalorder %s145, 63
      %s147 = scalar_select %p146, %s145, 63
      %s148 = smul.addr %s147, 2
      %s149 = smul.addr %s148, 4
      %s150 = scalar_lea.vmem %s0, %s149
      %p151 = pneg %p35
      %p152 = pneg %p32
      %p153 = pneg %p56
      %p154 = pneg %p53
      %p155 = pneg %p77
      %p156 = pneg %p74
      %p157 = pneg %p103
      %p158 = pneg %p100
      %s159 = smul.u32 32, %s14
      %p160 = scmp.lt.s32.totalorder %s159, 63
      %s161 = scalar_select %p160, %s159, 63
      %s162 = smul.addr %s161, 2
      %s163 = smul.addr %s162, 8
      %s164 = scalar_lea.vmem %s3, %s163
      %s165 = smul.u32 32, %s14
      %p166 = scmp.lt.s32.totalorder %s165, 63
      %s167 = scalar_select %p166, %s165, 63
      %s168 = smul.addr %s167, 2
      %s169 = smul.addr %s168, 4
      %s170 = scalar_lea.vmem %s0, %s169
      %s171 = smul.u32 32, %s14
      %s172 = smul.u32 32, %s14
      %p173 = scmp.lt.s32.totalorder %s172, 63
      %s174 = scalar_select %p173, %s172, 63
      %s175 = smul.addr %s174, 2
      %s176 = smul.addr %s175, 8
      %s177 = scalar_lea.vmem %s3, %s176
      %s178 = smul.u32 32, %s14
      %v180 = vld [vmem:[%s170] sm:$0xff]
      %v181 = vld [vmem:[%s170 + $0x8] sm:$0xff]
      %v182 = vld [vmem:[%s170 + $0x10] sm:$0xff]
      %v183 = vld [vmem:[%s170 + $0x18] sm:$0xff]
      %v184 = vld [vmem:[%s170 + $0x20] sm:$0xff]
      %v185 = vld [vmem:[%s170 + $0x28] sm:$0xff]
      %v186 = vld [vmem:[%s170 + $0x30] sm:$0xff]
      %v187 = vld [vmem:[%s170 + $0x38] sm:$0xff]
      %v188 = vld [vmem:[%s170 + $0x40] sm:$0xff]
      %v189 = vld [vmem:[%s170 + $0x48] sm:$0xff]
      %v190 = vld [vmem:[%s170 + $0x50] sm:$0xff]
      %v191 = vld [vmem:[%s170 + $0x58] sm:$0xff]
      %v192 = vld [vmem:[%s170 + $0x60] sm:$0xff]
      %v193 = vld [vmem:[%s170 + $0x68] sm:$0xff]
      %v194 = vld [vmem:[%s170 + $0x70] sm:$0xff]
      %v195 = vld [vmem:[%s170 + $0x78] sm:$0xff]
      %v196 = vld [vmem:[%s170 + $0x80] sm:$0xff]
      %v197 = vld [vmem:[%s170 + $0x88] sm:$0xff]
      %v198 = vld [vmem:[%s170 + $0x90] sm:$0xff]
      %v199 = vld [vmem:[%s170 + $0x98] sm:$0xff]
      %v200 = vld [vmem:[%s170 + $0xa0] sm:$0xff]
      %v201 = vld [vmem:[%s170 + $0xa8] sm:$0xff]
      %v202 = vld [vmem:[%s170 + $0xb0] sm:$0xff]
      %v203 = vld [vmem:[%s170 + $0xb8] sm:$0xff]
      %v204 = vld [vmem:[%s170 + $0xc0] sm:$0xff]
      %v205 = vld [vmem:[%s170 + $0xc8] sm:$0xff]
      %v206 = vld [vmem:[%s170 + $0xd0] sm:$0xff]
      %v207 = vld [vmem:[%s170 + $0xd8] sm:$0xff]
      %v208 = vld [vmem:[%s170 + $0xe0] sm:$0xff]
      %v209 = vld [vmem:[%s170 + $0xe8] sm:$0xff]
      %v210 = vld [vmem:[%s170 + $0xf0] sm:$0xff]
      %v211 = vld [vmem:[%s170 + $0xf8] sm:$0xff]
      %v212 = vld [vmem:[%s1] sm:$0xff]
      %v213 = vld [vmem:[%s1 + $0x8] sm:$0xff]
      %v214 = vld [vmem:[%s1 + $0x10] sm:$0xff]
      %v215 = vld [vmem:[%s1 + $0x18] sm:$0xff]
      %v216 = vld [vmem:[%s1 + $0x20] sm:$0xff]
      %v217 = vld [vmem:[%s1 + $0x28] sm:$0xff]
      %v218 = vld [vmem:[%s1 + $0x30] sm:$0xff]
      %v219 = vld [vmem:[%s1 + $0x38] sm:$0xff]
      %v220 = vld [vmem:[%s1 + $0x40] sm:$0xff]
      %v221 = vld [vmem:[%s1 + $0x48] sm:$0xff]
      %v222 = vld [vmem:[%s1 + $0x50] sm:$0xff]
      %v223 = vld [vmem:[%s1 + $0x58] sm:$0xff]
      %v224 = vld [vmem:[%s1 + $0x60] sm:$0xff]
      %v225 = vld [vmem:[%s1 + $0x68] sm:$0xff]
      %v226 = vld [vmem:[%s1 + $0x70] sm:$0xff]
      %v227 = vld [vmem:[%s1 + $0x78] sm:$0xff]
      %v228 = vld [vmem:[%s1 + $0x80] sm:$0xff]
      %v229 = vld [vmem:[%s1 + $0x88] sm:$0xff]
      %v230 = vld [vmem:[%s1 + $0x90] sm:$0xff]
      %v231 = vld [vmem:[%s1 + $0x98] sm:$0xff]
      %v232 = vld [vmem:[%s1 + $0xa0] sm:$0xff]
      %v233 = vld [vmem:[%s1 + $0xa8] sm:$0xff]
      %v234 = vld [vmem:[%s1 + $0xb0] sm:$0xff]
      %v235 = vld [vmem:[%s1 + $0xb8] sm:$0xff]
      %v236 = vld [vmem:[%s1 + $0xc0] sm:$0x33]
      %v237 = vld [vmem:[%s2] sm:$0x3]
      %v239 = vperm.slane %v237, 0
      %v240 = vperm.slane %v237, 1
      %v275 = vunpack.c.l.b16 %v180
      %v276 = vunpack.c.h.b16 %v180
      %v277 = vunpack.c.l.b16 %v181
      %v278 = vunpack.c.h.b16 %v181
      %v279 = vunpack.c.l.b16 %v182
      %v280 = vunpack.c.h.b16 %v182
      %v281 = vunpack.c.l.b16 %v183
      %v282 = vunpack.c.h.b16 %v183
      %v283 = vunpack.c.l.b16 %v184
      %v284 = vunpack.c.h.b16 %v184
      %v285 = vunpack.c.l.b16 %v185
      %v286 = vunpack.c.h.b16 %v185
      %v287 = vunpack.c.l.b16 %v186
      %v288 = vunpack.c.h.b16 %v186
      %v289 = vunpack.c.l.b16 %v187
      %v290 = vunpack.c.h.b16 %v187
      %v291 = vunpack.c.l.b16 %v188
      %v292 = vunpack.c.h.b16 %v188
      %v293 = vunpack.c.l.b16 %v189
      %v294 = vunpack.c.h.b16 %v189
      %v295 = vunpack.c.l.b16 %v190
      %v296 = vunpack.c.h.b16 %v190
      %v297 = vunpack.c.l.b16 %v191
      %v298 = vunpack.c.h.b16 %v191
      %v299 = vunpack.c.l.b16 %v192
      %v300 = vunpack.c.h.b16 %v192
      %v301 = vunpack.c.l.b16 %v193
      %v302 = vunpack.c.h.b16 %v193
      %v303 = vunpack.c.l.b16 %v194
      %v304 = vunpack.c.h.b16 %v194
      %v305 = vunpack.c.l.b16 %v195
      %v306 = vunpack.c.h.b16 %v195
      %v307 = vunpack.c.l.b16 %v196
      %v308 = vunpack.c.h.b16 %v196
      %v309 = vunpack.c.l.b16 %v197
      %v310 = vunpack.c.h.b16 %v197
      %v311 = vunpack.c.l.b16 %v198
      %v312 = vunpack.c.h.b16 %v198
      %v313 = vunpack.c.l.b16 %v199
      %v314 = vunpack.c.h.b16 %v199
      %v315 = vunpack.c.l.b16 %v200
      %v316 = vunpack.c.h.b16 %v200
      %v317 = vunpack.c.l.b16 %v201
      %v318 = vunpack.c.h.b16 %v201
      %v319 = vunpack.c.l.b16 %v202
      %v320 = vunpack.c.h.b16 %v202
      %v321 = vunpack.c.l.b16 %v203
      %v322 = vunpack.c.h.b16 %v203
      %v323 = vunpack.c.l.b16 %v204
      %v324 = vunpack.c.h.b16 %v204
      %v325 = vunpack.c.l.b16 %v205
      %v326 = vunpack.c.h.b16 %v205
      %v327 = vunpack.c.l.b16 %v206
      %v328 = vunpack.c.h.b16 %v206
      %v329 = vunpack.c.l.b16 %v207
      %v330 = vunpack.c.h.b16 %v207
      %v331 = vunpack.c.l.b16 %v208
      %v332 = vunpack.c.h.b16 %v208
      %v333 = vunpack.c.l.b16 %v209
      %v334 = vunpack.c.h.b16 %v209
      %v335 = vunpack.c.l.b16 %v210
      %v336 = vunpack.c.h.b16 %v210
      %v337 = vunpack.c.l.b16 %v211
      %v338 = vunpack.c.h.b16 %v211
      %v339 = vpack.c.b16 %v277, %v275
      %v340 = vpack.c.b16 %v278, %v276
      %v341 = vpack.c.b16 %v281, %v279
      %v342 = vpack.c.b16 %v282, %v280
      %v343 = vpack.c.b16 %v285, %v283
      %v344 = vpack.c.b16 %v286, %v284
      %v345 = vpack.c.b16 %v289, %v287
      %v346 = vpack.c.b16 %v290, %v288
      %v347 = vpack.c.b16 %v293, %v291
      %v348 = vpack.c.b16 %v294, %v292
      %v349 = vpack.c.b16 %v297, %v295
      %v350 = vpack.c.b16 %v298, %v296
      %v351 = vpack.c.b16 %v301, %v299
      %v352 = vpack.c.b16 %v302, %v300
      %v353 = vpack.c.b16 %v305, %v303
      %v354 = vpack.c.b16 %v306, %v304
      %v355 = vpack.c.b16 %v309, %v307
      %v356 = vpack.c.b16 %v310, %v308
      %v357 = vpack.c.b16 %v313, %v311
      %v358 = vpack.c.b16 %v314, %v312
      %v359 = vpack.c.b16 %v317, %v315
      %v360 = vpack.c.b16 %v318, %v316
      %v361 = vpack.c.b16 %v321, %v319
      %v362 = vpack.c.b16 %v322, %v320
      %v363 = vpack.c.b16 %v325, %v323
      %v364 = vpack.c.b16 %v326, %v324
      %v365 = vpack.c.b16 %v329, %v327
      %v366 = vpack.c.b16 %v330, %v328
      %v367 = vpack.c.b16 %v333, %v331
      %v368 = vpack.c.b16 %v334, %v332
      %v369 = vpack.c.b16 %v337, %v335
      %v370 = vpack.c.b16 %v338, %v336
      %v412 = vunpack.c.l.b16 %v212
      %v413 = vunpack.c.h.b16 %v212
      %v414 = vunpack.c.l.b16 %v213
      %v415 = vunpack.c.h.b16 %v213
      %v416 = vunpack.c.l.b16 %v214
      %v417 = vunpack.c.h.b16 %v214
      %v418 = vunpack.c.l.b16 %v215
      %v419 = vunpack.c.h.b16 %v215
      %v420 = vunpack.c.l.b16 %v216
      %v421 = vunpack.c.h.b16 %v216
      %v422 = vunpack.c.l.b16 %v217
      %v423 = vunpack.c.h.b16 %v217
      %v424 = vunpack.c.l.b16 %v218
      %v425 = vunpack.c.h.b16 %v218
      %v426 = vunpack.c.l.b16 %v219
      %v427 = vunpack.c.h.b16 %v219
      %v428 = vunpack.c.l.b16 %v220
      %v429 = vunpack.c.h.b16 %v220
      %v430 = vunpack.c.l.b16 %v221
      %v431 = vunpack.c.h.b16 %v221
      %v432 = vunpack.c.l.b16 %v222
      %v433 = vunpack.c.h.b16 %v222
      %v434 = vunpack.c.l.b16 %v223
      %v435 = vunpack.c.h.b16 %v223
      %v436 = vunpack.c.l.b16 %v224
      %v437 = vunpack.c.h.b16 %v224
      %v438 = vunpack.c.l.b16 %v225
      %v439 = vunpack.c.h.b16 %v225
      %v440 = vunpack.c.l.b16 %v226
      %v441 = vunpack.c.h.b16 %v226
      %v442 = vunpack.c.l.b16 %v227
      %v443 = vunpack.c.h.b16 %v227
      %v444 = vunpack.c.l.b16 %v228
      %v445 = vunpack.c.h.b16 %v228
      %v446 = vunpack.c.l.b16 %v229
      %v447 = vunpack.c.h.b16 %v229
      %v448 = vunpack.c.l.b16 %v230
      %v449 = vunpack.c.h.b16 %v230
      %v450 = vunpack.c.l.b16 %v231
      %v451 = vunpack.c.h.b16 %v231
      %v452 = vunpack.c.l.b16 %v232
      %v453 = vunpack.c.h.b16 %v232
      %v454 = vunpack.c.l.b16 %v233
      %v455 = vunpack.c.h.b16 %v233
      %v456 = vunpack.c.l.b16 %v234
      %v457 = vunpack.c.h.b16 %v234
      %v458 = vunpack.c.l.b16 %v235
      %v459 = vunpack.c.h.b16 %v235
      %v460 = vunpack.c.l.b16 %v236
      %v461 = vunpack.c.h.b16 %v236
      %v462 = vpack.c.b16 %v414, %v412
      %v463 = vpack.c.b16 %v415, %v413
      %v464 = vpack.c.b16 %v418, %v416
      %v465 = vpack.c.b16 %v419, %v417
      %v466 = vpack.c.b16 %v422, %v420
      %v467 = vpack.c.b16 %v423, %v421
      %v468 = vpack.c.b16 %v426, %v424
      %v469 = vpack.c.b16 %v427, %v425
      %v470 = vpack.c.b16 %v430, %v428
      %v471 = vpack.c.b16 %v431, %v429
      %v472 = vpack.c.b16 %v434, %v432
      %v473 = vpack.c.b16 %v435, %v433
      %v474 = vpack.c.b16 %v438, %v436
      %v475 = vpack.c.b16 %v439, %v437
      %v476 = vpack.c.b16 %v442, %v440
      %v477 = vpack.c.b16 %v443, %v441
      %v478 = vpack.c.b16 %v446, %v444
      %v479 = vpack.c.b16 %v447, %v445
      %v480 = vpack.c.b16 %v450, %v448
      %v481 = vpack.c.b16 %v451, %v449
      %v482 = vpack.c.b16 %v454, %v452
      %v483 = vpack.c.b16 %v455, %v453
      %v484 = vpack.c.b16 %v458, %v456
      %v485 = vpack.c.b16 %v459, %v457
      %v486 = vpack.c.b16 %v460, %v460
      %v487 = vpack.c.b16 %v461, %v461
      %vm512 = vcmask 556032
      %v514 = vsel %vm512, %v340, 0
      %v517 = vsel %vm512, %v342, 0
      %v520 = vsel %vm512, %v344, 0
      %v523 = vsel %vm512, %v346, 0
      %v526 = vsel %vm512, %v348, 0
      %v529 = vsel %vm512, %v350, 0
      %v532 = vsel %vm512, %v352, 0
      %v535 = vsel %vm512, %v354, 0
      %v538 = vsel %vm512, %v356, 0
      %v541 = vsel %vm512, %v358, 0
      %v544 = vsel %vm512, %v360, 0
      %v547 = vsel %vm512, %v362, 0
      %v550 = vsel %vm512, %v364, 0
      %v553 = vsel %vm512, %v366, 0
      %v556 = vsel %vm512, %v368, 0
      %v559 = vsel %vm512, %v370, 0
      %vm561 = vcmask 1041408
      %v563 = vsel %vm561, %v486, 0
      %v566 = vsel %vm561, %v487, 0
      %568 = vmatpush.bf16.msra.mxu0 %v476
      %569 = vmatpush.bf16.msra.mxu0 %v474
      %570 = vmatpush.bf16.msra.mxu0 %v472
      %571 = vmatpush.bf16.msra.mxu0 %v470
      %572 = vmatpush.bf16.msra.mxu0 %v468
      %573 = vmatpush.bf16.msra.mxu0 %v466
      %574 = vmatpush.bf16.msra.mxu0 %v464
      %575 = vmatpush.bf16.msra.mxu0 %v462
      %576 = vmatmul.bf16.gmra.mxu0 %v339
      %v577 = vpop.f32.mrf.mxu0
      %v578 = vadd.f32 %v239, %v577
      %v579 = vpop.f32.mrf.mxu0
      %v580 = vadd.f32 %v239, %v579
      %581 = vmatmul.bf16.gmra.mxu0 %v341
      %v582 = vpop.f32.mrf.mxu0
      %v583 = vadd.f32 %v239, %v582
      %v584 = vpop.f32.mrf.mxu0
      %v585 = vadd.f32 %v239, %v584
      %586 = vmatmul.bf16.gmra.mxu0 %v343
      %v587 = vpop.f32.mrf.mxu0
      %v588 = vadd.f32 %v239, %v587
      %v589 = vpop.f32.mrf.mxu0
      %v590 = vadd.f32 %v239, %v589
      %591 = vmatmul.bf16.gmra.mxu0 %v345
      %v592 = vpop.f32.mrf.mxu0
      %v593 = vadd.f32 %v239, %v592
      %v594 = vpop.f32.mrf.mxu0
      %v595 = vadd.f32 %v239, %v594
      %596 = vmatmul.bf16.gmra.mxu0 %v347
      %v597 = vpop.f32.mrf.mxu0
      %v598 = vadd.f32 %v239, %v597
      %v599 = vpop.f32.mrf.mxu0
      %v600 = vadd.f32 %v239, %v599
      %601 = vmatmul.bf16.gmra.mxu0 %v349
      %v602 = vpop.f32.mrf.mxu0
      %v603 = vadd.f32 %v239, %v602
      %v604 = vpop.f32.mrf.mxu0
      %v605 = vadd.f32 %v239, %v604
      %606 = vmatmul.bf16.gmra.mxu0 %v351
      %v607 = vpop.f32.mrf.mxu0
      %v608 = vadd.f32 %v239, %v607
      %v609 = vpop.f32.mrf.mxu0
      %v610 = vadd.f32 %v239, %v609
      %611 = vmatmul.bf16.gmra.mxu0 %v353
      %v612 = vpop.f32.mrf.mxu0
      %v613 = vadd.f32 %v239, %v612
      %v614 = vpop.f32.mrf.mxu0
      %v615 = vadd.f32 %v239, %v614
      %616 = vmatmul.bf16.gmra.mxu0 %v355
      %v617 = vpop.f32.mrf.mxu0
      %v618 = vadd.f32 %v239, %v617
      %v619 = vpop.f32.mrf.mxu0
      %v620 = vadd.f32 %v239, %v619
      %621 = vmatmul.bf16.gmra.mxu0 %v357
      %v622 = vpop.f32.mrf.mxu0
      %v623 = vadd.f32 %v239, %v622
      %v624 = vpop.f32.mrf.mxu0
      %v625 = vadd.f32 %v239, %v624
      %626 = vmatmul.bf16.gmra.mxu0 %v359
      %v627 = vpop.f32.mrf.mxu0
      %v628 = vadd.f32 %v239, %v627
      %v629 = vpop.f32.mrf.mxu0
      %v630 = vadd.f32 %v239, %v629
      %631 = vmatmul.bf16.gmra.mxu0 %v361
      %v632 = vpop.f32.mrf.mxu0
      %v633 = vadd.f32 %v239, %v632
      %v634 = vpop.f32.mrf.mxu0
      %v635 = vadd.f32 %v239, %v634
      %636 = vmatmul.bf16.gmra.mxu0 %v363
      %v637 = vpop.f32.mrf.mxu0
      %v638 = vadd.f32 %v239, %v637
      %v639 = vpop.f32.mrf.mxu0
      %v640 = vadd.f32 %v239, %v639
      %641 = vmatmul.bf16.gmra.mxu0 %v365
      %v642 = vpop.f32.mrf.mxu0
      %v643 = vadd.f32 %v239, %v642
      %v644 = vpop.f32.mrf.mxu0
      %v645 = vadd.f32 %v239, %v644
      %646 = vmatmul.bf16.gmra.mxu0 %v367
      %v647 = vpop.f32.mrf.mxu0
      %v648 = vadd.f32 %v239, %v647
      %v649 = vpop.f32.mrf.mxu0
      %v650 = vadd.f32 %v239, %v649
      %651 = vmatmul.bf16.gmra.mxu0 %v369
      %v652 = vpop.f32.mrf.mxu0
      %v653 = vadd.f32 %v239, %v652
      %v654 = vpop.f32.mrf.mxu0
      %v655 = vadd.f32 %v239, %v654
      %656 = vdwg.mxu0
      %657 = vmatpush.bf16.msra.mxu0 0
      %658 = vmatpush.bf16.msra.mxu0 0
      %659 = vmatpush.bf16.msra.mxu0 0
      %660 = vmatpush.bf16.msra.mxu0 %v563
      %661 = vmatpush.bf16.msra.mxu0 %v484
      %662 = vmatpush.bf16.msra.mxu0 %v482
      %663 = vmatpush.bf16.msra.mxu0 %v480
      %664 = vmatpush.bf16.msra.mxu0 %v478
      %665 = vmatmul.bf16.gmra.mxu0 %v514
      %v666 = vpop.f32.mrf.mxu0
      %v667 = vadd.f32 %v578, %v666
      %v668 = vpop.f32.mrf.mxu0
      %v669 = vadd.f32 %v580, %v668
      %670 = vmatmul.bf16.gmra.mxu0 %v517
      %v671 = vpop.f32.mrf.mxu0
      %v672 = vadd.f32 %v583, %v671
      %v673 = vpop.f32.mrf.mxu0
      %v674 = vadd.f32 %v585, %v673
      %675 = vmatmul.bf16.gmra.mxu0 %v520
      %v676 = vpop.f32.mrf.mxu0
      %v677 = vadd.f32 %v588, %v676
      %v678 = vpop.f32.mrf.mxu0
      %v679 = vadd.f32 %v590, %v678
      %680 = vmatmul.bf16.gmra.mxu0 %v523
      %v681 = vpop.f32.mrf.mxu0
      %v682 = vadd.f32 %v593, %v681
      %v683 = vpop.f32.mrf.mxu0
      %v684 = vadd.f32 %v595, %v683
      %685 = vmatmul.bf16.gmra.mxu0 %v526
      %v686 = vpop.f32.mrf.mxu0
      %v687 = vadd.f32 %v598, %v686
      %v688 = vpop.f32.mrf.mxu0
      %v689 = vadd.f32 %v600, %v688
      %690 = vmatmul.bf16.gmra.mxu0 %v529
      %v691 = vpop.f32.mrf.mxu0
      %v692 = vadd.f32 %v603, %v691
      %v693 = vpop.f32.mrf.mxu0
      %v694 = vadd.f32 %v605, %v693
      %695 = vmatmul.bf16.gmra.mxu0 %v532
      %v696 = vpop.f32.mrf.mxu0
      %v697 = vadd.f32 %v608, %v696
      %v698 = vpop.f32.mrf.mxu0
      %v699 = vadd.f32 %v610, %v698
      %700 = vmatmul.bf16.gmra.mxu0 %v535
      %v701 = vpop.f32.mrf.mxu0
      %v702 = vadd.f32 %v613, %v701
      %v703 = vpop.f32.mrf.mxu0
      %v704 = vadd.f32 %v615, %v703
      %705 = vmatmul.bf16.gmra.mxu0 %v538
      %v706 = vpop.f32.mrf.mxu0
      %v707 = vadd.f32 %v618, %v706
      %v708 = vpop.f32.mrf.mxu0
      %v709 = vadd.f32 %v620, %v708
      %710 = vmatmul.bf16.gmra.mxu0 %v541
      %v711 = vpop.f32.mrf.mxu0
      %v712 = vadd.f32 %v623, %v711
      %v713 = vpop.f32.mrf.mxu0
      %v714 = vadd.f32 %v625, %v713
      %715 = vmatmul.bf16.gmra.mxu0 %v544
      %v716 = vpop.f32.mrf.mxu0
      %v717 = vadd.f32 %v628, %v716
      %v718 = vpop.f32.mrf.mxu0
      %v719 = vadd.f32 %v630, %v718
      %720 = vmatmul.bf16.gmra.mxu0 %v547
      %v721 = vpop.f32.mrf.mxu0
      %v722 = vadd.f32 %v633, %v721
      %v723 = vpop.f32.mrf.mxu0
      %v724 = vadd.f32 %v635, %v723
      %725 = vmatmul.bf16.gmra.mxu0 %v550
      %v726 = vpop.f32.mrf.mxu0
      %v727 = vadd.f32 %v638, %v726
      %v728 = vpop.f32.mrf.mxu0
      %v729 = vadd.f32 %v640, %v728
      %730 = vmatmul.bf16.gmra.mxu0 %v553
      %v731 = vpop.f32.mrf.mxu0
      %v732 = vadd.f32 %v643, %v731
      %v733 = vpop.f32.mrf.mxu0
      %v734 = vadd.f32 %v645, %v733
      %735 = vmatmul.bf16.gmra.mxu0 %v556
      %v736 = vpop.f32.mrf.mxu0
      %v737 = vadd.f32 %v648, %v736
      %v738 = vpop.f32.mrf.mxu0
      %v739 = vadd.f32 %v650, %v738
      %740 = vmatmul.bf16.gmra.mxu0 %v559
      %v741 = vpop.f32.mrf.mxu0
      %v742 = vadd.f32 %v653, %v741
      %v743 = vpop.f32.mrf.mxu0
      %v744 = vadd.f32 %v655, %v743
      %745 = vdwg.mxu0
      %746 = vmatpush.bf16.msra.mxu0 %v477
      %747 = vmatpush.bf16.msra.mxu0 %v475
      %748 = vmatpush.bf16.msra.mxu0 %v473
      %749 = vmatpush.bf16.msra.mxu0 %v471
      %750 = vmatpush.bf16.msra.mxu0 %v469
      %751 = vmatpush.bf16.msra.mxu0 %v467
      %752 = vmatpush.bf16.msra.mxu0 %v465
      %753 = vmatpush.bf16.msra.mxu0 %v463
      %754 = vmatmul.bf16.gmra.mxu0 %v339
      %v755 = vpop.f32.mrf.mxu0
      %v756 = vadd.f32 %v240, %v755
      %v757 = vpop.f32.mrf.mxu0
      %v758 = vadd.f32 %v240, %v757
      %759 = vmatmul.bf16.gmra.mxu0 %v341
      %v760 = vpop.f32.mrf.mxu0
      %v761 = vadd.f32 %v240, %v760
      %v762 = vpop.f32.mrf.mxu0
      %v763 = vadd.f32 %v240, %v762
      %764 = vmatmul.bf16.gmra.mxu0 %v343
      %v765 = vpop.f32.mrf.mxu0
      %v766 = vadd.f32 %v240, %v765
      %v767 = vpop.f32.mrf.mxu0
      %v768 = vadd.f32 %v240, %v767
      %769 = vmatmul.bf16.gmra.mxu0 %v345
      %v770 = vpop.f32.mrf.mxu0
      %v771 = vadd.f32 %v240, %v770
      %v772 = vpop.f32.mrf.mxu0
      %v773 = vadd.f32 %v240, %v772
      %774 = vmatmul.bf16.gmra.mxu0 %v347
      %v775 = vpop.f32.mrf.mxu0
      %v776 = vadd.f32 %v240, %v775
      %v777 = vpop.f32.mrf.mxu0
      %v778 = vadd.f32 %v240, %v777
      %779 = vmatmul.bf16.gmra.mxu0 %v349
      %v780 = vpop.f32.mrf.mxu0
      %v781 = vadd.f32 %v240, %v780
      %v782 = vpop.f32.mrf.mxu0
      %v783 = vadd.f32 %v240, %v782
      %784 = vmatmul.bf16.gmra.mxu0 %v351
      %v785 = vpop.f32.mrf.mxu0
      %v786 = vadd.f32 %v240, %v785
      %v787 = vpop.f32.mrf.mxu0
      %v788 = vadd.f32 %v240, %v787
      %789 = vmatmul.bf16.gmra.mxu0 %v353
      %v790 = vpop.f32.mrf.mxu0
      %v791 = vadd.f32 %v240, %v790
      %v792 = vpop.f32.mrf.mxu0
      %v793 = vadd.f32 %v240, %v792
      %794 = vmatmul.bf16.gmra.mxu0 %v355
      %v795 = vpop.f32.mrf.mxu0
      %v796 = vadd.f32 %v240, %v795
      %v797 = vpop.f32.mrf.mxu0
      %v798 = vadd.f32 %v240, %v797
      %799 = vmatmul.bf16.gmra.mxu0 %v357
      %v800 = vpop.f32.mrf.mxu0
      %v801 = vadd.f32 %v240, %v800
      %v802 = vpop.f32.mrf.mxu0
      %v803 = vadd.f32 %v240, %v802
      %804 = vmatmul.bf16.gmra.mxu0 %v359
      %v805 = vpop.f32.mrf.mxu0
      %v806 = vadd.f32 %v240, %v805
      %v807 = vpop.f32.mrf.mxu0
      %v808 = vadd.f32 %v240, %v807
      %809 = vmatmul.bf16.gmra.mxu0 %v361
      %v810 = vpop.f32.mrf.mxu0
      %v811 = vadd.f32 %v240, %v810
      %v812 = vpop.f32.mrf.mxu0
      %v813 = vadd.f32 %v240, %v812
      %814 = vmatmul.bf16.gmra.mxu0 %v363
      %v815 = vpop.f32.mrf.mxu0
      %v816 = vadd.f32 %v240, %v815
      %v817 = vpop.f32.mrf.mxu0
      %v818 = vadd.f32 %v240, %v817
      %819 = vmatmul.bf16.gmra.mxu0 %v365
      %v820 = vpop.f32.mrf.mxu0
      %v821 = vadd.f32 %v240, %v820
      %v822 = vpop.f32.mrf.mxu0
      %v823 = vadd.f32 %v240, %v822
      %824 = vmatmul.bf16.gmra.mxu0 %v367
      %v825 = vpop.f32.mrf.mxu0
      %v826 = vadd.f32 %v240, %v825
      %v827 = vpop.f32.mrf.mxu0
      %v828 = vadd.f32 %v240, %v827
      %829 = vmatmul.bf16.gmra.mxu0 %v369
      %v830 = vpop.f32.mrf.mxu0
      %v831 = vadd.f32 %v240, %v830
      %v832 = vpop.f32.mrf.mxu0
      %v833 = vadd.f32 %v240, %v832
      %834 = vdwg.mxu0
      %835 = vmatpush.bf16.msra.mxu0 0
      %836 = vmatpush.bf16.msra.mxu0 0
      %837 = vmatpush.bf16.msra.mxu0 0
      %838 = vmatpush.bf16.msra.mxu0 %v566
      %839 = vmatpush.bf16.msra.mxu0 %v485
      %840 = vmatpush.bf16.msra.mxu0 %v483
      %841 = vmatpush.bf16.msra.mxu0 %v481
      %842 = vmatpush.bf16.msra.mxu0 %v479
      %843 = vmatmul.bf16.gmra.mxu0 %v514
      %v844 = vpop.f32.mrf.mxu0
      %v845 = vadd.f32 %v756, %v844
      %v846 = vpop.f32.mrf.mxu0
      %v847 = vadd.f32 %v758, %v846
      %848 = vmatmul.bf16.gmra.mxu0 %v517
      %v849 = vpop.f32.mrf.mxu0
      %v850 = vadd.f32 %v761, %v849
      %v851 = vpop.f32.mrf.mxu0
      %v852 = vadd.f32 %v763, %v851
      %853 = vmatmul.bf16.gmra.mxu0 %v520
      %v854 = vpop.f32.mrf.mxu0
      %v855 = vadd.f32 %v766, %v854
      %v856 = vpop.f32.mrf.mxu0
      %v857 = vadd.f32 %v768, %v856
      %858 = vmatmul.bf16.gmra.mxu0 %v523
      %v859 = vpop.f32.mrf.mxu0
      %v860 = vadd.f32 %v771, %v859
      %v861 = vpop.f32.mrf.mxu0
      %v862 = vadd.f32 %v773, %v861
      %863 = vmatmul.bf16.gmra.mxu0 %v526
      %v864 = vpop.f32.mrf.mxu0
      %v865 = vadd.f32 %v776, %v864
      %v866 = vpop.f32.mrf.mxu0
      %v867 = vadd.f32 %v778, %v866
      %868 = vmatmul.bf16.gmra.mxu0 %v529
      %v869 = vpop.f32.mrf.mxu0
      %v870 = vadd.f32 %v781, %v869
      %v871 = vpop.f32.mrf.mxu0
      %v872 = vadd.f32 %v783, %v871
      %873 = vmatmul.bf16.gmra.mxu0 %v532
      %v874 = vpop.f32.mrf.mxu0
      %v875 = vadd.f32 %v786, %v874
      %v876 = vpop.f32.mrf.mxu0
      %v877 = vadd.f32 %v788, %v876
      %878 = vmatmul.bf16.gmra.mxu0 %v535
      %v879 = vpop.f32.mrf.mxu0
      %v880 = vadd.f32 %v791, %v879
      %v881 = vpop.f32.mrf.mxu0
      %v882 = vadd.f32 %v793, %v881
      %883 = vmatmul.bf16.gmra.mxu0 %v538
      %v884 = vpop.f32.mrf.mxu0
      %v885 = vadd.f32 %v796, %v884
      %v886 = vpop.f32.mrf.mxu0
      %v887 = vadd.f32 %v798, %v886
      %888 = vmatmul.bf16.gmra.mxu0 %v541
      %v889 = vpop.f32.mrf.mxu0
      %v890 = vadd.f32 %v801, %v889
      %v891 = vpop.f32.mrf.mxu0
      %v892 = vadd.f32 %v803, %v891
      %893 = vmatmul.bf16.gmra.mxu0 %v544
      %v894 = vpop.f32.mrf.mxu0
      %v895 = vadd.f32 %v806, %v894
      %v896 = vpop.f32.mrf.mxu0
      %v897 = vadd.f32 %v808, %v896
      %898 = vmatmul.bf16.gmra.mxu0 %v547
      %v899 = vpop.f32.mrf.mxu0
      %v900 = vadd.f32 %v811, %v899
      %v901 = vpop.f32.mrf.mxu0
      %v902 = vadd.f32 %v813, %v901
      %903 = vmatmul.bf16.gmra.mxu0 %v550
      %v904 = vpop.f32.mrf.mxu0
      %v905 = vadd.f32 %v816, %v904
      %v906 = vpop.f32.mrf.mxu0
      %v907 = vadd.f32 %v818, %v906
      %908 = vmatmul.bf16.gmra.mxu0 %v553
      %v909 = vpop.f32.mrf.mxu0
      %v910 = vadd.f32 %v821, %v909
      %v911 = vpop.f32.mrf.mxu0
      %v912 = vadd.f32 %v823, %v911
      %913 = vmatmul.bf16.gmra.mxu0 %v556
      %v914 = vpop.f32.mrf.mxu0
      %v915 = vadd.f32 %v826, %v914
      %v916 = vpop.f32.mrf.mxu0
      %v917 = vadd.f32 %v828, %v916
      %918 = vmatmul.bf16.gmra.mxu0 %v559
      %v919 = vpop.f32.mrf.mxu0
      %v920 = vadd.f32 %v831, %v919
      %v921 = vpop.f32.mrf.mxu0
      %v922 = vadd.f32 %v833, %v921
      %923 = vdwg.mxu0
      %924 = vst [vmem:[%s177] sm:$0xff] %v667
      %925 = vst [vmem:[%s177 + $0x8] sm:$0xff] %v845
      %926 = vst [vmem:[%s177 + $0x10] sm:$0xff] %v669
      %927 = vst [vmem:[%s177 + $0x18] sm:$0xff] %v847
      %928 = vst [vmem:[%s177 + $0x20] sm:$0xff] %v672
      %929 = vst [vmem:[%s177 + $0x28] sm:$0xff] %v850
      %930 = vst [vmem:[%s177 + $0x30] sm:$0xff] %v674
      %931 = vst [vmem:[%s177 + $0x38] sm:$0xff] %v852
      %932 = vst [vmem:[%s177 + $0x40] sm:$0xff] %v677
      %933 = vst [vmem:[%s177 + $0x48] sm:$0xff] %v855
      %934 = vst [vmem:[%s177 + $0x50] sm:$0xff] %v679
      %935 = vst [vmem:[%s177 + $0x58] sm:$0xff] %v857
      %936 = vst [vmem:[%s177 + $0x60] sm:$0xff] %v682
      %937 = vst [vmem:[%s177 + $0x68] sm:$0xff] %v860
      %938 = vst [vmem:[%s177 + $0x70] sm:$0xff] %v684
      %939 = vst [vmem:[%s177 + $0x78] sm:$0xff] %v862
      %940 = vst [vmem:[%s177 + $0x80] sm:$0xff] %v687
      %941 = vst [vmem:[%s177 + $0x88] sm:$0xff] %v865
      %942 = vst [vmem:[%s177 + $0x90] sm:$0xff] %v689
      %943 = vst [vmem:[%s177 + $0x98] sm:$0xff] %v867
      %944 = vst [vmem:[%s177 + $0xa0] sm:$0xff] %v692
      %945 = vst [vmem:[%s177 + $0xa8] sm:$0xff] %v870
      %946 = vst [vmem:[%s177 + $0xb0] sm:$0xff] %v694
      %947 = vst [vmem:[%s177 + $0xb8] sm:$0xff] %v872
      %948 = vst [vmem:[%s177 + $0xc0] sm:$0xff] %v697
      %949 = vst [vmem:[%s177 + $0xc8] sm:$0xff] %v875
      %950 = vst [vmem:[%s177 + $0xd0] sm:$0xff] %v699
      %951 = vst [vmem:[%s177 + $0xd8] sm:$0xff] %v877
      %952 = vst [vmem:[%s177 + $0xe0] sm:$0xff] %v702
      %953 = vst [vmem:[%s177 + $0xe8] sm:$0xff] %v880
      %954 = vst [vmem:[%s177 + $0xf0] sm:$0xff] %v704
      %955 = vst [vmem:[%s177 + $0xf8] sm:$0xff] %v882
      %956 = vst [vmem:[%s177 + $0x100] sm:$0xff] %v707
      %957 = vst [vmem:[%s177 + $0x108] sm:$0xff] %v885
      %958 = vst [vmem:[%s177 + $0x110] sm:$0xff] %v709
      %959 = vst [vmem:[%s177 + $0x118] sm:$0xff] %v887
      %960 = vst [vmem:[%s177 + $0x120] sm:$0xff] %v712
      %961 = vst [vmem:[%s177 + $0x128] sm:$0xff] %v890
      %962 = vst [vmem:[%s177 + $0x130] sm:$0xff] %v714
      %963 = vst [vmem:[%s177 + $0x138] sm:$0xff] %v892
      %964 = vst [vmem:[%s177 + $0x140] sm:$0xff] %v717
      %965 = vst [vmem:[%s177 + $0x148] sm:$0xff] %v895
      %966 = vst [vmem:[%s177 + $0x150] sm:$0xff] %v719
      %967 = vst [vmem:[%s177 + $0x158] sm:$0xff] %v897
      %968 = vst [vmem:[%s177 + $0x160] sm:$0xff] %v722
      %969 = vst [vmem:[%s177 + $0x168] sm:$0xff] %v900
      %970 = vst [vmem:[%s177 + $0x170] sm:$0xff] %v724
      %971 = vst [vmem:[%s177 + $0x178] sm:$0xff] %v902
      %972 = vst [vmem:[%s177 + $0x180] sm:$0xff] %v727
      %973 = vst [vmem:[%s177 + $0x188] sm:$0xff] %v905
      %974 = vst [vmem:[%s177 + $0x190] sm:$0xff] %v729
      %975 = vst [vmem:[%s177 + $0x198] sm:$0xff] %v907
      %976 = vst [vmem:[%s177 + $0x1a0] sm:$0xff] %v732
      %977 = vst [vmem:[%s177 + $0x1a8] sm:$0xff] %v910
      %978 = vst [vmem:[%s177 + $0x1b0] sm:$0xff] %v734
      %979 = vst [vmem:[%s177 + $0x1b8] sm:$0xff] %v912
      %980 = vst [vmem:[%s177 + $0x1c0] sm:$0xff] %v737
      %981 = vst [vmem:[%s177 + $0x1c8] sm:$0xff] %v915
      %982 = vst [vmem:[%s177 + $0x1d0] sm:$0xff] %v739
      %983 = vst [vmem:[%s177 + $0x1d8] sm:$0xff] %v917
      %984 = vst [vmem:[%s177 + $0x1e0] sm:$0xff] %v742
      %985 = vst [vmem:[%s177 + $0x1e8] sm:$0xff] %v920
      %986 = vst [vmem:[%s177 + $0x1f0] sm:$0xff] %v744
      %987 = vst [vmem:[%s177 + $0x1f8] sm:$0xff] %v922
      %s988 = smul.u32 32, %s14
      %p989 = scmp.lt.s32.totalorder %s988, 63
      %s990 = scalar_select %p989, %s988, 63
      %s991 = smul.addr %s990, 2
      %s992 = smul.addr %s991, 8
      %s993 = scalar_lea.vmem %s3, %s992
      // Predicated region
      $region33: #{content_encoder_forward.16} parent=31 // pred_check
        %p994 = pneg %p100
      $region34: #{content_encoder_forward.16} parent=31 // pred_check_branch
        %996 = sbr.rel (%p994) target = $region36
      $region35: #{content_encoder_forward.16} parent=31 // pred_region
        %s997 = smul.u32 32, %s14
      $region36: #{content_encoder_forward.16} parent=31 // pred_fallthru
        _
    $region32: #{content_encoder_forward.16} parent=5 // pred_fallthru
      _
    %p998 = scmp.le.s32.totalorder 2, %s9
    // Predicated region
    $region37: #{content_encoder_forward.16} parent=5 // pred_check
      %p999 = pneg %p998
    $region38: #{content_encoder_forward.16} parent=5 // pred_check_branch
      %1001 = sbr.rel (%p999) target = $region40
    $region39: #{content_encoder_forward.16} parent=5 // pred_region
      %s1002 = ssub.s32 %s9, 2
      // Predicated region
      $region41: #{content_encoder_forward.16} parent=39 // pred_check
        %p1003 = pneg %p106
      $region42: #{content_encoder_forward.16} parent=39 // pred_check_branch
        %1005 = sbr.rel (%p1003) target = $region44
      $region43: #{content_encoder_forward.16} parent=39 // pred_region
        %s1006 = smul.u32 32, %s15
        %p1007 = scmp.lt.s32.totalorder %s1006, 63
        %s1008 = scalar_select %p1007, %s1006, 63
        %s1009 = smul.addr %s1008, 2
        %s1010 = smul.addr %s1009, 8
        %s1011 = scalar_lea.vmem %s3, %s1010
      $region44: #{content_encoder_forward.16} parent=39 // pred_fallthru
        _
    $region40: #{content_encoder_forward.16} parent=5 // pred_fallthru
      _
  $region6: #{content_encoder_forward.16} parent=0 // loop_footer
    %s13 = sadd.s32 1, %s9
  $region7: #{content_encoder_forward.16} parent=0 // loop_footer_branch
    %8 = sbr.rel target = $region3
  $region8: #{content_encoder_forward.16} parent=0 // loop_exit
    _

// kernel: content_encoder_forward.17
$region0: #{content_encoder_forward.17}
  #allocation0 [shape = 'u32[]', space=smem, size = 0x4, offset = 0x4, fixed_abs, tag = 'smem constant byte address 0x4 - core index']
  #allocation1 [shape = 'u32[72,128]{1,0:T(1,128)}', space=vmem, size = 0x9000, scoped, tag = 'internal scratch']
  %s0 = inlined_call_operand.vmem [shape: bf16[512,196], index: 0, kind: input, shape index: {}]
  %s1 = inlined_call_operand.vmem [shape: f32[512,49], index: 1, kind: input, shape index: {}]
  %s2 = inlined_call_operand.vmem [shape: bf16[196,128], index: 2, kind: input, shape index: {}]
  %s3 = inlined_call_operand.vmem [shape: f32[1,128], index: 3, kind: input, shape index: {}]
  %s4 = inlined_call_operand.vmem [shape: f32[512,128], index: 4, kind: output, shape index: {}]
  %s5 = sld [smem:[#allocation0]]
  $region49: #{content_encoder_forward.17} parent=0
    _
  %s7 = ssub.s32 1, %s5
  %s8 = scalar_select 0, %s7, %s5
  loop: start=0, step=1, limit=4
  $region2: #{content_encoder_forward.17} parent=0 // loop_pre_header
    _
  $region3: #{content_encoder_forward.17} parent=0 // loop_header
    %s10 = sphi 0, %s14
    %p11 = scmp.ge.s32.totalorder %s10, 4
    %s20 = sphi 0, %s22
    %s23 = sphi 0, %s20
    %s24 = sphi 0, %s23
    %s40 = sphi 0, %s24
    %s46 = sphi 0, %s48
    %s49 = sphi 0, %s46
    %s50 = sphi 0, %s49
    %s66 = sphi 0, %s50
    %s70 = sphi 0, %s70
    %s72 = sphi 0, %s70
    %s73 = sphi 0, %s72
    %s87 = sphi 0, %s73
    %s91 = sphi 0, %s91
    %s93 = sphi 0, %s91
    %s94 = sphi 0, %s93
    %s108 = sphi 0, %s94
    %s114 = sphi 0, %s116
    %s117 = sphi 0, %s114
    %s118 = sphi 0, %s117
    %s134 = sphi 0, %s118
  $region4: #{content_encoder_forward.17} parent=0 // loop_header_branch
    %13 = sbr.rel (%p11) target = $region8
  $region5: #{content_encoder_forward.17} parent=0 // loop_body
    %s15 = ssub.s32 %s10, 1
    %s16 = ssub.s32 %s10, 2
    %s17 = sadd.s32 %s10, 1
    %s18 = ssub.s32 %s10, %s17
    %p19 = scmp.eq.s32.totalorder %s18, 0
    %s21 = sadd.s32 %s20, 1
    %s22 = scalar_select %p19, %s20, %s21
    %p25 = pneg %p19
    %p26 = scmp.eq.s32.totalorder %s10, 1
    %p27 = por %p25, %p26
    %p28 = scmp.ne.s32.totalorder %s20, %s23
    %p29 = scmp.eq.s32.totalorder %s10, 0
    %p30 = por %p28, %p29
    %p31 = scmp.ne.s32.totalorder %s20, %s23
    %p32 = scmp.eq.s32.totalorder %s15, 1
    %p33 = por %p31, %p32
    %p34 = scmp.ne.s32.totalorder %s23, %s24
    %p35 = scmp.eq.s32.totalorder %s15, 0
    %p36 = por %p34, %p35
    %p37 = scmp.ne.s32.totalorder %s23, %s24
    %p38 = scmp.eq.s32.totalorder %s16, 1
    %p39 = por %p37, %p38
    %p41 = scmp.ne.s32.totalorder %s24, %s40
    %p42 = scmp.eq.s32.totalorder %s16, 0
    %p43 = por %p41, %p42
    %s44 = ssub.s32 %s10, %s17
    %p45 = scmp.eq.s32.totalorder %s44, 0
    %s47 = sadd.s32 %s46, 1
    %s48 = scalar_select %p45, %s46, %s47
    %p51 = pneg %p45
    %p52 = scmp.eq.s32.totalorder %s10, 1
    %p53 = por %p51, %p52
    %p54 = scmp.ne.s32.totalorder %s46, %s49
    %p55 = scmp.eq.s32.totalorder %s10, 0
    %p56 = por %p54, %p55
    %p57 = scmp.ne.s32.totalorder %s46, %s49
    %p58 = scmp.eq.s32.totalorder %s15, 1
    %p59 = por %p57, %p58
    %p60 = scmp.ne.s32.totalorder %s49, %s50
    %p61 = scmp.eq.s32.totalorder %s15, 0
    %p62 = por %p60, %p61
    %p63 = scmp.ne.s32.totalorder %s49, %s50
    %p64 = scmp.eq.s32.totalorder %s16, 1
    %p65 = por %p63, %p64
    %p67 = scmp.ne.s32.totalorder %s50, %s66
    %p68 = scmp.eq.s32.totalorder %s16, 0
    %p69 = por %p67, %p68
    %s71 = sadd.s32 %s70, 1
    %p74 = scmp.eq.s32.totalorder %s10, 1
    %p75 = scmp.ne.s32.totalorder %s70, %s72
    %p76 = scmp.eq.s32.totalorder %s10, 0
    %p77 = por %p75, %p76
    %p78 = scmp.ne.s32.totalorder %s70, %s72
    %p79 = scmp.eq.s32.totalorder %s15, 1
    %p80 = por %p78, %p79
    %p81 = scmp.ne.s32.totalorder %s72, %s73
    %p82 = scmp.eq.s32.totalorder %s15, 0
    %p83 = por %p81, %p82
    %p84 = scmp.ne.s32.totalorder %s72, %s73
    %p85 = scmp.eq.s32.totalorder %s16, 1
    %p86 = por %p84, %p85
    %p88 = scmp.ne.s32.totalorder %s73, %s87
    %p89 = scmp.eq.s32.totalorder %s16, 0
    %p90 = por %p88, %p89
    %s92 = sadd.s32 %s91, 1
    %p95 = scmp.eq.s32.totalorder %s10, 1
    %p96 = scmp.ne.s32.totalorder %s91, %s93
    %p97 = scmp.eq.s32.totalorder %s10, 0
    %p98 = por %p96, %p97
    %p99 = scmp.ne.s32.totalorder %s91, %s93
    %p100 = scmp.eq.s32.totalorder %s15, 1
    %p101 = por %p99, %p100
    %p102 = scmp.ne.s32.totalorder %s93, %s94
    %p103 = scmp.eq.s32.totalorder %s15, 0
    %p104 = por %p102, %p103
    %p105 = scmp.ne.s32.totalorder %s93, %s94
    %p106 = scmp.eq.s32.totalorder %s16, 1
    %p107 = por %p105, %p106
    %p109 = scmp.ne.s32.totalorder %s94, %s108
    %p110 = scmp.eq.s32.totalorder %s16, 0
    %p111 = por %p109, %p110
    %s112 = ssub.s32 %s10, %s17
    %p113 = scmp.eq.s32.totalorder %s112, 0
    %s115 = sadd.s32 %s114, 1
    %s116 = scalar_select %p113, %s114, %s115
    %p119 = pneg %p113
    %p120 = scmp.eq.s32.totalorder %s10, 1
    %p121 = por %p119, %p120
    %p122 = scmp.ne.s32.totalorder %s114, %s117
    %p123 = scmp.eq.s32.totalorder %s10, 0
    %p124 = por %p122, %p123
    %p125 = scmp.ne.s32.totalorder %s114, %s117
    %p126 = scmp.eq.s32.totalorder %s15, 1
    %p127 = por %p125, %p126
    %p128 = scmp.ne.s32.totalorder %s117, %s118
    %p129 = scmp.eq.s32.totalorder %s15, 0
    %p130 = por %p128, %p129
    %p131 = scmp.ne.s32.totalorder %s117, %s118
    %p132 = scmp.eq.s32.totalorder %s16, 1
    %p133 = por %p131, %p132
    %p135 = scmp.ne.s32.totalorder %s118, %s134
    %p136 = scmp.eq.s32.totalorder %s16, 0
    %p137 = por %p135, %p136
    %p138 = scmp.le.s32.totalorder 1, %s10
    %p139 = scmp.lt.s32.totalorder %s10, 3
    %p140 = pnand %p138, %p139
    %p141 = pneg %p140
    // Predicated region
    $region9: #{content_encoder_forward.17} parent=5 // pred_check
      _
    $region10: #{content_encoder_forward.17} parent=5 // pred_check_branch
      %143 = sbr.rel (%p140) target = $region12
    $region11: #{content_encoder_forward.17} parent=5 // pred_region
      %s144 = ssub.s32 %s10, 1
      // Predicated region
      $region13: #{content_encoder_forward.17} parent=11 // pred_check
        %p145 = pneg %p83
      $region14: #{content_encoder_forward.17} parent=11 // pred_check_branch
        %147 = sbr.rel (%p145) target = $region16
      $region15: #{content_encoder_forward.17} parent=11 // pred_region
        _
      $region16: #{content_encoder_forward.17} parent=11 // pred_fallthru
        _
      // Predicated region
      $region17: #{content_encoder_forward.17} parent=11 // pred_check
        %p148 = pneg %p104
      $region18: #{content_encoder_forward.17} parent=11 // pred_check_branch
        %150 = sbr.rel (%p148) target = $region20
      $region19: #{content_encoder_forward.17} parent=11 // pred_region
        _
      $region20: #{content_encoder_forward.17} parent=11 // pred_fallthru
        _
    $region12: #{content_encoder_forward.17} parent=5 // pred_fallthru
      _
    %p151 = scmp.lt.s32.totalorder %s10, 2
    // Predicated region
    $region21: #{content_encoder_forward.17} parent=5 // pred_check
      %p152 = pneg %p151
    $region22: #{content_encoder_forward.17} parent=5 // pred_check_branch
      %154 = sbr.rel (%p152) target = $region24
    $region23: #{content_encoder_forward.17} parent=5 // pred_region
      // Predicated region
      $region25: #{content_encoder_forward.17} parent=23 // pred_check
        %p155 = pneg %p30
      $region26: #{content_encoder_forward.17} parent=23 // pred_check_branch
        %157 = sbr.rel (%p155) target = $region28
      $region27: #{content_encoder_forward.17} parent=23 // pred_region
        %s158 = smul.u32 32, %s10
        %p159 = scmp.lt.s32.totalorder %s158, 63
        %s160 = scalar_select %p159, %s158, 63
        %s161 = smul.addr %s160, 2
        %s162 = smul.addr %s161, 4
        %s163 = scalar_lea.vmem %s0, %s162
        %s164 = smul.u32 32, %s10
      $region28: #{content_encoder_forward.17} parent=23 // pred_fallthru
        _
      // Predicated region
      $region29: #{content_encoder_forward.17} parent=23 // pred_check
        %p165 = pneg %p56
      $region30: #{content_encoder_forward.17} parent=23 // pred_check_branch
        %167 = sbr.rel (%p165) target = $region32
      $region31: #{content_encoder_forward.17} parent=23 // pred_region
        %s168 = smul.u32 32, %s10
        %p169 = scmp.lt.s32.totalorder %s168, 63
        %s170 = scalar_select %p169, %s168, 63
        %s171 = smul.addr %s170, 8
        %s172 = scalar_lea.vmem %s1, %s171
        %s173 = smul.u32 32, %s10
      $region32: #{content_encoder_forward.17} parent=23 // pred_fallthru
        _
    $region24: #{content_encoder_forward.17} parent=5 // pred_fallthru
      _
    %p174 = scmp.le.s32.totalorder 1, %s10
    %p175 = scmp.lt.s32.totalorder %s10, 3
    %p176 = pnand %p174, %p175
    %p177 = pneg %p176
    // Predicated region
    $region33: #{content_encoder_forward.17} parent=5 // pred_check
      _
    $region34: #{content_encoder_forward.17} parent=5 // pred_check_branch
      %179 = sbr.rel (%p176) target = $region36
    $region35: #{content_encoder_forward.17} parent=5 // pred_region
      %s180 = ssub.s32 %s10, 1
      %s181 = smul.u32 32, %s15
      %p182 = scmp.lt.s32.totalorder %s181, 63
      %s183 = scalar_select %p182, %s181, 63
      %s184 = smul.addr %s183, 2
      %s185 = smul.addr %s184, 4
      %s186 = scalar_lea.vmem %s0, %s185
      %p187 = pneg %p36
      %p188 = pneg %p33
      %s189 = smul.u32 32, %s15
      %p190 = scmp.lt.s32.totalorder %s189, 63
      %s191 = scalar_select %p190, %s189, 63
      %s192 = smul.addr %s191, 8
      %s193 = scalar_lea.vmem %s1, %s192
      %p194 = pneg %p62
      %p195 = pneg %p59
      %p196 = pneg %p83
      %p197 = pneg %p80
      %p198 = pneg %p104
      %p199 = pneg %p101
      %p200 = pneg %p130
      %p201 = pneg %p127
      %s202 = smul.u32 32, %s15
      %p203 = scmp.lt.s32.totalorder %s202, 63
      %s204 = scalar_select %p203, %s202, 63
      %s205 = smul.addr %s204, 8
      %s206 = scalar_lea.vmem %s4, %s205
      %s207 = smul.u32 32, %s15
      %p208 = scmp.lt.s32.totalorder %s207, 63
      %s209 = scalar_select %p208, %s207, 63
      %s210 = smul.addr %s209, 2
      %s211 = smul.addr %s210, 4
      %s212 = scalar_lea.vmem %s0, %s211
      %s213 = smul.u32 32, %s15
      %s214 = smul.u32 32, %s15
      %p215 = scmp.lt.s32.totalorder %s214, 63
      %s216 = scalar_select %p215, %s214, 63
      %s217 = smul.addr %s216, 8
      %s218 = scalar_lea.vmem %s1, %s217
      %s219 = smul.u32 32, %s15
      %s220 = smul.u32 32, %s15
      %p221 = scmp.lt.s32.totalorder %s220, 63
      %s222 = scalar_select %p221, %s220, 63
      %s223 = smul.addr %s222, 8
      %s224 = scalar_lea.vmem %s4, %s223
      %s225 = smul.u32 32, %s15
      %v227 = vld [vmem:[%s218] sm:$0xff]
      %v228 = vld [vmem:[%s218 + $0x8] sm:$0xff]
      %v229 = vld [vmem:[%s218 + $0x10] sm:$0xff]
      %v230 = vld [vmem:[%s218 + $0x18] sm:$0xff]
      %v231 = vld [vmem:[%s218 + $0x20] sm:$0xff]
      %v232 = vld [vmem:[%s218 + $0x28] sm:$0xff]
      %v233 = vld [vmem:[%s218 + $0x30] sm:$0xff]
      %v234 = vld [vmem:[%s218 + $0x38] sm:$0xff]
      %v235 = vld [vmem:[%s218 + $0x40] sm:$0xff]
      %v236 = vld [vmem:[%s218 + $0x48] sm:$0xff]
      %v237 = vld [vmem:[%s218 + $0x50] sm:$0xff]
      %v238 = vld [vmem:[%s218 + $0x58] sm:$0xff]
      %v239 = vld [vmem:[%s218 + $0x60] sm:$0xff]
      %v240 = vld [vmem:[%s218 + $0x68] sm:$0xff]
      %v241 = vld [vmem:[%s218 + $0x70] sm:$0xff]
      %v242 = vld [vmem:[%s218 + $0x78] sm:$0xff]
      %v243 = vld [vmem:[%s218 + $0x80] sm:$0xff]
      %v244 = vld [vmem:[%s218 + $0x88] sm:$0xff]
      %v245 = vld [vmem:[%s218 + $0x90] sm:$0xff]
      %v246 = vld [vmem:[%s218 + $0x98] sm:$0xff]
      %v247 = vld [vmem:[%s218 + $0xa0] sm:$0xff]
      %v248 = vld [vmem:[%s218 + $0xa8] sm:$0xff]
      %v249 = vld [vmem:[%s218 + $0xb0] sm:$0xff]
      %v250 = vld [vmem:[%s218 + $0xb8] sm:$0xff]
      %v251 = vld [vmem:[%s218 + $0xc0] sm:$0xff]
      %v252 = vld [vmem:[%s218 + $0xc8] sm:$0xff]
      %v253 = vld [vmem:[%s218 + $0xd0] sm:$0xff]
      %v254 = vld [vmem:[%s218 + $0xd8] sm:$0xff]
      %v255 = vld [vmem:[%s218 + $0xe0] sm:$0xff]
      %v256 = vld [vmem:[%s218 + $0xe8] sm:$0xff]
      %v257 = vld [vmem:[%s218 + $0xf0] sm:$0xff]
      %v258 = vld [vmem:[%s218 + $0xf8] sm:$0xff]
      %291 = vrot.lane.b32.xlu0 %v227, 49
      %v292 = vpop.permute.xlu0 %291
      %293 = vrot.lane.b32.xlu0 %v228, 49
      %v294 = vpop.permute.xlu0 %293
      %295 = vrot.lane.b32.xlu0 %v229, 49
      %v296 = vpop.permute.xlu0 %295
      %297 = vrot.lane.b32.xlu0 %v230, 49
      %v298 = vpop.permute.xlu0 %297
      %299 = vrot.lane.b32.xlu0 %v231, 49
      %v300 = vpop.permute.xlu0 %299
      %301 = vrot.lane.b32.xlu0 %v232, 49
      %v302 = vpop.permute.xlu0 %301
      %303 = vrot.lane.b32.xlu0 %v233, 49
      %v304 = vpop.permute.xlu0 %303
      %305 = vrot.lane.b32.xlu0 %v234, 49
      %v306 = vpop.permute.xlu0 %305
      %307 = vrot.lane.b32.xlu0 %v235, 49
      %v308 = vpop.permute.xlu0 %307
      %309 = vrot.lane.b32.xlu0 %v236, 49
      %v310 = vpop.permute.xlu0 %309
      %311 = vrot.lane.b32.xlu0 %v237, 49
      %v312 = vpop.permute.xlu0 %311
      %313 = vrot.lane.b32.xlu0 %v238, 49
      %v314 = vpop.permute.xlu0 %313
      %315 = vrot.lane.b32.xlu0 %v239, 49
      %v316 = vpop.permute.xlu0 %315
      %317 = vrot.lane.b32.xlu0 %v240, 49
      %v318 = vpop.permute.xlu0 %317
      %319 = vrot.lane.b32.xlu0 %v241, 49
      %v320 = vpop.permute.xlu0 %319
      %321 = vrot.lane.b32.xlu0 %v242, 49
      %v322 = vpop.permute.xlu0 %321
      %323 = vrot.lane.b32.xlu0 %v243, 49
      %v324 = vpop.permute.xlu0 %323
      %325 = vrot.lane.b32.xlu0 %v244, 49
      %v326 = vpop.permute.xlu0 %325
      %327 = vrot.lane.b32.xlu0 %v245, 49
      %v328 = vpop.permute.xlu0 %327
      %329 = vrot.lane.b32.xlu0 %v246, 49
      %v330 = vpop.permute.xlu0 %329
      %331 = vrot.lane.b32.xlu0 %v247, 49
      %v332 = vpop.permute.xlu0 %331
      %333 = vrot.lane.b32.xlu0 %v248, 49
      %v334 = vpop.permute.xlu0 %333
      %335 = vrot.lane.b32.xlu0 %v249, 49
      %v336 = vpop.permute.xlu0 %335
      %337 = vrot.lane.b32.xlu0 %v250, 49
      %v338 = vpop.permute.xlu0 %337
      %339 = vrot.lane.b32.xlu0 %v251, 49
      %v340 = vpop.permute.xlu0 %339
      %341 = vrot.lane.b32.xlu0 %v252, 49
      %v342 = vpop.permute.xlu0 %341
      %343 = vrot.lane.b32.xlu0 %v253, 49
      %v344 = vpop.permute.xlu0 %343
      %345 = vrot.lane.b32.xlu0 %v254, 49
      %v346 = vpop.permute.xlu0 %345
      %347 = vrot.lane.b32.xlu0 %v255, 49
      %v348 = vpop.permute.xlu0 %347
      %349 = vrot.lane.b32.xlu0 %v256, 49
      %v350 = vpop.permute.xlu0 %349
      %351 = vrot.lane.b32.xlu0 %v257, 49
      %v352 = vpop.permute.xlu0 %351
      %353 = vrot.lane.b32.xlu0 %v258, 49
      %v354 = vpop.permute.xlu0 %353
      %387 = vrot.lane.b32.xlu0 %v227, 98
      %v388 = vpop.permute.xlu0 %387
      %389 = vrot.lane.b32.xlu0 %v228, 98
      %v390 = vpop.permute.xlu0 %389
      %391 = vrot.lane.b32.xlu0 %v229, 98
      %v392 = vpop.permute.xlu0 %391
      %393 = vrot.lane.b32.xlu0 %v230, 98
      %v394 = vpop.permute.xlu0 %393
      %395 = vrot.lane.b32.xlu0 %v231, 98
      %v396 = vpop.permute.xlu0 %395
      %397 = vrot.lane.b32.xlu0 %v232, 98
      %v398 = vpop.permute.xlu0 %397
      %399 = vrot.lane.b32.xlu0 %v233, 98
      %v400 = vpop.permute.xlu0 %399
      %401 = vrot.lane.b32.xlu0 %v234, 98
      %v402 = vpop.permute.xlu0 %401
      %403 = vrot.lane.b32.xlu0 %v235, 98
      %v404 = vpop.permute.xlu0 %403
      %405 = vrot.lane.b32.xlu0 %v236, 98
      %v406 = vpop.permute.xlu0 %405
      %407 = vrot.lane.b32.xlu0 %v237, 98
      %v408 = vpop.permute.xlu0 %407
      %409 = vrot.lane.b32.xlu0 %v238, 98
      %v410 = vpop.permute.xlu0 %409
      %411 = vrot.lane.b32.xlu0 %v239, 98
      %v412 = vpop.permute.xlu0 %411
      %413 = vrot.lane.b32.xlu0 %v240, 98
      %v414 = vpop.permute.xlu0 %413
      %415 = vrot.lane.b32.xlu0 %v241, 98
      %v416 = vpop.permute.xlu0 %415
      %417 = vrot.lane.b32.xlu0 %v242, 98
      %v418 = vpop.permute.xlu0 %417
      %419 = vrot.lane.b32.xlu0 %v243, 98
      %v420 = vpop.permute.xlu0 %419
      %421 = vrot.lane.b32.xlu0 %v244, 98
      %v422 = vpop.permute.xlu0 %421
      %423 = vrot.lane.b32.xlu0 %v245, 98
      %v424 = vpop.permute.xlu0 %423
      %425 = vrot.lane.b32.xlu0 %v246, 98
      %v426 = vpop.permute.xlu0 %425
      %427 = vrot.lane.b32.xlu0 %v247, 98
      %v428 = vpop.permute.xlu0 %427
      %429 = vrot.lane.b32.xlu0 %v248, 98
      %v430 = vpop.permute.xlu0 %429
      %431 = vrot.lane.b32.xlu0 %v249, 98
      %v432 = vpop.permute.xlu0 %431
      %433 = vrot.lane.b32.xlu0 %v250, 98
      %v434 = vpop.permute.xlu0 %433
      %435 = vrot.lane.b32.xlu0 %v251, 98
      %v436 = vpop.permute.xlu0 %435
      %437 = vrot.lane.b32.xlu0 %v252, 98
      %v438 = vpop.permute.xlu0 %437
      %439 = vrot.lane.b32.xlu0 %v253, 98
      %v440 = vpop.permute.xlu0 %439
      %441 = vrot.lane.b32.xlu0 %v254, 98
      %v442 = vpop.permute.xlu0 %441
      %443 = vrot.lane.b32.xlu0 %v255, 98
      %v444 = vpop.permute.xlu0 %443
      %445 = vrot.lane.b32.xlu0 %v256, 98
      %v446 = vpop.permute.xlu0 %445
      %447 = vrot.lane.b32.xlu0 %v257, 98
      %v448 = vpop.permute.xlu0 %447
      %449 = vrot.lane.b32.xlu0 %v258, 98
      %v450 = vpop.permute.xlu0 %449
      %483 = vrot.lane.b32.xlu0 %v227, 19
      %v484 = vpop.permute.xlu0 %483
      %485 = vrot.lane.b32.xlu0 %v228, 19
      %v486 = vpop.permute.xlu0 %485
      %487 = vrot.lane.b32.xlu0 %v229, 19
      %v488 = vpop.permute.xlu0 %487
      %489 = vrot.lane.b32.xlu0 %v230, 19
      %v490 = vpop.permute.xlu0 %489
      %491 = vrot.lane.b32.xlu0 %v231, 19
      %v492 = vpop.permute.xlu0 %491
      %493 = vrot.lane.b32.xlu0 %v232, 19
      %v494 = vpop.permute.xlu0 %493
      %495 = vrot.lane.b32.xlu0 %v233, 19
      %v496 = vpop.permute.xlu0 %495
      %497 = vrot.lane.b32.xlu0 %v234, 19
      %v498 = vpop.permute.xlu0 %497
      %499 = vrot.lane.b32.xlu0 %v235, 19
      %v500 = vpop.permute.xlu0 %499
      %501 = vrot.lane.b32.xlu0 %v236, 19
      %v502 = vpop.permute.xlu0 %501
      %503 = vrot.lane.b32.xlu0 %v237, 19
      %v504 = vpop.permute.xlu0 %503
      %505 = vrot.lane.b32.xlu0 %v238, 19
      %v506 = vpop.permute.xlu0 %505
      %507 = vrot.lane.b32.xlu0 %v239, 19
      %v508 = vpop.permute.xlu0 %507
      %509 = vrot.lane.b32.xlu0 %v240, 19
      %v510 = vpop.permute.xlu0 %509
      %511 = vrot.lane.b32.xlu0 %v241, 19
      %v512 = vpop.permute.xlu0 %511
      %513 = vrot.lane.b32.xlu0 %v242, 19
      %v514 = vpop.permute.xlu0 %513
      %515 = vrot.lane.b32.xlu0 %v243, 19
      %v516 = vpop.permute.xlu0 %515
      %517 = vrot.lane.b32.xlu0 %v244, 19
      %v518 = vpop.permute.xlu0 %517
      %519 = vrot.lane.b32.xlu0 %v245, 19
      %v520 = vpop.permute.xlu0 %519
      %521 = vrot.lane.b32.xlu0 %v246, 19
      %v522 = vpop.permute.xlu0 %521
      %523 = vrot.lane.b32.xlu0 %v247, 19
      %v524 = vpop.permute.xlu0 %523
      %525 = vrot.lane.b32.xlu0 %v248, 19
      %v526 = vpop.permute.xlu0 %525
      %527 = vrot.lane.b32.xlu0 %v249, 19
      %v528 = vpop.permute.xlu0 %527
      %529 = vrot.lane.b32.xlu0 %v250, 19
      %v530 = vpop.permute.xlu0 %529
      %531 = vrot.lane.b32.xlu0 %v251, 19
      %v532 = vpop.permute.xlu0 %531
      %533 = vrot.lane.b32.xlu0 %v252, 19
      %v534 = vpop.permute.xlu0 %533
      %535 = vrot.lane.b32.xlu0 %v253, 19
      %v536 = vpop.permute.xlu0 %535
      %537 = vrot.lane.b32.xlu0 %v254, 19
      %v538 = vpop.permute.xlu0 %537
      %539 = vrot.lane.b32.xlu0 %v255, 19
      %v540 = vpop.permute.xlu0 %539
      %541 = vrot.lane.b32.xlu0 %v256, 19
      %v542 = vpop.permute.xlu0 %541
      %543 = vrot.lane.b32.xlu0 %v257, 19
      %v544 = vpop.permute.xlu0 %543
      %545 = vrot.lane.b32.xlu0 %v258, 19
      %v546 = vpop.permute.xlu0 %545
      %vm579 = vcmask 400384
      %v580 = vsel %vm579, %v227, %v292
      %v581 = vsel %vm579, %v228, %v294
      %v582 = vsel %vm579, %v229, %v296
      %v583 = vsel %vm579, %v230, %v298
      %v584 = vsel %vm579, %v231, %v300
      %v585 = vsel %vm579, %v232, %v302
      %v586 = vsel %vm579, %v233, %v304
      %v587 = vsel %vm579, %v234, %v306
      %v588 = vsel %vm579, %v235, %v308
      %v589 = vsel %vm579, %v236, %v310
      %v590 = vsel %vm579, %v237, %v312
      %v591 = vsel %vm579, %v238, %v314
      %v592 = vsel %vm579, %v239, %v316
      %v593 = vsel %vm579, %v240, %v318
      %v594 = vsel %vm579, %v241, %v320
      %v595 = vsel %vm579, %v242, %v322
      %v596 = vsel %vm579, %v243, %v324
      %v597 = vsel %vm579, %v244, %v326
      %v598 = vsel %vm579, %v245, %v328
      %v599 = vsel %vm579, %v246, %v330
      %v600 = vsel %vm579, %v247, %v332
      %v601 = vsel %vm579, %v248, %v334
      %v602 = vsel %vm579, %v249, %v336
      %v603 = vsel %vm579, %v250, %v338
      %v604 = vsel %vm579, %v251, %v340
      %v605 = vsel %vm579, %v252, %v342
      %v606 = vsel %vm579, %v253, %v344
      %v607 = vsel %vm579, %v254, %v346
      %v608 = vsel %vm579, %v255, %v348
      %v609 = vsel %vm579, %v256, %v350
      %v610 = vsel %vm579, %v257, %v352
      %v611 = vsel %vm579, %v258, %v354
      %vm612 = vcmask 801792
      %v613 = vsel %vm612, %v580, %v388
      %v614 = vsel %vm612, %v581, %v390
      %v615 = vsel %vm612, %v582, %v392
      %v616 = vsel %vm612, %v583, %v394
      %v617 = vsel %vm612, %v584, %v396
      %v618 = vsel %vm612, %v585, %v398
      %v619 = vsel %vm612, %v586, %v400
      %v620 = vsel %vm612, %v587, %v402
      %v621 = vsel %vm612, %v588, %v404
      %v622 = vsel %vm612, %v589, %v406
      %v623 = vsel %vm612, %v590, %v408
      %v624 = vsel %vm612, %v591, %v410
      %v625 = vsel %vm612, %v592, %v412
      %v626 = vsel %vm612, %v593, %v414
      %v627 = vsel %vm612, %v594, %v416
      %v628 = vsel %vm612, %v595, %v418
      %v629 = vsel %vm612, %v596, %v420
      %v630 = vsel %vm612, %v597, %v422
      %v631 = vsel %vm612, %v598, %v424
      %v632 = vsel %vm612, %v599, %v426
      %v633 = vsel %vm612, %v600, %v428
      %v634 = vsel %vm612, %v601, %v430
      %v635 = vsel %vm612, %v602, %v432
      %v636 = vsel %vm612, %v603, %v434
      %v637 = vsel %vm612, %v604, %v436
      %v638 = vsel %vm612, %v605, %v438
      %v639 = vsel %vm612, %v606, %v440
      %v640 = vsel %vm612, %v607, %v442
      %v641 = vsel %vm612, %v608, %v444
      %v642 = vsel %vm612, %v609, %v446
      %v643 = vsel %vm612, %v610, %v448
      %v644 = vsel %vm612, %v611, %v450
      %vm645 = vcmask 154624
      %v646 = vsel %vm645, %v388, %v484
      %v647 = vsel %vm645, %v390, %v486
      %v648 = vsel %vm645, %v392, %v488
      %v649 = vsel %vm645, %v394, %v490
      %v650 = vsel %vm645, %v396, %v492
      %v651 = vsel %vm645, %v398, %v494
      %v652 = vsel %vm645, %v400, %v496
      %v653 = vsel %vm645, %v402, %v498
      %v654 = vsel %vm645, %v404, %v500
      %v655 = vsel %vm645, %v406, %v502
      %v656 = vsel %vm645, %v408, %v504
      %v657 = vsel %vm645, %v410, %v506
      %v658 = vsel %vm645, %v412, %v508
      %v659 = vsel %vm645, %v414, %v510
      %v660 = vsel %vm645, %v416, %v512
      %v661 = vsel %vm645, %v418, %v514
      %v662 = vsel %vm645, %v420, %v516
      %v663 = vsel %vm645, %v422, %v518
      %v664 = vsel %vm645, %v424, %v520
      %v665 = vsel %vm645, %v426, %v522
      %v666 = vsel %vm645, %v428, %v524
      %v667 = vsel %vm645, %v430, %v526
      %v668 = vsel %vm645, %v432, %v528
      %v669 = vsel %vm645, %v434, %v530
      %v670 = vsel %vm645, %v436, %v532
      %v671 = vsel %vm645, %v438, %v534
      %v672 = vsel %vm645, %v440, %v536
      %v673 = vsel %vm645, %v442, %v538
      %v674 = vsel %vm645, %v444, %v540
      %v675 = vsel %vm645, %v446, %v542
      %v676 = vsel %vm645, %v448, %v544
      %v677 = vsel %vm645, %v450, %v546
      %v678 = vld [vmem:[%s212] sm:$0xff]
      %v679 = vld [vmem:[%s212 + $0x8] sm:$0xff]
      %v680 = vld [vmem:[%s212 + $0x10] sm:$0xff]
      %v681 = vld [vmem:[%s212 + $0x18] sm:$0xff]
      %v682 = vld [vmem:[%s212 + $0x20] sm:$0xff]
      %v683 = vld [vmem:[%s212 + $0x28] sm:$0xff]
      %v684 = vld [vmem:[%s212 + $0x30] sm:$0xff]
      %v685 = vld [vmem:[%s212 + $0x38] sm:$0xff]
      %v686 = vld [vmem:[%s212 + $0x40] sm:$0xff]
      %v687 = vld [vmem:[%s212 + $0x48] sm:$0xff]
      %v688 = vld [vmem:[%s212 + $0x50] sm:$0xff]
      %v689 = vld [vmem:[%s212 + $0x58] sm:$0xff]
      %v690 = vld [vmem:[%s212 + $0x60] sm:$0xff]
      %v691 = vld [vmem:[%s212 + $0x68] sm:$0xff]
      %v692 = vld [vmem:[%s212 + $0x70] sm:$0xff]
      %v693 = vld [vmem:[%s212 + $0x78] sm:$0xff]
      %v694 = vld [vmem:[%s212 + $0x80] sm:$0xff]
      %v695 = vld [vmem:[%s212 + $0x88] sm:$0xff]
      %v696 = vld [vmem:[%s212 + $0x90] sm:$0xff]
      %v697 = vld [vmem:[%s212 + $0x98] sm:$0xff]
      %v698 = vld [vmem:[%s212 + $0xa0] sm:$0xff]
      %v699 = vld [vmem:[%s212 + $0xa8] sm:$0xff]
      %v700 = vld [vmem:[%s212 + $0xb0] sm:$0xff]
      %v701 = vld [vmem:[%s212 + $0xb8] sm:$0xff]
      %v702 = vld [vmem:[%s212 + $0xc0] sm:$0xff]
      %v703 = vld [vmem:[%s212 + $0xc8] sm:$0xff]
      %v704 = vld [vmem:[%s212 + $0xd0] sm:$0xff]
      %v705 = vld [vmem:[%s212 + $0xd8] sm:$0xff]
      %v706 = vld [vmem:[%s212 + $0xe0] sm:$0xff]
      %v707 = vld [vmem:[%s212 + $0xe8] sm:$0xff]
      %v708 = vld [vmem:[%s212 + $0xf0] sm:$0xff]
      %v709 = vld [vmem:[%s212 + $0xf8] sm:$0xff]
      %v710 = vunpack.c.l.bf16 %v678
      %v711 = vunpack.c.h.bf16 %v678
      %v712 = vunpack.c.l.bf16 %v679
      %v713 = vunpack.c.h.bf16 %v679
      %v714 = vunpack.c.l.bf16 %v680
      %v715 = vunpack.c.h.bf16 %v680
      %v716 = vunpack.c.l.bf16 %v681
      %v717 = vunpack.c.h.bf16 %v681
      %v718 = vunpack.c.l.bf16 %v682
      %v719 = vunpack.c.h.bf16 %v682
      %v720 = vunpack.c.l.bf16 %v683
      %v721 = vunpack.c.h.bf16 %v683
      %v722 = vunpack.c.l.bf16 %v684
      %v723 = vunpack.c.h.bf16 %v684
      %v724 = vunpack.c.l.bf16 %v685
      %v725 = vunpack.c.h.bf16 %v685
      %v726 = vunpack.c.l.bf16 %v686
      %v727 = vunpack.c.h.bf16 %v686
      %v728 = vunpack.c.l.bf16 %v687
      %v729 = vunpack.c.h.bf16 %v687
      %v730 = vunpack.c.l.bf16 %v688
      %v731 = vunpack.c.h.bf16 %v688
      %v732 = vunpack.c.l.bf16 %v689
      %v733 = vunpack.c.h.bf16 %v689
      %v734 = vunpack.c.l.bf16 %v690
      %v735 = vunpack.c.h.bf16 %v690
      %v736 = vunpack.c.l.bf16 %v691
      %v737 = vunpack.c.h.bf16 %v691
      %v738 = vunpack.c.l.bf16 %v692
      %v739 = vunpack.c.h.bf16 %v692
      %v740 = vunpack.c.l.bf16 %v693
      %v741 = vunpack.c.h.bf16 %v693
      %v742 = vunpack.c.l.bf16 %v694
      %v743 = vunpack.c.h.bf16 %v694
      %v744 = vunpack.c.l.bf16 %v695
      %v745 = vunpack.c.h.bf16 %v695
      %v746 = vunpack.c.l.bf16 %v696
      %v747 = vunpack.c.h.bf16 %v696
      %v748 = vunpack.c.l.bf16 %v697
      %v749 = vunpack.c.h.bf16 %v697
      %v750 = vunpack.c.l.bf16 %v698
      %v751 = vunpack.c.h.bf16 %v698
      %v752 = vunpack.c.l.bf16 %v699
      %v753 = vunpack.c.h.bf16 %v699
      %v754 = vunpack.c.l.bf16 %v700
      %v755 = vunpack.c.h.bf16 %v700
      %v756 = vunpack.c.l.bf16 %v701
      %v757 = vunpack.c.h.bf16 %v701
      %v758 = vunpack.c.l.bf16 %v702
      %v759 = vunpack.c.h.bf16 %v702
      %v760 = vunpack.c.l.bf16 %v703
      %v761 = vunpack.c.h.bf16 %v703
      %v762 = vunpack.c.l.bf16 %v704
      %v763 = vunpack.c.h.bf16 %v704
      %v764 = vunpack.c.l.bf16 %v705
      %v765 = vunpack.c.h.bf16 %v705
      %v766 = vunpack.c.l.bf16 %v706
      %v767 = vunpack.c.h.bf16 %v706
      %v768 = vunpack.c.l.bf16 %v707
      %v769 = vunpack.c.h.bf16 %v707
      %v770 = vunpack.c.l.bf16 %v708
      %v771 = vunpack.c.h.bf16 %v708
      %v772 = vunpack.c.l.bf16 %v709
      %v773 = vunpack.c.h.bf16 %v709
      %v774 = vmul.f32 %v710, %v613
      %v775 = vmul.f32 %v711, %v646
      %v776 = vmul.f32 %v712, %v614
      %v777 = vmul.f32 %v713, %v647
      %v778 = vmul.f32 %v714, %v615
      %v779 = vmul.f32 %v715, %v648
      %v780 = vmul.f32 %v716, %v616
      %v781 = vmul.f32 %v717, %v649
      %v782 = vmul.f32 %v718, %v617
      %v783 = vmul.f32 %v719, %v650
      %v784 = vmul.f32 %v720, %v618
      %v785 = vmul.f32 %v721, %v651
      %v786 = vmul.f32 %v722, %v619
      %v787 = vmul.f32 %v723, %v652
      %v788 = vmul.f32 %v724, %v620
      %v789 = vmul.f32 %v725, %v653
      %v790 = vmul.f32 %v726, %v621
      %v791 = vmul.f32 %v727, %v654
      %v792 = vmul.f32 %v728, %v622
      %v793 = vmul.f32 %v729, %v655
      %v794 = vmul.f32 %v730, %v623
      %v795 = vmul.f32 %v731, %v656
      %v796 = vmul.f32 %v732, %v624
      %v797 = vmul.f32 %v733, %v657
      %v798 = vmul.f32 %v734, %v625
      %v799 = vmul.f32 %v735, %v658
      %v800 = vmul.f32 %v736, %v626
      %v801 = vmul.f32 %v737, %v659
      %v802 = vmul.f32 %v738, %v627
      %v803 = vmul.f32 %v739, %v660
      %v804 = vmul.f32 %v740, %v628
      %v805 = vmul.f32 %v741, %v661
      %v806 = vmul.f32 %v742, %v629
      %v807 = vmul.f32 %v743, %v662
      %v808 = vmul.f32 %v744, %v630
      %v809 = vmul.f32 %v745, %v663
      %v810 = vmul.f32 %v746, %v631
      %v811 = vmul.f32 %v747, %v664
      %v812 = vmul.f32 %v748, %v632
      %v813 = vmul.f32 %v749, %v665
      %v814 = vmul.f32 %v750, %v633
      %v815 = vmul.f32 %v751, %v666
      %v816 = vmul.f32 %v752, %v634
      %v817 = vmul.f32 %v753, %v667
      %v818 = vmul.f32 %v754, %v635
      %v819 = vmul.f32 %v755, %v668
      %v820 = vmul.f32 %v756, %v636
      %v821 = vmul.f32 %v757, %v669
      %v822 = vmul.f32 %v758, %v637
      %v823 = vmul.f32 %v759, %v670
      %v824 = vmul.f32 %v760, %v638
      %v825 = vmul.f32 %v761, %v671
      %v826 = vmul.f32 %v762, %v639
      %v827 = vmul.f32 %v763, %v672
      %v828 = vmul.f32 %v764, %v640
      %v829 = vmul.f32 %v765, %v673
      %v830 = vmul.f32 %v766, %v641
      %v831 = vmul.f32 %v767, %v674
      %v832 = vmul.f32 %v768, %v642
      %v833 = vmul.f32 %v769, %v675
      %v834 = vmul.f32 %v770, %v643
      %v835 = vmul.f32 %v771, %v676
      %v836 = vmul.f32 %v772, %v644
      %v837 = vmul.f32 %v773, %v677
      %v838 = vpack.c.bf16 %v776, %v774
      %v839 = vpack.c.bf16 %v777, %v775
      %v840 = vpack.c.bf16 %v780, %v778
      %v841 = vpack.c.bf16 %v781, %v779
      %v842 = vpack.c.bf16 %v784, %v782
      %v843 = vpack.c.bf16 %v785, %v783
      %v844 = vpack.c.bf16 %v788, %v786
      %v845 = vpack.c.bf16 %v789, %v787
      %v846 = vpack.c.bf16 %v792, %v790
      %v847 = vpack.c.bf16 %v793, %v791
      %v848 = vpack.c.bf16 %v796, %v794
      %v849 = vpack.c.bf16 %v797, %v795
      %v850 = vpack.c.bf16 %v800, %v798
      %v851 = vpack.c.bf16 %v801, %v799
      %v852 = vpack.c.bf16 %v804, %v802
      %v853 = vpack.c.bf16 %v805, %v803
      %v854 = vpack.c.bf16 %v808, %v806
      %v855 = vpack.c.bf16 %v809, %v807
      %v856 = vpack.c.bf16 %v812, %v810
      %v857 = vpack.c.bf16 %v813, %v811
      %v858 = vpack.c.bf16 %v816, %v814
      %v859 = vpack.c.bf16 %v817, %v815
      %v860 = vpack.c.bf16 %v820, %v818
      %v861 = vpack.c.bf16 %v821, %v819
      %v862 = vpack.c.bf16 %v824, %v822
      %v863 = vpack.c.bf16 %v825, %v823
      %v864 = vpack.c.bf16 %v828, %v826
      %v865 = vpack.c.bf16 %v829, %v827
      %v866 = vpack.c.bf16 %v832, %v830
      %v867 = vpack.c.bf16 %v833, %v831
      %v868 = vpack.c.bf16 %v836, %v834
      %v869 = vpack.c.bf16 %v837, %v835
      %v870 = vld [vmem:[%s2] sm:$0xf]
      %v871 = vld [vmem:[%s2 + $0x4] sm:$0xf]
      %v872 = vld [vmem:[%s2 + $0x8] sm:$0xf]
      %v873 = vld [vmem:[%s2 + $0xc] sm:$0xf]
      %v874 = vld [vmem:[%s2 + $0x10] sm:$0xf]
      %v875 = vld [vmem:[%s2 + $0x14] sm:$0xf]
      %v876 = vld [vmem:[%s2 + $0x18] sm:$0xf]
      %v877 = vld [vmem:[%s2 + $0x1c] sm:$0xf]
      %v878 = vld [vmem:[%s2 + $0x20] sm:$0xf]
      %v879 = vld [vmem:[%s2 + $0x24] sm:$0xf]
      %v880 = vld [vmem:[%s2 + $0x28] sm:$0xf]
      %v881 = vld [vmem:[%s2 + $0x2c] sm:$0xf]
      %v882 = vld [vmem:[%s2 + $0x30] sm:$0xf]
      %v883 = vld [vmem:[%s2 + $0x34] sm:$0xf]
      %v884 = vld [vmem:[%s2 + $0x38] sm:$0xf]
      %v885 = vld [vmem:[%s2 + $0x3c] sm:$0xf]
      %v886 = vld [vmem:[%s2 + $0x40] sm:$0xf]
      %v887 = vld [vmem:[%s2 + $0x44] sm:$0xf]
      %v888 = vld [vmem:[%s2 + $0x48] sm:$0xf]
      %v889 = vld [vmem:[%s2 + $0x4c] sm:$0xf]
      %v890 = vld [vmem:[%s2 + $0x50] sm:$0xf]
      %v891 = vld [vmem:[%s2 + $0x54] sm:$0xf]
      %v892 = vld [vmem:[%s2 + $0x58] sm:$0xf]
      %v893 = vld [vmem:[%s2 + $0x5c] sm:$0xf]
      %v894 = vld [vmem:[%s2 + $0x60] sm:$0x3]
      %v895 = vld [vmem:[%s3] sm:$0x1]
      %v897 = vperm.slane %v895, 0
      %v924 = vunpack.c.l.b16 %v870
      %v925 = vunpack.c.l.b16 %v871
      %v926 = vunpack.c.l.b16 %v872
      %v927 = vunpack.c.l.b16 %v873
      %v928 = vunpack.c.l.b16 %v874
      %v929 = vunpack.c.l.b16 %v875
      %v930 = vunpack.c.l.b16 %v876
      %v931 = vunpack.c.l.b16 %v877
      %v932 = vunpack.c.l.b16 %v878
      %v933 = vunpack.c.l.b16 %v879
      %v934 = vunpack.c.l.b16 %v880
      %v935 = vunpack.c.l.b16 %v881
      %v936 = vunpack.c.l.b16 %v882
      %v937 = vunpack.c.l.b16 %v883
      %v938 = vunpack.c.l.b16 %v884
      %v939 = vunpack.c.l.b16 %v885
      %v940 = vunpack.c.l.b16 %v886
      %v941 = vunpack.c.l.b16 %v887
      %v942 = vunpack.c.l.b16 %v888
      %v943 = vunpack.c.l.b16 %v889
      %v944 = vunpack.c.l.b16 %v890
      %v945 = vunpack.c.l.b16 %v891
      %v946 = vunpack.c.l.b16 %v892
      %v947 = vunpack.c.l.b16 %v893
      %v948 = vunpack.c.l.b16 %v894
      %v949 = vpack.c.b16 %v925, %v924
      %v950 = vpack.c.b16 %v927, %v926
      %v951 = vpack.c.b16 %v929, %v928
      %v952 = vpack.c.b16 %v931, %v930
      %v953 = vpack.c.b16 %v933, %v932
      %v954 = vpack.c.b16 %v935, %v934
      %v955 = vpack.c.b16 %v937, %v936
      %v956 = vpack.c.b16 %v939, %v938
      %v957 = vpack.c.b16 %v941, %v940
      %v958 = vpack.c.b16 %v943, %v942
      %v959 = vpack.c.b16 %v945, %v944
      %v960 = vpack.c.b16 %v947, %v946
      %v961 = vpack.c.b16 %v948, %v948
      %vm974 = vcmask 556032
      %v976 = vsel %vm974, %v839, 0
      %v979 = vsel %vm974, %v841, 0
      %v982 = vsel %vm974, %v843, 0
      %v985 = vsel %vm974, %v845, 0
      %v988 = vsel %vm974, %v847, 0
      %v991 = vsel %vm974, %v849, 0
      %v994 = vsel %vm974, %v851, 0
      %v997 = vsel %vm974, %v853, 0
      %v1000 = vsel %vm974, %v855, 0
      %v1003 = vsel %vm974, %v857, 0
      %v1006 = vsel %vm974, %v859, 0
      %v1009 = vsel %vm974, %v861, 0
      %v1012 = vsel %vm974, %v863, 0
      %v1015 = vsel %vm974, %v865, 0
      %v1018 = vsel %vm974, %v867, 0
      %v1021 = vsel %vm974, %v869, 0
      %vm1023 = vcmask 1041408
      %v1025 = vsel %vm1023, %v961, 0
      %1027 = vmatpush.bf16.msra.mxu0 %v956
      %1028 = vmatpush.bf16.msra.mxu0 %v955
      %1029 = vmatpush.bf16.msra.mxu0 %v954
      %1030 = vmatpush.bf16.msra.mxu0 %v953
      %1031 = vmatpush.bf16.msra.mxu0 %v952
      %1032 = vmatpush.bf16.msra.mxu0 %v951
      %1033 = vmatpush.bf16.msra.mxu0 %v950
      %1034 = vmatpush.bf16.msra.mxu0 %v949
      %1035 = vmatmul.bf16.gmra.mxu0 %v838
      %v1036 = vpop.f32.mrf.mxu0
      %v1037 = vadd.f32 %v897, %v1036
      %v1038 = vpop.f32.mrf.mxu0
      %v1039 = vadd.f32 %v897, %v1038
      %1040 = vmatmul.bf16.gmra.mxu0 %v840
      %v1041 = vpop.f32.mrf.mxu0
      %v1042 = vadd.f32 %v897, %v1041
      %v1043 = vpop.f32.mrf.mxu0
      %v1044 = vadd.f32 %v897, %v1043
      %1045 = vmatmul.bf16.gmra.mxu0 %v842
      %v1046 = vpop.f32.mrf.mxu0
      %v1047 = vadd.f32 %v897, %v1046
      %v1048 = vpop.f32.mrf.mxu0
      %v1049 = vadd.f32 %v897, %v1048
      %1050 = vmatmul.bf16.gmra.mxu0 %v844
      %v1051 = vpop.f32.mrf.mxu0
      %v1052 = vadd.f32 %v897, %v1051
      %v1053 = vpop.f32.mrf.mxu0
      %v1054 = vadd.f32 %v897, %v1053
      %1055 = vmatmul.bf16.gmra.mxu0 %v846
      %v1056 = vpop.f32.mrf.mxu0
      %v1057 = vadd.f32 %v897, %v1056
      %v1058 = vpop.f32.mrf.mxu0
      %v1059 = vadd.f32 %v897, %v1058
      %1060 = vmatmul.bf16.gmra.mxu0 %v848
      %v1061 = vpop.f32.mrf.mxu0
      %v1062 = vadd.f32 %v897, %v1061
      %v1063 = vpop.f32.mrf.mxu0
      %v1064 = vadd.f32 %v897, %v1063
      %1065 = vmatmul.bf16.gmra.mxu0 %v850
      %v1066 = vpop.f32.mrf.mxu0
      %v1067 = vadd.f32 %v897, %v1066
      %v1068 = vpop.f32.mrf.mxu0
      %v1069 = vadd.f32 %v897, %v1068
      %1070 = vmatmul.bf16.gmra.mxu0 %v852
      %v1071 = vpop.f32.mrf.mxu0
      %v1072 = vadd.f32 %v897, %v1071
      %v1073 = vpop.f32.mrf.mxu0
      %v1074 = vadd.f32 %v897, %v1073
      %1075 = vmatmul.bf16.gmra.mxu0 %v854
      %v1076 = vpop.f32.mrf.mxu0
      %v1077 = vadd.f32 %v897, %v1076
      %v1078 = vpop.f32.mrf.mxu0
      %v1079 = vadd.f32 %v897, %v1078
      %1080 = vmatmul.bf16.gmra.mxu0 %v856
      %v1081 = vpop.f32.mrf.mxu0
      %v1082 = vadd.f32 %v897, %v1081
      %v1083 = vpop.f32.mrf.mxu0
      %v1084 = vadd.f32 %v897, %v1083
      %1085 = vmatmul.bf16.gmra.mxu0 %v858
      %v1086 = vpop.f32.mrf.mxu0
      %v1087 = vadd.f32 %v897, %v1086
      %v1088 = vpop.f32.mrf.mxu0
      %v1089 = vadd.f32 %v897, %v1088
      %1090 = vmatmul.bf16.gmra.mxu0 %v860
      %v1091 = vpop.f32.mrf.mxu0
      %v1092 = vadd.f32 %v897, %v1091
      %v1093 = vpop.f32.mrf.mxu0
      %v1094 = vadd.f32 %v897, %v1093
      %1095 = vmatmul.bf16.gmra.mxu0 %v862
      %v1096 = vpop.f32.mrf.mxu0
      %v1097 = vadd.f32 %v897, %v1096
      %v1098 = vpop.f32.mrf.mxu0
      %v1099 = vadd.f32 %v897, %v1098
      %1100 = vmatmul.bf16.gmra.mxu0 %v864
      %v1101 = vpop.f32.mrf.mxu0
      %v1102 = vadd.f32 %v897, %v1101
      %v1103 = vpop.f32.mrf.mxu0
      %v1104 = vadd.f32 %v897, %v1103
      %1105 = vmatmul.bf16.gmra.mxu0 %v866
      %v1106 = vpop.f32.mrf.mxu0
      %v1107 = vadd.f32 %v897, %v1106
      %v1108 = vpop.f32.mrf.mxu0
      %v1109 = vadd.f32 %v897, %v1108
      %1110 = vmatmul.bf16.gmra.mxu0 %v868
      %v1111 = vpop.f32.mrf.mxu0
      %v1112 = vadd.f32 %v897, %v1111
      %v1113 = vpop.f32.mrf.mxu0
      %v1114 = vadd.f32 %v897, %v1113
      %1115 = vdwg.mxu0
      %1116 = vmatpush.bf16.msra.mxu0 0
      %1117 = vmatpush.bf16.msra.mxu0 0
      %1118 = vmatpush.bf16.msra.mxu0 0
      %1119 = vmatpush.bf16.msra.mxu0 %v1025
      %1120 = vmatpush.bf16.msra.mxu0 %v960
      %1121 = vmatpush.bf16.msra.mxu0 %v959
      %1122 = vmatpush.bf16.msra.mxu0 %v958
      %1123 = vmatpush.bf16.msra.mxu0 %v957
      %1124 = vmatmul.bf16.gmra.mxu0 %v976
      %v1125 = vpop.f32.mrf.mxu0
      %v1126 = vadd.f32 %v1037, %v1125
      %v1127 = vpop.f32.mrf.mxu0
      %v1128 = vadd.f32 %v1039, %v1127
      %1129 = vmatmul.bf16.gmra.mxu0 %v979
      %v1130 = vpop.f32.mrf.mxu0
      %v1131 = vadd.f32 %v1042, %v1130
      %v1132 = vpop.f32.mrf.mxu0
      %v1133 = vadd.f32 %v1044, %v1132
      %1134 = vmatmul.bf16.gmra.mxu0 %v982
      %v1135 = vpop.f32.mrf.mxu0
      %v1136 = vadd.f32 %v1047, %v1135
      %v1137 = vpop.f32.mrf.mxu0
      %v1138 = vadd.f32 %v1049, %v1137
      %1139 = vmatmul.bf16.gmra.mxu0 %v985
      %v1140 = vpop.f32.mrf.mxu0
      %v1141 = vadd.f32 %v1052, %v1140
      %v1142 = vpop.f32.mrf.mxu0
      %v1143 = vadd.f32 %v1054, %v1142
      %1144 = vmatmul.bf16.gmra.mxu0 %v988
      %v1145 = vpop.f32.mrf.mxu0
      %v1146 = vadd.f32 %v1057, %v1145
      %v1147 = vpop.f32.mrf.mxu0
      %v1148 = vadd.f32 %v1059, %v1147
      %1149 = vmatmul.bf16.gmra.mxu0 %v991
      %v1150 = vpop.f32.mrf.mxu0
      %v1151 = vadd.f32 %v1062, %v1150
      %v1152 = vpop.f32.mrf.mxu0
      %v1153 = vadd.f32 %v1064, %v1152
      %1154 = vmatmul.bf16.gmra.mxu0 %v994
      %v1155 = vpop.f32.mrf.mxu0
      %v1156 = vadd.f32 %v1067, %v1155
      %v1157 = vpop.f32.mrf.mxu0
      %v1158 = vadd.f32 %v1069, %v1157
      %1159 = vmatmul.bf16.gmra.mxu0 %v997
      %v1160 = vpop.f32.mrf.mxu0
      %v1161 = vadd.f32 %v1072, %v1160
      %v1162 = vpop.f32.mrf.mxu0
      %v1163 = vadd.f32 %v1074, %v1162
      %1164 = vmatmul.bf16.gmra.mxu0 %v1000
      %v1165 = vpop.f32.mrf.mxu0
      %v1166 = vadd.f32 %v1077, %v1165
      %v1167 = vpop.f32.mrf.mxu0
      %v1168 = vadd.f32 %v1079, %v1167
      %1169 = vmatmul.bf16.gmra.mxu0 %v1003
      %v1170 = vpop.f32.mrf.mxu0
      %v1171 = vadd.f32 %v1082, %v1170
      %v1172 = vpop.f32.mrf.mxu0
      %v1173 = vadd.f32 %v1084, %v1172
      %1174 = vmatmul.bf16.gmra.mxu0 %v1006
      %v1175 = vpop.f32.mrf.mxu0
      %v1176 = vadd.f32 %v1087, %v1175
      %v1177 = vpop.f32.mrf.mxu0
      %v1178 = vadd.f32 %v1089, %v1177
      %1179 = vmatmul.bf16.gmra.mxu0 %v1009
      %v1180 = vpop.f32.mrf.mxu0
      %v1181 = vadd.f32 %v1092, %v1180
      %v1182 = vpop.f32.mrf.mxu0
      %v1183 = vadd.f32 %v1094, %v1182
      %1184 = vmatmul.bf16.gmra.mxu0 %v1012
      %v1185 = vpop.f32.mrf.mxu0
      %v1186 = vadd.f32 %v1097, %v1185
      %v1187 = vpop.f32.mrf.mxu0
      %v1188 = vadd.f32 %v1099, %v1187
      %1189 = vmatmul.bf16.gmra.mxu0 %v1015
      %v1190 = vpop.f32.mrf.mxu0
      %v1191 = vadd.f32 %v1102, %v1190
      %v1192 = vpop.f32.mrf.mxu0
      %v1193 = vadd.f32 %v1104, %v1192
      %1194 = vmatmul.bf16.gmra.mxu0 %v1018
      %v1195 = vpop.f32.mrf.mxu0
      %v1196 = vadd.f32 %v1107, %v1195
      %v1197 = vpop.f32.mrf.mxu0
      %v1198 = vadd.f32 %v1109, %v1197
      %1199 = vmatmul.bf16.gmra.mxu0 %v1021
      %v1200 = vpop.f32.mrf.mxu0
      %v1201 = vadd.f32 %v1112, %v1200
      %v1202 = vpop.f32.mrf.mxu0
      %v1203 = vadd.f32 %v1114, %v1202
      %1204 = vdwg.mxu0
      %1205 = vst [vmem:[%s224] sm:$0xff] %v1126
      %1206 = vst [vmem:[%s224 + $0x8] sm:$0xff] %v1128
      %1207 = vst [vmem:[%s224 + $0x10] sm:$0xff] %v1131
      %1208 = vst [vmem:[%s224 + $0x18] sm:$0xff] %v1133
      %1209 = vst [vmem:[%s224 + $0x20] sm:$0xff] %v1136
      %1210 = vst [vmem:[%s224 + $0x28] sm:$0xff] %v1138
      %1211 = vst [vmem:[%s224 + $0x30] sm:$0xff] %v1141
      %1212 = vst [vmem:[%s224 + $0x38] sm:$0xff] %v1143
      %1213 = vst [vmem:[%s224 + $0x40] sm:$0xff] %v1146
      %1214 = vst [vmem:[%s224 + $0x48] sm:$0xff] %v1148
      %1215 = vst [vmem:[%s224 + $0x50] sm:$0xff] %v1151
      %1216 = vst [vmem:[%s224 + $0x58] sm:$0xff] %v1153
      %1217 = vst [vmem:[%s224 + $0x60] sm:$0xff] %v1156
      %1218 = vst [vmem:[%s224 + $0x68] sm:$0xff] %v1158
      %1219 = vst [vmem:[%s224 + $0x70] sm:$0xff] %v1161
      %1220 = vst [vmem:[%s224 + $0x78] sm:$0xff] %v1163
      %1221 = vst [vmem:[%s224 + $0x80] sm:$0xff] %v1166
      %1222 = vst [vmem:[%s224 + $0x88] sm:$0xff] %v1168
      %1223 = vst [vmem:[%s224 + $0x90] sm:$0xff] %v1171
      %1224 = vst [vmem:[%s224 + $0x98] sm:$0xff] %v1173
      %1225 = vst [vmem:[%s224 + $0xa0] sm:$0xff] %v1176
      %1226 = vst [vmem:[%s224 + $0xa8] sm:$0xff] %v1178
      %1227 = vst [vmem:[%s224 + $0xb0] sm:$0xff] %v1181
      %1228 = vst [vmem:[%s224 + $0xb8] sm:$0xff] %v1183
      %1229 = vst [vmem:[%s224 + $0xc0] sm:$0xff] %v1186
      %1230 = vst [vmem:[%s224 + $0xc8] sm:$0xff] %v1188
      %1231 = vst [vmem:[%s224 + $0xd0] sm:$0xff] %v1191
      %1232 = vst [vmem:[%s224 + $0xd8] sm:$0xff] %v1193
      %1233 = vst [vmem:[%s224 + $0xe0] sm:$0xff] %v1196
      %1234 = vst [vmem:[%s224 + $0xe8] sm:$0xff] %v1198
      %1235 = vst [vmem:[%s224 + $0xf0] sm:$0xff] %v1201
      %1236 = vst [vmem:[%s224 + $0xf8] sm:$0xff] %v1203
      %s1237 = smul.u32 32, %s15
      %p1238 = scmp.lt.s32.totalorder %s1237, 63
      %s1239 = scalar_select %p1238, %s1237, 63
      %s1240 = smul.addr %s1239, 8
      %s1241 = scalar_lea.vmem %s4, %s1240
      // Predicated region
      $region37: #{content_encoder_forward.17} parent=35 // pred_check
        %p1242 = pneg %p127
      $region38: #{content_encoder_forward.17} parent=35 // pred_check_branch
        %1244 = sbr.rel (%p1242) target = $region40
      $region39: #{content_encoder_forward.17} parent=35 // pred_region
        %s1245 = smul.u32 32, %s15
      $region40: #{content_encoder_forward.17} parent=35 // pred_fallthru
        _
    $region36: #{content_encoder_forward.17} parent=5 // pred_fallthru
      _
    %p1246 = scmp.le.s32.totalorder 2, %s10
    // Predicated region
    $region41: #{content_encoder_forward.17} parent=5 // pred_check
      %p1247 = pneg %p1246
    $region42: #{content_encoder_forward.17} parent=5 // pred_check_branch
      %1249 = sbr.rel (%p1247) target = $region44
    $region43: #{content_encoder_forward.17} parent=5 // pred_region
      %s1250 = ssub.s32 %s10, 2
      // Predicated region
      $region45: #{content_encoder_forward.17} parent=43 // pred_check
        %p1251 = pneg %p133
      $region46: #{content_encoder_forward.17} parent=43 // pred_check_branch
        %1253 = sbr.rel (%p1251) target = $region48
      $region47: #{content_encoder_forward.17} parent=43 // pred_region
        %s1254 = smul.u32 32, %s16
        %p1255 = scmp.lt.s32.totalorder %s1254, 63
        %s1256 = scalar_select %p1255, %s1254, 63
        %s1257 = smul.addr %s1256, 8
        %s1258 = scalar_lea.vmem %s4, %s1257
      $region48: #{content_encoder_forward.17} parent=43 // pred_fallthru
        _
    $region44: #{content_encoder_forward.17} parent=5 // pred_fallthru
      _
  $region6: #{content_encoder_forward.17} parent=0 // loop_footer
    %s14 = sadd.s32 1, %s10
  $region7: #{content_encoder_forward.17} parent=0 // loop_footer_branch
    %9 = sbr.rel target = $region3
  $region8: #{content_encoder_forward.17} parent=0 // loop_exit
    _

// kernel: content_encoder_forward.18
$region0: #{content_encoder_forward.18}
  #allocation0 [shape = 'u32[]', space=smem, size = 0x4, offset = 0x4, fixed_abs, tag = 'smem constant byte address 0x4 - core index']
  #allocation1 [shape = 'u32[72,128]{1,0:T(1,128)}', space=vmem, size = 0x9000, scoped, tag = 'internal scratch']
  %s0 = inlined_call_operand.vmem [shape: f32[2,256,4], index: 0, kind: input, shape index: {}]
  %s1 = inlined_call_operand.vmem [shape: f32[2,256,4], index: 1, kind: output, shape index: {}]
  %s2 = sld [smem:[#allocation0]]
  $region37: #{content_encoder_forward.18} parent=0
    _
  %s4 = ssub.s32 1, %s2
  %s5 = scalar_select 0, %s4, %s2
  loop: start=0, step=1, limit=4
  $region2: #{content_encoder_forward.18} parent=0 // loop_pre_header
    _
  $region3: #{content_encoder_forward.18} parent=0 // loop_header
    %s7 = sphi 0, %s11
    %p8 = scmp.ge.s32.totalorder %s7, 4
    %s17 = sphi 0, %s19
    %s20 = sphi 0, %s17
    %s21 = sphi 0, %s20
    %s37 = sphi 0, %s21
    %s43 = sphi 0, %s45
    %s46 = sphi 0, %s43
    %s47 = sphi 0, %s46
    %s63 = sphi 0, %s47
  $region4: #{content_encoder_forward.18} parent=0 // loop_header_branch
    %10 = sbr.rel (%p8) target = $region8
  $region5: #{content_encoder_forward.18} parent=0 // loop_body
    %s12 = ssub.s32 %s7, 1
    %s13 = ssub.s32 %s7, 2
    %s14 = sadd.s32 %s7, 1
    %s15 = ssub.s32 %s7, %s14
    %p16 = scmp.eq.s32.totalorder %s15, 0
    %s18 = sadd.s32 %s17, 1
    %s19 = scalar_select %p16, %s17, %s18
    %p22 = pneg %p16
    %p23 = scmp.eq.s32.totalorder %s7, 1
    %p24 = por %p22, %p23
    %p25 = scmp.ne.s32.totalorder %s17, %s20
    %p26 = scmp.eq.s32.totalorder %s7, 0
    %p27 = por %p25, %p26
    %p28 = scmp.ne.s32.totalorder %s17, %s20
    %p29 = scmp.eq.s32.totalorder %s12, 1
    %p30 = por %p28, %p29
    %p31 = scmp.ne.s32.totalorder %s20, %s21
    %p32 = scmp.eq.s32.totalorder %s12, 0
    %p33 = por %p31, %p32
    %p34 = scmp.ne.s32.totalorder %s20, %s21
    %p35 = scmp.eq.s32.totalorder %s13, 1
    %p36 = por %p34, %p35
    %p38 = scmp.ne.s32.totalorder %s21, %s37
    %p39 = scmp.eq.s32.totalorder %s13, 0
    %p40 = por %p38, %p39
    %s41 = ssub.s32 %s7, %s14
    %p42 = scmp.eq.s32.totalorder %s41, 0
    %s44 = sadd.s32 %s43, 1
    %s45 = scalar_select %p42, %s43, %s44
    %p48 = pneg %p42
    %p49 = scmp.eq.s32.totalorder %s7, 1
    %p50 = por %p48, %p49
    %p51 = scmp.ne.s32.totalorder %s43, %s46
    %p52 = scmp.eq.s32.totalorder %s7, 0
    %p53 = por %p51, %p52
    %p54 = scmp.ne.s32.totalorder %s43, %s46
    %p55 = scmp.eq.s32.totalorder %s12, 1
    %p56 = por %p54, %p55
    %p57 = scmp.ne.s32.totalorder %s46, %s47
    %p58 = scmp.eq.s32.totalorder %s12, 0
    %p59 = por %p57, %p58
    %p60 = scmp.ne.s32.totalorder %s46, %s47
    %p61 = scmp.eq.s32.totalorder %s13, 1
    %p62 = por %p60, %p61
    %p64 = scmp.ne.s32.totalorder %s47, %s63
    %p65 = scmp.eq.s32.totalorder %s13, 0
    %p66 = por %p64, %p65
    %p67 = scmp.le.s32.totalorder 1, %s7
    %p68 = scmp.lt.s32.totalorder %s7, 3
    %p69 = pnand %p67, %p68
    %p70 = pneg %p69
    // Predicated region
    $region9: #{content_encoder_forward.18} parent=5 // pred_check
      _
    $region10: #{content_encoder_forward.18} parent=5 // pred_check_branch
      %72 = sbr.rel (%p69) target = $region12
    $region11: #{content_encoder_forward.18} parent=5 // pred_region
      %s73 = ssub.s32 %s7, 1
    $region12: #{content_encoder_forward.18} parent=5 // pred_fallthru
      _
    %p74 = scmp.lt.s32.totalorder %s7, 2
    // Predicated region
    $region13: #{content_encoder_forward.18} parent=5 // pred_check
      %p75 = pneg %p74
    $region14: #{content_encoder_forward.18} parent=5 // pred_check_branch
      %77 = sbr.rel (%p75) target = $region16
    $region15: #{content_encoder_forward.18} parent=5 // pred_region
      // Predicated region
      $region17: #{content_encoder_forward.18} parent=15 // pred_check
        %p78 = pneg %p27
      $region18: #{content_encoder_forward.18} parent=15 // pred_check_branch
        %80 = sbr.rel (%p78) target = $region20
      $region19: #{content_encoder_forward.18} parent=15 // pred_region
        %p81 = scmp.lt.s32.totalorder %s7, 1
        %s82 = scalar_select %p81, %s7, 1
        %s83 = smul.addr %s82, 32
        %s84 = smul.addr %s83, 8
        %s85 = scalar_lea.vmem %s0, %s84
      $region20: #{content_encoder_forward.18} parent=15 // pred_fallthru
        _
    $region16: #{content_encoder_forward.18} parent=5 // pred_fallthru
      _
    %p86 = scmp.le.s32.totalorder 1, %s7
    %p87 = scmp.lt.s32.totalorder %s7, 3
    %p88 = pnand %p86, %p87
    %p89 = pneg %p88
    // Predicated region
    $region21: #{content_encoder_forward.18} parent=5 // pred_check
      _
    $region22: #{content_encoder_forward.18} parent=5 // pred_check_branch
      %91 = sbr.rel (%p88) target = $region24
    $region23: #{content_encoder_forward.18} parent=5 // pred_region
      %s92 = ssub.s32 %s7, 1
      %p93 = scmp.lt.s32.totalorder %s12, 1
      %s94 = scalar_select %p93, %s12, 1
      %s95 = smul.addr %s94, 32
      %s96 = smul.addr %s95, 8
      %s97 = scalar_lea.vmem %s0, %s96
      %p98 = pneg %p33
      %p99 = pneg %p30
      %p100 = pneg %p59
      %p101 = pneg %p56
      %p102 = scmp.lt.s32.totalorder %s12, 1
      %s103 = scalar_select %p102, %s12, 1
      %s104 = smul.addr %s103, 32
      %s105 = smul.addr %s104, 8
      %s106 = scalar_lea.vmem %s1, %s105
      %p107 = scmp.lt.s32.totalorder %s12, 1
      %s108 = scalar_select %p107, %s12, 1
      %s109 = smul.addr %s108, 32
      %s110 = smul.addr %s109, 8
      %s111 = scalar_lea.vmem %s0, %s110
      %p112 = scmp.lt.s32.totalorder %s12, 1
      %s113 = scalar_select %p112, %s12, 1
      %s114 = smul.addr %s113, 32
      %s115 = smul.addr %s114, 8
      %s116 = scalar_lea.vmem %s1, %s115
      %v117 = vld [vmem:[%s111] sm:$0xff]
      %v118 = vld [vmem:[%s111 + $0x8] sm:$0xff]
      %v119 = vld [vmem:[%s111 + $0x10] sm:$0xff]
      %v120 = vld [vmem:[%s111 + $0x18] sm:$0xff]
      %v121 = vld [vmem:[%s111 + $0x20] sm:$0xff]
      %v122 = vld [vmem:[%s111 + $0x28] sm:$0xff]
      %v123 = vld [vmem:[%s111 + $0x30] sm:$0xff]
      %v124 = vld [vmem:[%s111 + $0x38] sm:$0xff]
      %v125 = vld [vmem:[%s111 + $0x40] sm:$0xff]
      %v126 = vld [vmem:[%s111 + $0x48] sm:$0xff]
      %v127 = vld [vmem:[%s111 + $0x50] sm:$0xff]
      %v128 = vld [vmem:[%s111 + $0x58] sm:$0xff]
      %v129 = vld [vmem:[%s111 + $0x60] sm:$0xff]
      %v130 = vld [vmem:[%s111 + $0x68] sm:$0xff]
      %v131 = vld [vmem:[%s111 + $0x70] sm:$0xff]
      %v132 = vld [vmem:[%s111 + $0x78] sm:$0xff]
      %v133 = vld [vmem:[%s111 + $0x80] sm:$0xff]
      %v134 = vld [vmem:[%s111 + $0x88] sm:$0xff]
      %v135 = vld [vmem:[%s111 + $0x90] sm:$0xff]
      %v136 = vld [vmem:[%s111 + $0x98] sm:$0xff]
      %v137 = vld [vmem:[%s111 + $0xa0] sm:$0xff]
      %v138 = vld [vmem:[%s111 + $0xa8] sm:$0xff]
      %v139 = vld [vmem:[%s111 + $0xb0] sm:$0xff]
      %v140 = vld [vmem:[%s111 + $0xb8] sm:$0xff]
      %v141 = vld [vmem:[%s111 + $0xc0] sm:$0xff]
      %v142 = vld [vmem:[%s111 + $0xc8] sm:$0xff]
      %v143 = vld [vmem:[%s111 + $0xd0] sm:$0xff]
      %v144 = vld [vmem:[%s111 + $0xd8] sm:$0xff]
      %v145 = vld [vmem:[%s111 + $0xe0] sm:$0xff]
      %v146 = vld [vmem:[%s111 + $0xe8] sm:$0xff]
      %v147 = vld [vmem:[%s111 + $0xf0] sm:$0xff]
      %v148 = vld [vmem:[%s111 + $0xf8] sm:$0xff]
      %vm149 = vcmask 31744
      %v150 = vsel %vm149, %v117, 0.0
      %v151 = vsel %vm149, %v118, 0.0
      %v152 = vadd.f32 %v150, %v151
      %v153 = vsel %vm149, %v119, 0.0
      %v154 = vadd.f32 %v152, %v153
      %v155 = vsel %vm149, %v120, 0.0
      %v156 = vadd.f32 %v154, %v155
      %v157 = vsel %vm149, %v121, 0.0
      %v158 = vadd.f32 %v156, %v157
      %v159 = vsel %vm149, %v122, 0.0
      %v160 = vadd.f32 %v158, %v159
      %v161 = vsel %vm149, %v123, 0.0
      %v162 = vadd.f32 %v160, %v161
      %v163 = vsel %vm149, %v124, 0.0
      %v164 = vadd.f32 %v162, %v163
      %v165 = vsel %vm149, %v125, 0.0
      %v166 = vadd.f32 %v164, %v165
      %v167 = vsel %vm149, %v126, 0.0
      %v168 = vadd.f32 %v166, %v167
      %v169 = vsel %vm149, %v127, 0.0
      %v170 = vadd.f32 %v168, %v169
      %v171 = vsel %vm149, %v128, 0.0
      %v172 = vadd.f32 %v170, %v171
      %v173 = vsel %vm149, %v129, 0.0
      %v174 = vadd.f32 %v172, %v173
      %v175 = vsel %vm149, %v130, 0.0
      %v176 = vadd.f32 %v174, %v175
      %v177 = vsel %vm149, %v131, 0.0
      %v178 = vadd.f32 %v176, %v177
      %v179 = vsel %vm149, %v132, 0.0
      %v180 = vadd.f32 %v178, %v179
      %v181 = vsel %vm149, %v133, 0.0
      %v182 = vadd.f32 %v180, %v181
      %v183 = vsel %vm149, %v134, 0.0
      %v184 = vadd.f32 %v182, %v183
      %v185 = vsel %vm149, %v135, 0.0
      %v186 = vadd.f32 %v184, %v185
      %v187 = vsel %vm149, %v136, 0.0
      %v188 = vadd.f32 %v186, %v187
      %v189 = vsel %vm149, %v137, 0.0
      %v190 = vadd.f32 %v188, %v189
      %v191 = vsel %vm149, %v138, 0.0
      %v192 = vadd.f32 %v190, %v191
      %v193 = vsel %vm149, %v139, 0.0
      %v194 = vadd.f32 %v192, %v193
      %v195 = vsel %vm149, %v140, 0.0
      %v196 = vadd.f32 %v194, %v195
      %v197 = vsel %vm149, %v141, 0.0
      %v198 = vadd.f32 %v196, %v197
      %v199 = vsel %vm149, %v142, 0.0
      %v200 = vadd.f32 %v198, %v199
      %v201 = vsel %vm149, %v143, 0.0
      %v202 = vadd.f32 %v200, %v201
      %v203 = vsel %vm149, %v144, 0.0
      %v204 = vadd.f32 %v202, %v203
      %v205 = vsel %vm149, %v145, 0.0
      %v206 = vadd.f32 %v204, %v205
      %v207 = vsel %vm149, %v146, 0.0
      %v208 = vadd.f32 %v206, %v207
      %v209 = vsel %vm149, %v147, 0.0
      %v210 = vadd.f32 %v208, %v209
      %v211 = vsel %vm149, %v148, 0.0
      %v212 = vadd.f32 %v210, %v211
      %v213 = vrot.slane %v212, 4
      %v214 = vadd.f32 %v212, %v213
      %v215 = vrot.slane %v214, 2
      %v216 = vadd.f32 %v214, %v215
      %v217 = vrot.slane %v216, 1
      %v218 = vadd.f32 %v216, %v217
      %v219 = vrcp.pop 256.0
      %v220 = vmul.f32 256.0, %v219
      %v221 = vsub.f32 1.0, %v220
      %v222 = vmul.f32 %v219, %v221
      %v223 = vadd.f32 %v219, %v222
      %vm224 = vweird.f32 %v219
      %v225 = vsel %vm224, %v219, %v223
      %v226 = vmul.f32 %v218, %v225
      %v227 = vsub.f32 %v117, %v226
      %v228 = vsub.f32 %v118, %v226
      %v229 = vsub.f32 %v119, %v226
      %v230 = vsub.f32 %v120, %v226
      %v231 = vsub.f32 %v121, %v226
      %v232 = vsub.f32 %v122, %v226
      %v233 = vsub.f32 %v123, %v226
      %v234 = vsub.f32 %v124, %v226
      %v235 = vsub.f32 %v125, %v226
      %v236 = vsub.f32 %v126, %v226
      %v237 = vsub.f32 %v127, %v226
      %v238 = vsub.f32 %v128, %v226
      %v239 = vsub.f32 %v129, %v226
      %v240 = vsub.f32 %v130, %v226
      %v241 = vsub.f32 %v131, %v226
      %v242 = vsub.f32 %v132, %v226
      %v243 = vsub.f32 %v133, %v226
      %v244 = vsub.f32 %v134, %v226
      %v245 = vsub.f32 %v135, %v226
      %v246 = vsub.f32 %v136, %v226
      %v247 = vsub.f32 %v137, %v226
      %v248 = vsub.f32 %v138, %v226
      %v249 = vsub.f32 %v139, %v226
      %v250 = vsub.f32 %v140, %v226
      %v251 = vsub.f32 %v141, %v226
      %v252 = vsub.f32 %v142, %v226
      %v253 = vsub.f32 %v143, %v226
      %v254 = vsub.f32 %v144, %v226
      %v255 = vsub.f32 %v145, %v226
      %v256 = vsub.f32 %v146, %v226
      %v257 = vsub.f32 %v147, %v226
      %v258 = vsub.f32 %v148, %v226
      %v259 = vmul.f32 %v227, %v227
      %v260 = vmul.f32 %v228, %v228
      %v261 = vmul.f32 %v229, %v229
      %v262 = vmul.f32 %v230, %v230
      %v263 = vmul.f32 %v231, %v231
      %v264 = vmul.f32 %v232, %v232
      %v265 = vmul.f32 %v233, %v233
      %v266 = vmul.f32 %v234, %v234
      %v267 = vmul.f32 %v235, %v235
      %v268 = vmul.f32 %v236, %v236
      %v269 = vmul.f32 %v237, %v237
      %v270 = vmul.f32 %v238, %v238
      %v271 = vmul.f32 %v239, %v239
      %v272 = vmul.f32 %v240, %v240
      %v273 = vmul.f32 %v241, %v241
      %v274 = vmul.f32 %v242, %v242
      %v275 = vmul.f32 %v243, %v243
      %v276 = vmul.f32 %v244, %v244
      %v277 = vmul.f32 %v245, %v245
      %v278 = vmul.f32 %v246, %v246
      %v279 = vmul.f32 %v247, %v247
      %v280 = vmul.f32 %v248, %v248
      %v281 = vmul.f32 %v249, %v249
      %v282 = vmul.f32 %v250, %v250
      %v283 = vmul.f32 %v251, %v251
      %v284 = vmul.f32 %v252, %v252
      %v285 = vmul.f32 %v253, %v253
      %v286 = vmul.f32 %v254, %v254
      %v287 = vmul.f32 %v255, %v255
      %v288 = vmul.f32 %v256, %v256
      %v289 = vmul.f32 %v257, %v257
      %v290 = vmul.f32 %v258, %v258
      %v291 = vsel %vm149, %v259, 0.0
      %v292 = vsel %vm149, %v260, 0.0
      %v293 = vadd.f32 %v291, %v292
      %v294 = vsel %vm149, %v261, 0.0
      %v295 = vadd.f32 %v293, %v294
      %v296 = vsel %vm149, %v262, 0.0
      %v297 = vadd.f32 %v295, %v296
      %v298 = vsel %vm149, %v263, 0.0
      %v299 = vadd.f32 %v297, %v298
      %v300 = vsel %vm149, %v264, 0.0
      %v301 = vadd.f32 %v299, %v300
      %v302 = vsel %vm149, %v265, 0.0
      %v303 = vadd.f32 %v301, %v302
      %v304 = vsel %vm149, %v266, 0.0
      %v305 = vadd.f32 %v303, %v304
      %v306 = vsel %vm149, %v267, 0.0
      %v307 = vadd.f32 %v305, %v306
      %v308 = vsel %vm149, %v268, 0.0
      %v309 = vadd.f32 %v307, %v308
      %v310 = vsel %vm149, %v269, 0.0
      %v311 = vadd.f32 %v309, %v310
      %v312 = vsel %vm149, %v270, 0.0
      %v313 = vadd.f32 %v311, %v312
      %v314 = vsel %vm149, %v271, 0.0
      %v315 = vadd.f32 %v313, %v314
      %v316 = vsel %vm149, %v272, 0.0
      %v317 = vadd.f32 %v315, %v316
      %v318 = vsel %vm149, %v273, 0.0
      %v319 = vadd.f32 %v317, %v318
      %v320 = vsel %vm149, %v274, 0.0
      %v321 = vadd.f32 %v319, %v320
      %v322 = vsel %vm149, %v275, 0.0
      %v323 = vadd.f32 %v321, %v322
      %v324 = vsel %vm149, %v276, 0.0
      %v325 = vadd.f32 %v323, %v324
      %v326 = vsel %vm149, %v277, 0.0
      %v327 = vadd.f32 %v325, %v326
      %v328 = vsel %vm149, %v278, 0.0
      %v329 = vadd.f32 %v327, %v328
      %v330 = vsel %vm149, %v279, 0.0
      %v331 = vadd.f32 %v329, %v330
      %v332 = vsel %vm149, %v280, 0.0
      %v333 = vadd.f32 %v331, %v332
      %v334 = vsel %vm149, %v281, 0.0
      %v335 = vadd.f32 %v333, %v334
      %v336 = vsel %vm149, %v282, 0.0
      %v337 = vadd.f32 %v335, %v336
      %v338 = vsel %vm149, %v283, 0.0
      %v339 = vadd.f32 %v337, %v338
      %v340 = vsel %vm149, %v284, 0.0
      %v341 = vadd.f32 %v339, %v340
      %v342 = vsel %vm149, %v285, 0.0
      %v343 = vadd.f32 %v341, %v342
      %v344 = vsel %vm149, %v286, 0.0
      %v345 = vadd.f32 %v343, %v344
      %v346 = vsel %vm149, %v287, 0.0
      %v347 = vadd.f32 %v345, %v346
      %v348 = vsel %vm149, %v288, 0.0
      %v349 = vadd.f32 %v347, %v348
      %v350 = vsel %vm149, %v289, 0.0
      %v351 = vadd.f32 %v349, %v350
      %v352 = vsel %vm149, %v290, 0.0
      %v353 = vadd.f32 %v351, %v352
      %v354 = vrot.slane %v353, 4
      %v355 = vadd.f32 %v353, %v354
      %v356 = vrot.slane %v355, 2
      %v357 = vadd.f32 %v355, %v356
      %v358 = vrot.slane %v357, 1
      %v359 = vadd.f32 %v357, %v358
      %v360 = vmul.f32 %v359, %v225
      %v361 = vadd.f32 %v360, 1e-05
      %v362 = vrsqrt.pop %v361
      %v363 = vmul.f32 %v362, %v361
      %v364 = vmul.f32 %v363, %v362
      %v365 = vmul.f32 0.5, %v364
      %v366 = vsub.f32 1.5, %v365
      %v367 = vmul.f32 %v362, %v366
      %vm368 = vweird.f32 %v361
      %vm369 = vweird.f32 %v362
      %vm370 = vmor %vm368, %vm369
      %v371 = vsel %vm370, %v362, %v367
      %v372 = vmul.f32 %v227, %v371
      %v373 = vmul.f32 %v228, %v371
      %v374 = vmul.f32 %v229, %v371
      %v375 = vmul.f32 %v230, %v371
      %v376 = vmul.f32 %v231, %v371
      %v377 = vmul.f32 %v232, %v371
      %v378 = vmul.f32 %v233, %v371
      %v379 = vmul.f32 %v234, %v371
      %v380 = vmul.f32 %v235, %v371
      %v381 = vmul.f32 %v236, %v371
      %v382 = vmul.f32 %v237, %v371
      %v383 = vmul.f32 %v238, %v371
      %v384 = vmul.f32 %v239, %v371
      %v385 = vmul.f32 %v240, %v371
      %v386 = vmul.f32 %v241, %v371
      %v387 = vmul.f32 %v242, %v371
      %v388 = vmul.f32 %v243, %v371
      %v389 = vmul.f32 %v244, %v371
      %v390 = vmul.f32 %v245, %v371
      %v391 = vmul.f32 %v246, %v371
      %v392 = vmul.f32 %v247, %v371
      %v393 = vmul.f32 %v248, %v371
      %v394 = vmul.f32 %v249, %v371
      %v395 = vmul.f32 %v250, %v371
      %v396 = vmul.f32 %v251, %v371
      %v397 = vmul.f32 %v252, %v371
      %v398 = vmul.f32 %v253, %v371
      %v399 = vmul.f32 %v254, %v371
      %v400 = vmul.f32 %v255, %v371
      %v401 = vmul.f32 %v256, %v371
      %v402 = vmul.f32 %v257, %v371
      %v403 = vmul.f32 %v258, %v371
      %v404 = vmax.f32 %v372, 0.0
      %v405 = vmax.f32 %v373, 0.0
      %v406 = vmax.f32 %v374, 0.0
      %v407 = vmax.f32 %v375, 0.0
      %v408 = vmax.f32 %v376, 0.0
      %v409 = vmax.f32 %v377, 0.0
      %v410 = vmax.f32 %v378, 0.0
      %v411 = vmax.f32 %v379, 0.0
      %v412 = vmax.f32 %v380, 0.0
      %v413 = vmax.f32 %v381, 0.0
      %v414 = vmax.f32 %v382, 0.0
      %v415 = vmax.f32 %v383, 0.0
      %v416 = vmax.f32 %v384, 0.0
      %v417 = vmax.f32 %v385, 0.0
      %v418 = vmax.f32 %v386, 0.0
      %v419 = vmax.f32 %v387, 0.0
      %v420 = vmax.f32 %v388, 0.0
      %v421 = vmax.f32 %v389, 0.0
      %v422 = vmax.f32 %v390, 0.0
      %v423 = vmax.f32 %v391, 0.0
      %v424 = vmax.f32 %v392, 0.0
      %v425 = vmax.f32 %v393, 0.0
      %v426 = vmax.f32 %v394, 0.0
      %v427 = vmax.f32 %v395, 0.0
      %v428 = vmax.f32 %v396, 0.0
      %v429 = vmax.f32 %v397, 0.0
      %v430 = vmax.f32 %v398, 0.0
      %v431 = vmax.f32 %v399, 0.0
      %v432 = vmax.f32 %v400, 0.0
      %v433 = vmax.f32 %v401, 0.0
      %v434 = vmax.f32 %v402, 0.0
      %v435 = vmax.f32 %v403, 0.0
      %436 = vst.msk [vmem:[%s116] sm:$0xff] %vm149, %v404
      %437 = vst.msk [vmem:[%s116 + $0x8] sm:$0xff] %vm149, %v405
      %438 = vst.msk [vmem:[%s116 + $0x10] sm:$0xff] %vm149, %v406
      %439 = vst.msk [vmem:[%s116 + $0x18] sm:$0xff] %vm149, %v407
      %440 = vst.msk [vmem:[%s116 + $0x20] sm:$0xff] %vm149, %v408
      %441 = vst.msk [vmem:[%s116 + $0x28] sm:$0xff] %vm149, %v409
      %442 = vst.msk [vmem:[%s116 + $0x30] sm:$0xff] %vm149, %v410
      %443 = vst.msk [vmem:[%s116 + $0x38] sm:$0xff] %vm149, %v411
      %444 = vst.msk [vmem:[%s116 + $0x40] sm:$0xff] %vm149, %v412
      %445 = vst.msk [vmem:[%s116 + $0x48] sm:$0xff] %vm149, %v413
      %446 = vst.msk [vmem:[%s116 + $0x50] sm:$0xff] %vm149, %v414
      %447 = vst.msk [vmem:[%s116 + $0x58] sm:$0xff] %vm149, %v415
      %448 = vst.msk [vmem:[%s116 + $0x60] sm:$0xff] %vm149, %v416
      %449 = vst.msk [vmem:[%s116 + $0x68] sm:$0xff] %vm149, %v417
      %450 = vst.msk [vmem:[%s116 + $0x70] sm:$0xff] %vm149, %v418
      %451 = vst.msk [vmem:[%s116 + $0x78] sm:$0xff] %vm149, %v419
      %452 = vst.msk [vmem:[%s116 + $0x80] sm:$0xff] %vm149, %v420
      %453 = vst.msk [vmem:[%s116 + $0x88] sm:$0xff] %vm149, %v421
      %454 = vst.msk [vmem:[%s116 + $0x90] sm:$0xff] %vm149, %v422
      %455 = vst.msk [vmem:[%s116 + $0x98] sm:$0xff] %vm149, %v423
      %456 = vst.msk [vmem:[%s116 + $0xa0] sm:$0xff] %vm149, %v424
      %457 = vst.msk [vmem:[%s116 + $0xa8] sm:$0xff] %vm149, %v425
      %458 = vst.msk [vmem:[%s116 + $0xb0] sm:$0xff] %vm149, %v426
      %459 = vst.msk [vmem:[%s116 + $0xb8] sm:$0xff] %vm149, %v427
      %460 = vst.msk [vmem:[%s116 + $0xc0] sm:$0xff] %vm149, %v428
      %461 = vst.msk [vmem:[%s116 + $0xc8] sm:$0xff] %vm149, %v429
      %462 = vst.msk [vmem:[%s116 + $0xd0] sm:$0xff] %vm149, %v430
      %463 = vst.msk [vmem:[%s116 + $0xd8] sm:$0xff] %vm149, %v431
      %464 = vst.msk [vmem:[%s116 + $0xe0] sm:$0xff] %vm149, %v432
      %465 = vst.msk [vmem:[%s116 + $0xe8] sm:$0xff] %vm149, %v433
      %466 = vst.msk [vmem:[%s116 + $0xf0] sm:$0xff] %vm149, %v434
      %467 = vst.msk [vmem:[%s116 + $0xf8] sm:$0xff] %vm149, %v435
      %p468 = scmp.lt.s32.totalorder %s12, 1
      %s469 = scalar_select %p468, %s12, 1
      %s470 = smul.addr %s469, 32
      %s471 = smul.addr %s470, 8
      %s472 = scalar_lea.vmem %s1, %s471
      // Predicated region
      $region25: #{content_encoder_forward.18} parent=23 // pred_check
        %p473 = pneg %p56
      $region26: #{content_encoder_forward.18} parent=23 // pred_check_branch
        %475 = sbr.rel (%p473) target = $region28
      $region27: #{content_encoder_forward.18} parent=23 // pred_region
        _
      $region28: #{content_encoder_forward.18} parent=23 // pred_fallthru
        _
    $region24: #{content_encoder_forward.18} parent=5 // pred_fallthru
      _
    %p476 = scmp.le.s32.totalorder 2, %s7
    // Predicated region
    $region29: #{content_encoder_forward.18} parent=5 // pred_check
      %p477 = pneg %p476
    $region30: #{content_encoder_forward.18} parent=5 // pred_check_branch
      %479 = sbr.rel (%p477) target = $region32
    $region31: #{content_encoder_forward.18} parent=5 // pred_region
      %s480 = ssub.s32 %s7, 2
      // Predicated region
      $region33: #{content_encoder_forward.18} parent=31 // pred_check
        %p481 = pneg %p62
      $region34: #{content_encoder_forward.18} parent=31 // pred_check_branch
        %483 = sbr.rel (%p481) target = $region36
      $region35: #{content_encoder_forward.18} parent=31 // pred_region
        %p484 = scmp.lt.s32.totalorder %s13, 1
        %s485 = scalar_select %p484, %s13, 1
        %s486 = smul.addr %s485, 32
        %s487 = smul.addr %s486, 8
        %s488 = scalar_lea.vmem %s1, %s487
      $region36: #{content_encoder_forward.18} parent=31 // pred_fallthru
        _
    $region32: #{content_encoder_forward.18} parent=5 // pred_fallthru
      _
  $region6: #{content_encoder_forward.18} parent=0 // loop_footer
    %s11 = sadd.s32 1, %s7
  $region7: #{content_encoder_forward.18} parent=0 // loop_footer_branch
    %6 = sbr.rel target = $region3
  $region8: #{content_encoder_forward.18} parent=0 // loop_exit
    _

// kernel: content_encoder_forward.19
$region0: #{content_encoder_forward.19}
  #allocation0 [shape = 'u32[]', space=smem, size = 0x4, offset = 0x4, fixed_abs, tag = 'smem constant byte address 0x4 - core index']
  #allocation1 [shape = 'u32[72,128]{1,0:T(1,128)}', space=vmem, size = 0x9000, scoped, tag = 'internal scratch']
  %s0 = inlined_call_operand.vmem [shape: bf16[128,64], index: 0, kind: input, shape index: {}]
  %s1 = inlined_call_operand.vmem [shape: bf16[64,128], index: 1, kind: input, shape index: {}]
  %s2 = inlined_call_operand.vmem [shape: f32[1,128], index: 2, kind: input, shape index: {}]
  %s3 = inlined_call_operand.vmem [shape: f32[128,128], index: 3, kind: output, shape index: {}]
  %s4 = sld [smem:[#allocation0]]
  $region22: #{content_encoder_forward.19} parent=0
    _
  %s6 = ssub.s32 1, %s4
  %s7 = scalar_select 0, %s6, %s4
  // Predicated region
  $region2: #{content_encoder_forward.19} parent=0 // pred_check
    _
  $region3: #{content_encoder_forward.19} parent=0 // pred_check_branch
    %9 = sbr.rel (0) target = $region5
  $region4: #{content_encoder_forward.19} parent=0 // pred_region
    _
  $region5: #{content_encoder_forward.19} parent=0 // pred_fallthru
    _
  // Predicated region
  $region6: #{content_encoder_forward.19} parent=0 // pred_check
    _
  $region7: #{content_encoder_forward.19} parent=0 // pred_check_branch
    %11 = sbr.rel (0) target = $region9
  $region8: #{content_encoder_forward.19} parent=0 // pred_region
    _
  $region9: #{content_encoder_forward.19} parent=0 // pred_fallthru
    _
  // Predicated region
  $region10: #{content_encoder_forward.19} parent=0 // pred_check
    _
  $region11: #{content_encoder_forward.19} parent=0 // pred_check_branch
    %13 = sbr.rel (0) target = $region13
  $region12: #{content_encoder_forward.19} parent=0 // pred_region
    _
  $region13: #{content_encoder_forward.19} parent=0 // pred_fallthru
    _
  %v15 = vld [vmem:[%s0] sm:$0xf]
  %v16 = vld [vmem:[%s0 + $0x4] sm:$0xf]
  %v17 = vld [vmem:[%s0 + $0x8] sm:$0xf]
  %v18 = vld [vmem:[%s0 + $0xc] sm:$0xf]
  %v19 = vld [vmem:[%s0 + $0x10] sm:$0xf]
  %v20 = vld [vmem:[%s0 + $0x14] sm:$0xf]
  %v21 = vld [vmem:[%s0 + $0x18] sm:$0xf]
  %v22 = vld [vmem:[%s0 + $0x1c] sm:$0xf]
  %v23 = vld [vmem:[%s0 + $0x20] sm:$0xf]
  %v24 = vld [vmem:[%s0 + $0x24] sm:$0xf]
  %v25 = vld [vmem:[%s0 + $0x28] sm:$0xf]
  %v26 = vld [vmem:[%s0 + $0x2c] sm:$0xf]
  %v27 = vld [vmem:[%s0 + $0x30] sm:$0xf]
  %v28 = vld [vmem:[%s0 + $0x34] sm:$0xf]
  %v29 = vld [vmem:[%s0 + $0x38] sm:$0xf]
  %v30 = vld [vmem:[%s0 + $0x3c] sm:$0xf]
  %v31 = vld [vmem:[%s1] sm:$0xf]
  %v32 = vld [vmem:[%s1 + $0x4] sm:$0xf]
  %v33 = vld [vmem:[%s1 + $0x8] sm:$0xf]
  %v34 = vld [vmem:[%s1 + $0xc] sm:$0xf]
  %v35 = vld [vmem:[%s1 + $0x10] sm:$0xf]
  %v36 = vld [vmem:[%s1 + $0x14] sm:$0xf]
  %v37 = vld [vmem:[%s1 + $0x18] sm:$0xf]
  %v38 = vld [vmem:[%s1 + $0x1c] sm:$0xf]
  %v39 = vld [vmem:[%s2] sm:$0x1]
  %v41 = vperm.slane %v39, 0
  %v59 = vunpack.c.l.b16 %v15
  %v60 = vunpack.c.l.b16 %v16
  %v61 = vunpack.c.l.b16 %v17
  %v62 = vunpack.c.l.b16 %v18
  %v63 = vunpack.c.l.b16 %v19
  %v64 = vunpack.c.l.b16 %v20
  %v65 = vunpack.c.l.b16 %v21
  %v66 = vunpack.c.l.b16 %v22
  %v67 = vunpack.c.l.b16 %v23
  %v68 = vunpack.c.l.b16 %v24
  %v69 = vunpack.c.l.b16 %v25
  %v70 = vunpack.c.l.b16 %v26
  %v71 = vunpack.c.l.b16 %v27
  %v72 = vunpack.c.l.b16 %v28
  %v73 = vunpack.c.l.b16 %v29
  %v74 = vunpack.c.l.b16 %v30
  %v75 = vpack.c.b16 %v60, %v59
  %v76 = vpack.c.b16 %v62, %v61
  %v77 = vpack.c.b16 %v64, %v63
  %v78 = vpack.c.b16 %v66, %v65
  %v79 = vpack.c.b16 %v68, %v67
  %v80 = vpack.c.b16 %v70, %v69
  %v81 = vpack.c.b16 %v72, %v71
  %v82 = vpack.c.b16 %v74, %v73
  %v91 = vunpack.c.l.b16 %v31
  %v92 = vunpack.c.l.b16 %v32
  %v93 = vunpack.c.l.b16 %v33
  %v94 = vunpack.c.l.b16 %v34
  %v95 = vunpack.c.l.b16 %v35
  %v96 = vunpack.c.l.b16 %v36
  %v97 = vunpack.c.l.b16 %v37
  %v98 = vunpack.c.l.b16 %v38
  %v99 = vpack.c.b16 %v92, %v91
  %v100 = vpack.c.b16 %v94, %v93
  %v101 = vpack.c.b16 %v96, %v95
  %v102 = vpack.c.b16 %v98, %v97
  %vm107 = vcmask 523264
  %v109 = vsel %vm107, %v75, 0
  %v112 = vsel %vm107, %v76, 0
  %v115 = vsel %vm107, %v77, 0
  %v118 = vsel %vm107, %v78, 0
  %v121 = vsel %vm107, %v79, 0
  %v124 = vsel %vm107, %v80, 0
  %v127 = vsel %vm107, %v81, 0
  %v130 = vsel %vm107, %v82, 0
  %132 = vmatpush.bf16.msra.mxu0 0
  %133 = vmatpush.bf16.msra.mxu0 0
  %134 = vmatpush.bf16.msra.mxu0 0
  %135 = vmatpush.bf16.msra.mxu0 0
  %136 = vmatpush.bf16.msra.mxu0 %v102
  %137 = vmatpush.bf16.msra.mxu0 %v101
  %138 = vmatpush.bf16.msra.mxu0 %v100
  %139 = vmatpush.bf16.msra.mxu0 %v99
  %140 = vmatmul.bf16.gmra.mxu0 %v109
  %v141 = vpop.f32.mrf.mxu0
  %v142 = vadd.f32 %v41, %v141
  %v143 = vpop.f32.mrf.mxu0
  %v144 = vadd.f32 %v41, %v143
  %145 = vmatmul.bf16.gmra.mxu0 %v112
  %v146 = vpop.f32.mrf.mxu0
  %v147 = vadd.f32 %v41, %v146
  %v148 = vpop.f32.mrf.mxu0
  %v149 = vadd.f32 %v41, %v148
  %150 = vmatmul.bf16.gmra.mxu0 %v115
  %v151 = vpop.f32.mrf.mxu0
  %v152 = vadd.f32 %v41, %v151
  %v153 = vpop.f32.mrf.mxu0
  %v154 = vadd.f32 %v41, %v153
  %155 = vmatmul.bf16.gmra.mxu0 %v118
  %v156 = vpop.f32.mrf.mxu0
  %v157 = vadd.f32 %v41, %v156
  %v158 = vpop.f32.mrf.mxu0
  %v159 = vadd.f32 %v41, %v158
  %160 = vmatmul.bf16.gmra.mxu0 %v121
  %v161 = vpop.f32.mrf.mxu0
  %v162 = vadd.f32 %v41, %v161
  %v163 = vpop.f32.mrf.mxu0
  %v164 = vadd.f32 %v41, %v163
  %165 = vmatmul.bf16.gmra.mxu0 %v124
  %v166 = vpop.f32.mrf.mxu0
  %v167 = vadd.f32 %v41, %v166
  %v168 = vpop.f32.mrf.mxu0
  %v169 = vadd.f32 %v41, %v168
  %170 = vmatmul.bf16.gmra.mxu0 %v127
  %v171 = vpop.f32.mrf.mxu0
  %v172 = vadd.f32 %v41, %v171
  %v173 = vpop.f32.mrf.mxu0
  %v174 = vadd.f32 %v41, %v173
  %175 = vmatmul.bf16.gmra.mxu0 %v130
  %v176 = vpop.f32.mrf.mxu0
  %v177 = vadd.f32 %v41, %v176
  %v178 = vpop.f32.mrf.mxu0
  %v179 = vadd.f32 %v41, %v178
  %180 = vdwg.mxu0
  %181 = vst [vmem:[%s3] sm:$0xff] %v142
  %182 = vst [vmem:[%s3 + $0x8] sm:$0xff] %v144
  %183 = vst [vmem:[%s3 + $0x10] sm:$0xff] %v147
  %184 = vst [vmem:[%s3 + $0x18] sm:$0xff] %v149
  %185 = vst [vmem:[%s3 + $0x20] sm:$0xff] %v152
  %186 = vst [vmem:[%s3 + $0x28] sm:$0xff] %v154
  %187 = vst [vmem:[%s3 + $0x30] sm:$0xff] %v157
  %188 = vst [vmem:[%s3 + $0x38] sm:$0xff] %v159
  %189 = vst [vmem:[%s3 + $0x40] sm:$0xff] %v162
  %190 = vst [vmem:[%s3 + $0x48] sm:$0xff] %v164
  %191 = vst [vmem:[%s3 + $0x50] sm:$0xff] %v167
  %192 = vst [vmem:[%s3 + $0x58] sm:$0xff] %v169
  %193 = vst [vmem:[%s3 + $0x60] sm:$0xff] %v172
  %194 = vst [vmem:[%s3 + $0x68] sm:$0xff] %v174
  %195 = vst [vmem:[%s3 + $0x70] sm:$0xff] %v177
  %196 = vst [vmem:[%s3 + $0x78] sm:$0xff] %v179
  // Predicated region
  $region14: #{content_encoder_forward.19} parent=0 // pred_check
    _
  $region15: #{content_encoder_forward.19} parent=0 // pred_check_branch
    %198 = sbr.rel (0) target = $region17
  $region16: #{content_encoder_forward.19} parent=0 // pred_region
    _
  $region17: #{content_encoder_forward.19} parent=0 // pred_fallthru
    _
  // Predicated region
  $region18: #{content_encoder_forward.19} parent=0 // pred_check
    _
  $region19: #{content_encoder_forward.19} parent=0 // pred_check_branch
    %200 = sbr.rel (0) target = $region21
  $region20: #{content_encoder_forward.19} parent=0 // pred_region
    _
  $region21: #{content_encoder_forward.19} parent=0 // pred_fallthru
    _

// kernel: content_encoder_forward.21
$region0: #{content_encoder_forward.21}
  #allocation0 [shape = 'u32[]', space=smem, size = 0x4, offset = 0x4, fixed_abs, tag = 'smem constant byte address 0x4 - core index']
  #allocation1 [shape = 'u32[72,128]{1,0:T(1,128)}', space=vmem, size = 0x9000, scoped, tag = 'internal scratch']
  %s0 = inlined_call_operand.vmem [shape: f32[2,64,8], index: 0, kind: input, shape index: {}]
  %s1 = inlined_call_operand.vmem [shape: f32[2,64,8], index: 1, kind: output, shape index: {}]
  %s2 = sld [smem:[#allocation0]]
  $region37: #{content_encoder_forward.21} parent=0
    _
  %s4 = ssub.s32 1, %s2
  %s5 = scalar_select 0, %s4, %s2
  loop: start=0, step=1, limit=4
  $region2: #{content_encoder_forward.21} parent=0 // loop_pre_header
    _
  $region3: #{content_encoder_forward.21} parent=0 // loop_header
    %s7 = sphi 0, %s11
    %p8 = scmp.ge.s32.totalorder %s7, 4
    %s17 = sphi 0, %s19
    %s20 = sphi 0, %s17
    %s21 = sphi 0, %s20
    %s37 = sphi 0, %s21
    %s43 = sphi 0, %s45
    %s46 = sphi 0, %s43
    %s47 = sphi 0, %s46
    %s63 = sphi 0, %s47
  $region4: #{content_encoder_forward.21} parent=0 // loop_header_branch
    %10 = sbr.rel (%p8) target = $region8
  $region5: #{content_encoder_forward.21} parent=0 // loop_body
    %s12 = ssub.s32 %s7, 1
    %s13 = ssub.s32 %s7, 2
    %s14 = sadd.s32 %s7, 1
    %s15 = ssub.s32 %s7, %s14
    %p16 = scmp.eq.s32.totalorder %s15, 0
    %s18 = sadd.s32 %s17, 1
    %s19 = scalar_select %p16, %s17, %s18
    %p22 = pneg %p16
    %p23 = scmp.eq.s32.totalorder %s7, 1
    %p24 = por %p22, %p23
    %p25 = scmp.ne.s32.totalorder %s17, %s20
    %p26 = scmp.eq.s32.totalorder %s7, 0
    %p27 = por %p25, %p26
    %p28 = scmp.ne.s32.totalorder %s17, %s20
    %p29 = scmp.eq.s32.totalorder %s12, 1
    %p30 = por %p28, %p29
    %p31 = scmp.ne.s32.totalorder %s20, %s21
    %p32 = scmp.eq.s32.totalorder %s12, 0
    %p33 = por %p31, %p32
    %p34 = scmp.ne.s32.totalorder %s20, %s21
    %p35 = scmp.eq.s32.totalorder %s13, 1
    %p36 = por %p34, %p35
    %p38 = scmp.ne.s32.totalorder %s21, %s37
    %p39 = scmp.eq.s32.totalorder %s13, 0
    %p40 = por %p38, %p39
    %s41 = ssub.s32 %s7, %s14
    %p42 = scmp.eq.s32.totalorder %s41, 0
    %s44 = sadd.s32 %s43, 1
    %s45 = scalar_select %p42, %s43, %s44
    %p48 = pneg %p42
    %p49 = scmp.eq.s32.totalorder %s7, 1
    %p50 = por %p48, %p49
    %p51 = scmp.ne.s32.totalorder %s43, %s46
    %p52 = scmp.eq.s32.totalorder %s7, 0
    %p53 = por %p51, %p52
    %p54 = scmp.ne.s32.totalorder %s43, %s46
    %p55 = scmp.eq.s32.totalorder %s12, 1
    %p56 = por %p54, %p55
    %p57 = scmp.ne.s32.totalorder %s46, %s47
    %p58 = scmp.eq.s32.totalorder %s12, 0
    %p59 = por %p57, %p58
    %p60 = scmp.ne.s32.totalorder %s46, %s47
    %p61 = scmp.eq.s32.totalorder %s13, 1
    %p62 = por %p60, %p61
    %p64 = scmp.ne.s32.totalorder %s47, %s63
    %p65 = scmp.eq.s32.totalorder %s13, 0
    %p66 = por %p64, %p65
    %p67 = scmp.le.s32.totalorder 1, %s7
    %p68 = scmp.lt.s32.totalorder %s7, 3
    %p69 = pnand %p67, %p68
    %p70 = pneg %p69
    // Predicated region
    $region9: #{content_encoder_forward.21} parent=5 // pred_check
      _
    $region10: #{content_encoder_forward.21} parent=5 // pred_check_branch
      %72 = sbr.rel (%p69) target = $region12
    $region11: #{content_encoder_forward.21} parent=5 // pred_region
      %s73 = ssub.s32 %s7, 1
    $region12: #{content_encoder_forward.21} parent=5 // pred_fallthru
      _
    %p74 = scmp.lt.s32.totalorder %s7, 2
    // Predicated region
    $region13: #{content_encoder_forward.21} parent=5 // pred_check
      %p75 = pneg %p74
    $region14: #{content_encoder_forward.21} parent=5 // pred_check_branch
      %77 = sbr.rel (%p75) target = $region16
    $region15: #{content_encoder_forward.21} parent=5 // pred_region
      // Predicated region
      $region17: #{content_encoder_forward.21} parent=15 // pred_check
        %p78 = pneg %p27
      $region18: #{content_encoder_forward.21} parent=15 // pred_check_branch
        %80 = sbr.rel (%p78) target = $region20
      $region19: #{content_encoder_forward.21} parent=15 // pred_region
        %p81 = scmp.lt.s32.totalorder %s7, 1
        %s82 = scalar_select %p81, %s7, 1
        %s83 = smul.addr %s82, 8
        %s84 = smul.addr %s83, 8
        %s85 = scalar_lea.vmem %s0, %s84
      $region20: #{content_encoder_forward.21} parent=15 // pred_fallthru
        _
    $region16: #{content_encoder_forward.21} parent=5 // pred_fallthru
      _
    %p86 = scmp.le.s32.totalorder 1, %s7
    %p87 = scmp.lt.s32.totalorder %s7, 3
    %p88 = pnand %p86, %p87
    %p89 = pneg %p88
    // Predicated region
    $region21: #{content_encoder_forward.21} parent=5 // pred_check
      _
    $region22: #{content_encoder_forward.21} parent=5 // pred_check_branch
      %91 = sbr.rel (%p88) target = $region24
    $region23: #{content_encoder_forward.21} parent=5 // pred_region
      %s92 = ssub.s32 %s7, 1
      %p93 = scmp.lt.s32.totalorder %s12, 1
      %s94 = scalar_select %p93, %s12, 1
      %s95 = smul.addr %s94, 8
      %s96 = smul.addr %s95, 8
      %s97 = scalar_lea.vmem %s0, %s96
      %p98 = pneg %p33
      %p99 = pneg %p30
      %p100 = pneg %p59
      %p101 = pneg %p56
      %p102 = scmp.lt.s32.totalorder %s12, 1
      %s103 = scalar_select %p102, %s12, 1
      %s104 = smul.addr %s103, 8
      %s105 = smul.addr %s104, 8
      %s106 = scalar_lea.vmem %s1, %s105
      %p107 = scmp.lt.s32.totalorder %s12, 1
      %s108 = scalar_select %p107, %s12, 1
      %s109 = smul.addr %s108, 8
      %s110 = smul.addr %s109, 8
      %s111 = scalar_lea.vmem %s0, %s110
      %p112 = scmp.lt.s32.totalorder %s12, 1
      %s113 = scalar_select %p112, %s12, 1
      %s114 = smul.addr %s113, 8
      %s115 = smul.addr %s114, 8
      %s116 = scalar_lea.vmem %s1, %s115
      %v117 = vld [vmem:[%s111] sm:$0xff]
      %v118 = vld [vmem:[%s111 + $0x8] sm:$0xff]
      %v119 = vld [vmem:[%s111 + $0x10] sm:$0xff]
      %v120 = vld [vmem:[%s111 + $0x18] sm:$0xff]
      %v121 = vld [vmem:[%s111 + $0x20] sm:$0xff]
      %v122 = vld [vmem:[%s111 + $0x28] sm:$0xff]
      %v123 = vld [vmem:[%s111 + $0x30] sm:$0xff]
      %v124 = vld [vmem:[%s111 + $0x38] sm:$0xff]
      %vm125 = vcmask 64512
      %v126 = vsel %vm125, %v117, 0.0
      %v127 = vsel %vm125, %v118, 0.0
      %v128 = vadd.f32 %v126, %v127
      %v129 = vsel %vm125, %v119, 0.0
      %v130 = vadd.f32 %v128, %v129
      %v131 = vsel %vm125, %v120, 0.0
      %v132 = vadd.f32 %v130, %v131
      %v133 = vsel %vm125, %v121, 0.0
      %v134 = vadd.f32 %v132, %v133
      %v135 = vsel %vm125, %v122, 0.0
      %v136 = vadd.f32 %v134, %v135
      %v137 = vsel %vm125, %v123, 0.0
      %v138 = vadd.f32 %v136, %v137
      %v139 = vsel %vm125, %v124, 0.0
      %v140 = vadd.f32 %v138, %v139
      %v141 = vrot.slane %v140, 4
      %v142 = vadd.f32 %v140, %v141
      %v143 = vrot.slane %v142, 2
      %v144 = vadd.f32 %v142, %v143
      %v145 = vrot.slane %v144, 1
      %v146 = vadd.f32 %v144, %v145
      %v147 = vrcp.pop 64.0
      %v148 = vmul.f32 64.0, %v147
      %v149 = vsub.f32 1.0, %v148
      %v150 = vmul.f32 %v147, %v149
      %v151 = vadd.f32 %v147, %v150
      %vm152 = vweird.f32 %v147
      %v153 = vsel %vm152, %v147, %v151
      %v154 = vmul.f32 %v146, %v153
      %v155 = vsub.f32 %v117, %v154
      %v156 = vsub.f32 %v118, %v154
      %v157 = vsub.f32 %v119, %v154
      %v158 = vsub.f32 %v120, %v154
      %v159 = vsub.f32 %v121, %v154
      %v160 = vsub.f32 %v122, %v154
      %v161 = vsub.f32 %v123, %v154
      %v162 = vsub.f32 %v124, %v154
      %v163 = vmul.f32 %v155, %v155
      %v164 = vmul.f32 %v156, %v156
      %v165 = vmul.f32 %v157, %v157
      %v166 = vmul.f32 %v158, %v158
      %v167 = vmul.f32 %v159, %v159
      %v168 = vmul.f32 %v160, %v160
      %v169 = vmul.f32 %v161, %v161
      %v170 = vmul.f32 %v162, %v162
      %v171 = vsel %vm125, %v163, 0.0
      %v172 = vsel %vm125, %v164, 0.0
      %v173 = vadd.f32 %v171, %v172
      %v174 = vsel %vm125, %v165, 0.0
      %v175 = vadd.f32 %v173, %v174
      %v176 = vsel %vm125, %v166, 0.0
      %v177 = vadd.f32 %v175, %v176
      %v178 = vsel %vm125, %v167, 0.0
      %v179 = vadd.f32 %v177, %v178
      %v180 = vsel %vm125, %v168, 0.0
      %v181 = vadd.f32 %v179, %v180
      %v182 = vsel %vm125, %v169, 0.0
      %v183 = vadd.f32 %v181, %v182
      %v184 = vsel %vm125, %v170, 0.0
      %v185 = vadd.f32 %v183, %v184
      %v186 = vrot.slane %v185, 4
      %v187 = vadd.f32 %v185, %v186
      %v188 = vrot.slane %v187, 2
      %v189 = vadd.f32 %v187, %v188
      %v190 = vrot.slane %v189, 1
      %v191 = vadd.f32 %v189, %v190
      %v192 = vmul.f32 %v191, %v153
      %v193 = vadd.f32 %v192, 1e-05
      %v194 = vrsqrt.pop %v193
      %v195 = vmul.f32 %v194, %v193
      %v196 = vmul.f32 %v195, %v194
      %v197 = vmul.f32 0.5, %v196
      %v198 = vsub.f32 1.5, %v197
      %v199 = vmul.f32 %v194, %v198
      %vm200 = vweird.f32 %v193
      %vm201 = vweird.f32 %v194
      %vm202 = vmor %vm200, %vm201
      %v203 = vsel %vm202, %v194, %v199
      %v204 = vmul.f32 %v155, %v203
      %v205 = vmul.f32 %v156, %v203
      %v206 = vmul.f32 %v157, %v203
      %v207 = vmul.f32 %v158, %v203
      %v208 = vmul.f32 %v159, %v203
      %v209 = vmul.f32 %v160, %v203
      %v210 = vmul.f32 %v161, %v203
      %v211 = vmul.f32 %v162, %v203
      %v212 = vmax.f32 %v204, 0.0
      %v213 = vmax.f32 %v205, 0.0
      %v214 = vmax.f32 %v206, 0.0
      %v215 = vmax.f32 %v207, 0.0
      %v216 = vmax.f32 %v208, 0.0
      %v217 = vmax.f32 %v209, 0.0
      %v218 = vmax.f32 %v210, 0.0
      %v219 = vmax.f32 %v211, 0.0
      %220 = vst.msk [vmem:[%s116] sm:$0xff] %vm125, %v212
      %221 = vst.msk [vmem:[%s116 + $0x8] sm:$0xff] %vm125, %v213
      %222 = vst.msk [vmem:[%s116 + $0x10] sm:$0xff] %vm125, %v214
      %223 = vst.msk [vmem:[%s116 + $0x18] sm:$0xff] %vm125, %v215
      %224 = vst.msk [vmem:[%s116 + $0x20] sm:$0xff] %vm125, %v216
      %225 = vst.msk [vmem:[%s116 + $0x28] sm:$0xff] %vm125, %v217
      %226 = vst.msk [vmem:[%s116 + $0x30] sm:$0xff] %vm125, %v218
      %227 = vst.msk [vmem:[%s116 + $0x38] sm:$0xff] %vm125, %v219
      %p228 = scmp.lt.s32.totalorder %s12, 1
      %s229 = scalar_select %p228, %s12, 1
      %s230 = smul.addr %s229, 8
      %s231 = smul.addr %s230, 8
      %s232 = scalar_lea.vmem %s1, %s231
      // Predicated region
      $region25: #{content_encoder_forward.21} parent=23 // pred_check
        %p233 = pneg %p56
      $region26: #{content_encoder_forward.21} parent=23 // pred_check_branch
        %235 = sbr.rel (%p233) target = $region28
      $region27: #{content_encoder_forward.21} parent=23 // pred_region
        _
      $region28: #{content_encoder_forward.21} parent=23 // pred_fallthru
        _
    $region24: #{content_encoder_forward.21} parent=5 // pred_fallthru
      _
    %p236 = scmp.le.s32.totalorder 2, %s7
    // Predicated region
    $region29: #{content_encoder_forward.21} parent=5 // pred_check
      %p237 = pneg %p236
    $region30: #{content_encoder_forward.21} parent=5 // pred_check_branch
      %239 = sbr.rel (%p237) target = $region32
    $region31: #{content_encoder_forward.21} parent=5 // pred_region
      %s240 = ssub.s32 %s7, 2
      // Predicated region
      $region33: #{content_encoder_forward.21} parent=31 // pred_check
        %p241 = pneg %p62
      $region34: #{content_encoder_forward.21} parent=31 // pred_check_branch
        %243 = sbr.rel (%p241) target = $region36
      $region35: #{content_encoder_forward.21} parent=31 // pred_region
        %p244 = scmp.lt.s32.totalorder %s13, 1
        %s245 = scalar_select %p244, %s13, 1
        %s246 = smul.addr %s245, 8
        %s247 = smul.addr %s246, 8
        %s248 = scalar_lea.vmem %s1, %s247
      $region36: #{content_encoder_forward.21} parent=31 // pred_fallthru
        _
    $region32: #{content_encoder_forward.21} parent=5 // pred_fallthru
      _
  $region6: #{content_encoder_forward.21} parent=0 // loop_footer
    %s11 = sadd.s32 1, %s7
  $region7: #{content_encoder_forward.21} parent=0 // loop_footer_branch
    %6 = sbr.rel target = $region3
  $region8: #{content_encoder_forward.21} parent=0 // loop_exit
    _

// kernel: content_encoder_forward.20
$region0: #{content_encoder_forward.20}
  #allocation0 [shape = 'u32[]', space=smem, size = 0x4, offset = 0x4, fixed_abs, tag = 'smem constant byte address 0x4 - core index']
  #allocation1 [shape = 'u32[72,128]{1,0:T(1,128)}', space=vmem, size = 0x9000, scoped, tag = 'internal scratch']
  %s0 = inlined_call_operand.vmem [shape: bf16[128,64], index: 0, kind: input, shape index: {}]
  %s1 = inlined_call_operand.vmem [shape: f32[128,16], index: 1, kind: input, shape index: {}]
  %s2 = inlined_call_operand.vmem [shape: bf16[64,128], index: 2, kind: input, shape index: {}]
  %s3 = inlined_call_operand.vmem [shape: f32[1,128], index: 3, kind: input, shape index: {}]
  %s4 = inlined_call_operand.vmem [shape: f32[128,128], index: 4, kind: output, shape index: {}]
  %s5 = sld [smem:[#allocation0]]
  $region26: #{content_encoder_forward.20} parent=0
    _
  %s7 = ssub.s32 1, %s5
  %s8 = scalar_select 0, %s7, %s5
  // Predicated region
  $region2: #{content_encoder_forward.20} parent=0 // pred_check
    _
  $region3: #{content_encoder_forward.20} parent=0 // pred_check_branch
    %10 = sbr.rel (0) target = $region5
  $region4: #{content_encoder_forward.20} parent=0 // pred_region
    _
  $region5: #{content_encoder_forward.20} parent=0 // pred_fallthru
    _
  // Predicated region
  $region6: #{content_encoder_forward.20} parent=0 // pred_check
    _
  $region7: #{content_encoder_forward.20} parent=0 // pred_check_branch
    %12 = sbr.rel (0) target = $region9
  $region8: #{content_encoder_forward.20} parent=0 // pred_region
    _
  $region9: #{content_encoder_forward.20} parent=0 // pred_fallthru
    _
  // Predicated region
  $region10: #{content_encoder_forward.20} parent=0 // pred_check
    _
  $region11: #{content_encoder_forward.20} parent=0 // pred_check_branch
    %14 = sbr.rel (0) target = $region13
  $region12: #{content_encoder_forward.20} parent=0 // pred_region
    _
  $region13: #{content_encoder_forward.20} parent=0 // pred_fallthru
    _
  // Predicated region
  $region14: #{content_encoder_forward.20} parent=0 // pred_check
    _
  $region15: #{content_encoder_forward.20} parent=0 // pred_check_branch
    %16 = sbr.rel (0) target = $region17
  $region16: #{content_encoder_forward.20} parent=0 // pred_region
    _
  $region17: #{content_encoder_forward.20} parent=0 // pred_fallthru
    _
  %v18 = vld [vmem:[%s1] sm:$0xff]
  %v19 = vld [vmem:[%s1 + $0x8] sm:$0xff]
  %v20 = vld [vmem:[%s1 + $0x10] sm:$0xff]
  %v21 = vld [vmem:[%s1 + $0x18] sm:$0xff]
  %v22 = vld [vmem:[%s1 + $0x20] sm:$0xff]
  %v23 = vld [vmem:[%s1 + $0x28] sm:$0xff]
  %v24 = vld [vmem:[%s1 + $0x30] sm:$0xff]
  %v25 = vld [vmem:[%s1 + $0x38] sm:$0xff]
  %v26 = vld [vmem:[%s1 + $0x40] sm:$0xff]
  %v27 = vld [vmem:[%s1 + $0x48] sm:$0xff]
  %v28 = vld [vmem:[%s1 + $0x50] sm:$0xff]
  %v29 = vld [vmem:[%s1 + $0x58] sm:$0xff]
  %v30 = vld [vmem:[%s1 + $0x60] sm:$0xff]
  %v31 = vld [vmem:[%s1 + $0x68] sm:$0xff]
  %v32 = vld [vmem:[%s1 + $0x70] sm:$0xff]
  %v33 = vld [vmem:[%s1 + $0x78] sm:$0xff]
  %50 = vrot.lane.b32.xlu0 %v18, 16
  %v51 = vpop.permute.xlu0 %50
  %52 = vrot.lane.b32.xlu0 %v19, 16
  %v53 = vpop.permute.xlu0 %52
  %54 = vrot.lane.b32.xlu0 %v20, 16
  %v55 = vpop.permute.xlu0 %54
  %56 = vrot.lane.b32.xlu0 %v21, 16
  %v57 = vpop.permute.xlu0 %56
  %58 = vrot.lane.b32.xlu0 %v22, 16
  %v59 = vpop.permute.xlu0 %58
  %60 = vrot.lane.b32.xlu0 %v23, 16
  %v61 = vpop.permute.xlu0 %60
  %62 = vrot.lane.b32.xlu0 %v24, 16
  %v63 = vpop.permute.xlu0 %62
  %64 = vrot.lane.b32.xlu0 %v25, 16
  %v65 = vpop.permute.xlu0 %64
  %66 = vrot.lane.b32.xlu0 %v26, 16
  %v67 = vpop.permute.xlu0 %66
  %68 = vrot.lane.b32.xlu0 %v27, 16
  %v69 = vpop.permute.xlu0 %68
  %70 = vrot.lane.b32.xlu0 %v28, 16
  %v71 = vpop.permute.xlu0 %70
  %72 = vrot.lane.b32.xlu0 %v29, 16
  %v73 = vpop.permute.xlu0 %72
  %74 = vrot.lane.b32.xlu0 %v30, 16
  %v75 = vpop.permute.xlu0 %74
  %76 = vrot.lane.b32.xlu0 %v31, 16
  %v77 = vpop.permute.xlu0 %76
  %78 = vrot.lane.b32.xlu0 %v32, 16
  %v79 = vpop.permute.xlu0 %78
  %80 = vrot.lane.b32.xlu0 %v33, 16
  %v81 = vpop.permute.xlu0 %80
  %98 = vrot.lane.b32.xlu0 %v18, 32
  %v99 = vpop.permute.xlu0 %98
  %100 = vrot.lane.b32.xlu0 %v19, 32
  %v101 = vpop.permute.xlu0 %100
  %102 = vrot.lane.b32.xlu0 %v20, 32
  %v103 = vpop.permute.xlu0 %102
  %104 = vrot.lane.b32.xlu0 %v21, 32
  %v105 = vpop.permute.xlu0 %104
  %106 = vrot.lane.b32.xlu0 %v22, 32
  %v107 = vpop.permute.xlu0 %106
  %108 = vrot.lane.b32.xlu0 %v23, 32
  %v109 = vpop.permute.xlu0 %108
  %110 = vrot.lane.b32.xlu0 %v24, 32
  %v111 = vpop.permute.xlu0 %110
  %112 = vrot.lane.b32.xlu0 %v25, 32
  %v113 = vpop.permute.xlu0 %112
  %114 = vrot.lane.b32.xlu0 %v26, 32
  %v115 = vpop.permute.xlu0 %114
  %116 = vrot.lane.b32.xlu0 %v27, 32
  %v117 = vpop.permute.xlu0 %116
  %118 = vrot.lane.b32.xlu0 %v28, 32
  %v119 = vpop.permute.xlu0 %118
  %120 = vrot.lane.b32.xlu0 %v29, 32
  %v121 = vpop.permute.xlu0 %120
  %122 = vrot.lane.b32.xlu0 %v30, 32
  %v123 = vpop.permute.xlu0 %122
  %124 = vrot.lane.b32.xlu0 %v31, 32
  %v125 = vpop.permute.xlu0 %124
  %126 = vrot.lane.b32.xlu0 %v32, 32
  %v127 = vpop.permute.xlu0 %126
  %128 = vrot.lane.b32.xlu0 %v33, 32
  %v129 = vpop.permute.xlu0 %128
  %146 = vrot.lane.b32.xlu0 %v18, 48
  %v147 = vpop.permute.xlu0 %146
  %148 = vrot.lane.b32.xlu0 %v19, 48
  %v149 = vpop.permute.xlu0 %148
  %150 = vrot.lane.b32.xlu0 %v20, 48
  %v151 = vpop.permute.xlu0 %150
  %152 = vrot.lane.b32.xlu0 %v21, 48
  %v153 = vpop.permute.xlu0 %152
  %154 = vrot.lane.b32.xlu0 %v22, 48
  %v155 = vpop.permute.xlu0 %154
  %156 = vrot.lane.b32.xlu0 %v23, 48
  %v157 = vpop.permute.xlu0 %156
  %158 = vrot.lane.b32.xlu0 %v24, 48
  %v159 = vpop.permute.xlu0 %158
  %160 = vrot.lane.b32.xlu0 %v25, 48
  %v161 = vpop.permute.xlu0 %160
  %162 = vrot.lane.b32.xlu0 %v26, 48
  %v163 = vpop.permute.xlu0 %162
  %164 = vrot.lane.b32.xlu0 %v27, 48
  %v165 = vpop.permute.xlu0 %164
  %166 = vrot.lane.b32.xlu0 %v28, 48
  %v167 = vpop.permute.xlu0 %166
  %168 = vrot.lane.b32.xlu0 %v29, 48
  %v169 = vpop.permute.xlu0 %168
  %170 = vrot.lane.b32.xlu0 %v30, 48
  %v171 = vpop.permute.xlu0 %170
  %172 = vrot.lane.b32.xlu0 %v31, 48
  %v173 = vpop.permute.xlu0 %172
  %174 = vrot.lane.b32.xlu0 %v32, 48
  %v175 = vpop.permute.xlu0 %174
  %176 = vrot.lane.b32.xlu0 %v33, 48
  %v177 = vpop.permute.xlu0 %176
  %vm194 = vcmask 130048
  %v195 = vsel %vm194, %v18, %v51
  %v196 = vsel %vm194, %v19, %v53
  %v197 = vsel %vm194, %v20, %v55
  %v198 = vsel %vm194, %v21, %v57
  %v199 = vsel %vm194, %v22, %v59
  %v200 = vsel %vm194, %v23, %v61
  %v201 = vsel %vm194, %v24, %v63
  %v202 = vsel %vm194, %v25, %v65
  %v203 = vsel %vm194, %v26, %v67
  %v204 = vsel %vm194, %v27, %v69
  %v205 = vsel %vm194, %v28, %v71
  %v206 = vsel %vm194, %v29, %v73
  %v207 = vsel %vm194, %v30, %v75
  %v208 = vsel %vm194, %v31, %v77
  %v209 = vsel %vm194, %v32, %v79
  %v210 = vsel %vm194, %v33, %v81
  %vm211 = vcmask 261120
  %v212 = vsel %vm211, %v195, %v99
  %v213 = vsel %vm211, %v196, %v101
  %v214 = vsel %vm211, %v197, %v103
  %v215 = vsel %vm211, %v198, %v105
  %v216 = vsel %vm211, %v199, %v107
  %v217 = vsel %vm211, %v200, %v109
  %v218 = vsel %vm211, %v201, %v111
  %v219 = vsel %vm211, %v202, %v113
  %v220 = vsel %vm211, %v203, %v115
  %v221 = vsel %vm211, %v204, %v117
  %v222 = vsel %vm211, %v205, %v119
  %v223 = vsel %vm211, %v206, %v121
  %v224 = vsel %vm211, %v207, %v123
  %v225 = vsel %vm211, %v208, %v125
  %v226 = vsel %vm211, %v209, %v127
  %v227 = vsel %vm211, %v210, %v129
  %vm228 = vcmask 392192
  %v229 = vsel %vm228, %v212, %v147
  %v230 = vsel %vm228, %v213, %v149
  %v231 = vsel %vm228, %v214, %v151
  %v232 = vsel %vm228, %v215, %v153
  %v233 = vsel %vm228, %v216, %v155
  %v234 = vsel %vm228, %v217, %v157
  %v235 = vsel %vm228, %v218, %v159
  %v236 = vsel %vm228, %v219, %v161
  %v237 = vsel %vm228, %v220, %v163
  %v238 = vsel %vm228, %v221, %v165
  %v239 = vsel %vm228, %v222, %v167
  %v240 = vsel %vm228, %v223, %v169
  %v241 = vsel %vm228, %v224, %v171
  %v242 = vsel %vm228, %v225, %v173
  %v243 = vsel %vm228, %v226, %v175
  %v244 = vsel %vm228, %v227, %v177
  %v245 = vld [vmem:[%s0] sm:$0xf]
  %v246 = vld [vmem:[%s0 + $0x4] sm:$0xf]
  %v247 = vld [vmem:[%s0 + $0x8] sm:$0xf]
  %v248 = vld [vmem:[%s0 + $0xc] sm:$0xf]
  %v249 = vld [vmem:[%s0 + $0x10] sm:$0xf]
  %v250 = vld [vmem:[%s0 + $0x14] sm:$0xf]
  %v251 = vld [vmem:[%s0 + $0x18] sm:$0xf]
  %v252 = vld [vmem:[%s0 + $0x1c] sm:$0xf]
  %v253 = vld [vmem:[%s0 + $0x20] sm:$0xf]
  %v254 = vld [vmem:[%s0 + $0x24] sm:$0xf]
  %v255 = vld [vmem:[%s0 + $0x28] sm:$0xf]
  %v256 = vld [vmem:[%s0 + $0x2c] sm:$0xf]
  %v257 = vld [vmem:[%s0 + $0x30] sm:$0xf]
  %v258 = vld [vmem:[%s0 + $0x34] sm:$0xf]
  %v259 = vld [vmem:[%s0 + $0x38] sm:$0xf]
  %v260 = vld [vmem:[%s0 + $0x3c] sm:$0xf]
  %v261 = vunpack.c.l.bf16 %v245
  %v262 = vunpack.c.l.bf16 %v246
  %v263 = vunpack.c.l.bf16 %v247
  %v264 = vunpack.c.l.bf16 %v248
  %v265 = vunpack.c.l.bf16 %v249
  %v266 = vunpack.c.l.bf16 %v250
  %v267 = vunpack.c.l.bf16 %v251
  %v268 = vunpack.c.l.bf16 %v252
  %v269 = vunpack.c.l.bf16 %v253
  %v270 = vunpack.c.l.bf16 %v254
  %v271 = vunpack.c.l.bf16 %v255
  %v272 = vunpack.c.l.bf16 %v256
  %v273 = vunpack.c.l.bf16 %v257
  %v274 = vunpack.c.l.bf16 %v258
  %v275 = vunpack.c.l.bf16 %v259
  %v276 = vunpack.c.l.bf16 %v260
  %v277 = vmul.f32 %v261, %v229
  %v278 = vmul.f32 %v262, %v230
  %v279 = vmul.f32 %v263, %v231
  %v280 = vmul.f32 %v264, %v232
  %v281 = vmul.f32 %v265, %v233
  %v282 = vmul.f32 %v266, %v234
  %v283 = vmul.f32 %v267, %v235
  %v284 = vmul.f32 %v268, %v236
  %v285 = vmul.f32 %v269, %v237
  %v286 = vmul.f32 %v270, %v238
  %v287 = vmul.f32 %v271, %v239
  %v288 = vmul.f32 %v272, %v240
  %v289 = vmul.f32 %v273, %v241
  %v290 = vmul.f32 %v274, %v242
  %v291 = vmul.f32 %v275, %v243
  %v292 = vmul.f32 %v276, %v244
  %v293 = vpack.c.bf16 %v278, %v277
  %v294 = vpack.c.bf16 %v280, %v279
  %v295 = vpack.c.bf16 %v282, %v281
  %v296 = vpack.c.bf16 %v284, %v283
  %v297 = vpack.c.bf16 %v286, %v285
  %v298 = vpack.c.bf16 %v288, %v287
  %v299 = vpack.c.bf16 %v290, %v289
  %v300 = vpack.c.bf16 %v292, %v291
  %v301 = vld [vmem:[%s2] sm:$0xf]
  %v302 = vld [vmem:[%s2 + $0x4] sm:$0xf]
  %v303 = vld [vmem:[%s2 + $0x8] sm:$0xf]
  %v304 = vld [vmem:[%s2 + $0xc] sm:$0xf]
  %v305 = vld [vmem:[%s2 + $0x10] sm:$0xf]
  %v306 = vld [vmem:[%s2 + $0x14] sm:$0xf]
  %v307 = vld [vmem:[%s2 + $0x18] sm:$0xf]
  %v308 = vld [vmem:[%s2 + $0x1c] sm:$0xf]
  %v309 = vld [vmem:[%s3] sm:$0x1]
  %v311 = vperm.slane %v309, 0
  %v321 = vunpack.c.l.b16 %v301
  %v322 = vunpack.c.l.b16 %v302
  %v323 = vunpack.c.l.b16 %v303
  %v324 = vunpack.c.l.b16 %v304
  %v325 = vunpack.c.l.b16 %v305
  %v326 = vunpack.c.l.b16 %v306
  %v327 = vunpack.c.l.b16 %v307
  %v328 = vunpack.c.l.b16 %v308
  %v329 = vpack.c.b16 %v322, %v321
  %v330 = vpack.c.b16 %v324, %v323
  %v331 = vpack.c.b16 %v326, %v325
  %v332 = vpack.c.b16 %v328, %v327
  %vm337 = vcmask 523264
  %v339 = vsel %vm337, %v293, 0
  %v342 = vsel %vm337, %v294, 0
  %v345 = vsel %vm337, %v295, 0
  %v348 = vsel %vm337, %v296, 0
  %v351 = vsel %vm337, %v297, 0
  %v354 = vsel %vm337, %v298, 0
  %v357 = vsel %vm337, %v299, 0
  %v360 = vsel %vm337, %v300, 0
  %362 = vmatpush.bf16.msra.mxu0 0
  %363 = vmatpush.bf16.msra.mxu0 0
  %364 = vmatpush.bf16.msra.mxu0 0
  %365 = vmatpush.bf16.msra.mxu0 0
  %366 = vmatpush.bf16.msra.mxu0 %v332
  %367 = vmatpush.bf16.msra.mxu0 %v331
  %368 = vmatpush.bf16.msra.mxu0 %v330
  %369 = vmatpush.bf16.msra.mxu0 %v329
  %370 = vmatmul.bf16.gmra.mxu0 %v339
  %v371 = vpop.f32.mrf.mxu0
  %v372 = vadd.f32 %v311, %v371
  %v373 = vpop.f32.mrf.mxu0
  %v374 = vadd.f32 %v311, %v373
  %375 = vmatmul.bf16.gmra.mxu0 %v342
  %v376 = vpop.f32.mrf.mxu0
  %v377 = vadd.f32 %v311, %v376
  %v378 = vpop.f32.mrf.mxu0
  %v379 = vadd.f32 %v311, %v378
  %380 = vmatmul.bf16.gmra.mxu0 %v345
  %v381 = vpop.f32.mrf.mxu0
  %v382 = vadd.f32 %v311, %v381
  %v383 = vpop.f32.mrf.mxu0
  %v384 = vadd.f32 %v311, %v383
  %385 = vmatmul.bf16.gmra.mxu0 %v348
  %v386 = vpop.f32.mrf.mxu0
  %v387 = vadd.f32 %v311, %v386
  %v388 = vpop.f32.mrf.mxu0
  %v389 = vadd.f32 %v311, %v388
  %390 = vmatmul.bf16.gmra.mxu0 %v351
  %v391 = vpop.f32.mrf.mxu0
  %v392 = vadd.f32 %v311, %v391
  %v393 = vpop.f32.mrf.mxu0
  %v394 = vadd.f32 %v311, %v393
  %395 = vmatmul.bf16.gmra.mxu0 %v354
  %v396 = vpop.f32.mrf.mxu0
  %v397 = vadd.f32 %v311, %v396
  %v398 = vpop.f32.mrf.mxu0
  %v399 = vadd.f32 %v311, %v398
  %400 = vmatmul.bf16.gmra.mxu0 %v357
  %v401 = vpop.f32.mrf.mxu0
  %v402 = vadd.f32 %v311, %v401
  %v403 = vpop.f32.mrf.mxu0
  %v404 = vadd.f32 %v311, %v403
  %405 = vmatmul.bf16.gmra.mxu0 %v360
  %v406 = vpop.f32.mrf.mxu0
  %v407 = vadd.f32 %v311, %v406
  %v408 = vpop.f32.mrf.mxu0
  %v409 = vadd.f32 %v311, %v408
  %410 = vdwg.mxu0
  %411 = vst [vmem:[%s4] sm:$0xff] %v372
  %412 = vst [vmem:[%s4 + $0x8] sm:$0xff] %v374
  %413 = vst [vmem:[%s4 + $0x10] sm:$0xff] %v377
  %414 = vst [vmem:[%s4 + $0x18] sm:$0xff] %v379
  %415 = vst [vmem:[%s4 + $0x20] sm:$0xff] %v382
  %416 = vst [vmem:[%s4 + $0x28] sm:$0xff] %v384
  %417 = vst [vmem:[%s4 + $0x30] sm:$0xff] %v387
  %418 = vst [vmem:[%s4 + $0x38] sm:$0xff] %v389
  %419 = vst [vmem:[%s4 + $0x40] sm:$0xff] %v392
  %420 = vst [vmem:[%s4 + $0x48] sm:$0xff] %v394
  %421 = vst [vmem:[%s4 + $0x50] sm:$0xff] %v397
  %422 = vst [vmem:[%s4 + $0x58] sm:$0xff] %v399
  %423 = vst [vmem:[%s4 + $0x60] sm:$0xff] %v402
  %424 = vst [vmem:[%s4 + $0x68] sm:$0xff] %v404
  %425 = vst [vmem:[%s4 + $0x70] sm:$0xff] %v407
  %426 = vst [vmem:[%s4 + $0x78] sm:$0xff] %v409
  // Predicated region
  $region18: #{content_encoder_forward.20} parent=0 // pred_check
    _
  $region19: #{content_encoder_forward.20} parent=0 // pred_check_branch
    %428 = sbr.rel (0) target = $region21
  $region20: #{content_encoder_forward.20} parent=0 // pred_region
    _
  $region21: #{content_encoder_forward.20} parent=0 // pred_fallthru
    _
  // Predicated region
  $region22: #{content_encoder_forward.20} parent=0 // pred_check
    _
  $region23: #{content_encoder_forward.20} parent=0 // pred_check_branch
    %430 = sbr.rel (0) target = $region25
  $region24: #{content_encoder_forward.20} parent=0 // pred_region
    _
  $region25: #{content_encoder_forward.20} parent=0 // pred_fallthru
    _

// kernel: content_encoder_forward.22
$region0: #{content_encoder_forward.22}
  #allocation0 [shape = 'u32[]', space=smem, size = 0x4, offset = 0x4, fixed_abs, tag = 'smem constant byte address 0x4 - core index']
  #allocation1 [shape = 'u32[72,128]{1,0:T(1,128)}', space=vmem, size = 0x9000, scoped, tag = 'internal scratch']
  %s0 = inlined_call_operand.vmem [shape: bf16[32,128], index: 0, kind: input, shape index: {}]
  %s1 = inlined_call_operand.vmem [shape: bf16[128,128], index: 1, kind: input, shape index: {}]
  %s2 = inlined_call_operand.vmem [shape: f32[1,128], index: 2, kind: input, shape index: {}]
  %s3 = inlined_call_operand.vmem [shape: f32[32,128], index: 3, kind: output, shape index: {}]
  %s4 = sld [smem:[#allocation0]]
  $region22: #{content_encoder_forward.22} parent=0
    _
  %s6 = ssub.s32 1, %s4
  %s7 = scalar_select 0, %s6, %s4
  // Predicated region
  $region2: #{content_encoder_forward.22} parent=0 // pred_check
    _
  $region3: #{content_encoder_forward.22} parent=0 // pred_check_branch
    %9 = sbr.rel (0) target = $region5
  $region4: #{content_encoder_forward.22} parent=0 // pred_region
    _
  $region5: #{content_encoder_forward.22} parent=0 // pred_fallthru
    _
  // Predicated region
  $region6: #{content_encoder_forward.22} parent=0 // pred_check
    _
  $region7: #{content_encoder_forward.22} parent=0 // pred_check_branch
    %11 = sbr.rel (0) target = $region9
  $region8: #{content_encoder_forward.22} parent=0 // pred_region
    _
  $region9: #{content_encoder_forward.22} parent=0 // pred_fallthru
    _
  // Predicated region
  $region10: #{content_encoder_forward.22} parent=0 // pred_check
    _
  $region11: #{content_encoder_forward.22} parent=0 // pred_check_branch
    %13 = sbr.rel (0) target = $region13
  $region12: #{content_encoder_forward.22} parent=0 // pred_region
    _
  $region13: #{content_encoder_forward.22} parent=0 // pred_fallthru
    _
  %v14 = vld [vmem:[%s0] sm:$0xf]
  %v15 = vld [vmem:[%s0 + $0x4] sm:$0xf]
  %v16 = vld [vmem:[%s0 + $0x8] sm:$0xf]
  %v17 = vld [vmem:[%s0 + $0xc] sm:$0xf]
  %v18 = vld [vmem:[%s1] sm:$0xf]
  %v19 = vld [vmem:[%s1 + $0x4] sm:$0xf]
  %v20 = vld [vmem:[%s1 + $0x8] sm:$0xf]
  %v21 = vld [vmem:[%s1 + $0xc] sm:$0xf]
  %v22 = vld [vmem:[%s1 + $0x10] sm:$0xf]
  %v23 = vld [vmem:[%s1 + $0x14] sm:$0xf]
  %v24 = vld [vmem:[%s1 + $0x18] sm:$0xf]
  %v25 = vld [vmem:[%s1 + $0x1c] sm:$0xf]
  %v26 = vld [vmem:[%s1 + $0x20] sm:$0xf]
  %v27 = vld [vmem:[%s1 + $0x24] sm:$0xf]
  %v28 = vld [vmem:[%s1 + $0x28] sm:$0xf]
  %v29 = vld [vmem:[%s1 + $0x2c] sm:$0xf]
  %v30 = vld [vmem:[%s1 + $0x30] sm:$0xf]
  %v31 = vld [vmem:[%s1 + $0x34] sm:$0xf]
  %v32 = vld [vmem:[%s1 + $0x38] sm:$0xf]
  %v33 = vld [vmem:[%s1 + $0x3c] sm:$0xf]
  %v34 = vld [vmem:[%s2] sm:$0x1]
  %v36 = vperm.slane %v34, 0
  %v42 = vunpack.c.l.b16 %v14
  %v43 = vunpack.c.l.b16 %v15
  %v44 = vunpack.c.l.b16 %v16
  %v45 = vunpack.c.l.b16 %v17
  %v46 = vpack.c.b16 %v43, %v42
  %v47 = vpack.c.b16 %v45, %v44
  %v66 = vunpack.c.l.b16 %v18
  %v67 = vunpack.c.l.b16 %v19
  %v68 = vunpack.c.l.b16 %v20
  %v69 = vunpack.c.l.b16 %v21
  %v70 = vunpack.c.l.b16 %v22
  %v71 = vunpack.c.l.b16 %v23
  %v72 = vunpack.c.l.b16 %v24
  %v73 = vunpack.c.l.b16 %v25
  %v74 = vunpack.c.l.b16 %v26
  %v75 = vunpack.c.l.b16 %v27
  %v76 = vunpack.c.l.b16 %v28
  %v77 = vunpack.c.l.b16 %v29
  %v78 = vunpack.c.l.b16 %v30
  %v79 = vunpack.c.l.b16 %v31
  %v80 = vunpack.c.l.b16 %v32
  %v81 = vunpack.c.l.b16 %v33
  %v82 = vpack.c.b16 %v67, %v66
  %v83 = vpack.c.b16 %v69, %v68
  %v84 = vpack.c.b16 %v71, %v70
  %v85 = vpack.c.b16 %v73, %v72
  %v86 = vpack.c.b16 %v75, %v74
  %v87 = vpack.c.b16 %v77, %v76
  %v88 = vpack.c.b16 %v79, %v78
  %v89 = vpack.c.b16 %v81, %v80
  %98 = vmatpush.bf16.msra.mxu0 %v89
  %99 = vmatpush.bf16.msra.mxu0 %v88
  %100 = vmatpush.bf16.msra.mxu0 %v87
  %101 = vmatpush.bf16.msra.mxu0 %v86
  %102 = vmatpush.bf16.msra.mxu0 %v85
  %103 = vmatpush.bf16.msra.mxu0 %v84
  %104 = vmatpush.bf16.msra.mxu0 %v83
  %105 = vmatpush.bf16.msra.mxu0 %v82
  %106 = vmatmul.bf16.gmra.mxu0 %v46
  %v107 = vpop.f32.mrf.mxu0
  %v108 = vadd.f32 %v36, %v107
  %v109 = vpop.f32.mrf.mxu0
  %v110 = vadd.f32 %v36, %v109
  %111 = vmatmul.bf16.gmra.mxu0 %v47
  %v112 = vpop.f32.mrf.mxu0
  %v113 = vadd.f32 %v36, %v112
  %v114 = vpop.f32.mrf.mxu0
  %v115 = vadd.f32 %v36, %v114
  %116 = vdwg.mxu0
  %117 = vst [vmem:[%s3] sm:$0xff] %v108
  %118 = vst [vmem:[%s3 + $0x8] sm:$0xff] %v110
  %119 = vst [vmem:[%s3 + $0x10] sm:$0xff] %v113
  %120 = vst [vmem:[%s3 + $0x18] sm:$0xff] %v115
  // Predicated region
  $region14: #{content_encoder_forward.22} parent=0 // pred_check
    _
  $region15: #{content_encoder_forward.22} parent=0 // pred_check_branch
    %122 = sbr.rel (0) target = $region17
  $region16: #{content_encoder_forward.22} parent=0 // pred_region
    _
  $region17: #{content_encoder_forward.22} parent=0 // pred_fallthru
    _
  // Predicated region
  $region18: #{content_encoder_forward.22} parent=0 // pred_check
    _
  $region19: #{content_encoder_forward.22} parent=0 // pred_check_branch
    %124 = sbr.rel (0) target = $region21
  $region20: #{content_encoder_forward.22} parent=0 // pred_region
    _
  $region21: #{content_encoder_forward.22} parent=0 // pred_fallthru
    _

// kernel: content_encoder_forward.24
$region0: #{content_encoder_forward.24}
  #allocation0 [shape = 'u32[]', space=smem, size = 0x4, offset = 0x4, fixed_abs, tag = 'smem constant byte address 0x4 - core index']
  #allocation1 [shape = 'u32[72,128]{1,0:T(1,128)}', space=vmem, size = 0x9000, scoped, tag = 'internal scratch']
  %s0 = inlined_call_operand.vmem [shape: f32[2,16,16], index: 0, kind: input, shape index: {}]
  %s1 = inlined_call_operand.vmem [shape: f32[2,16,16], index: 1, kind: output, shape index: {}]
  %s2 = sld [smem:[#allocation0]]
  $region37: #{content_encoder_forward.24} parent=0
    _
  %s4 = ssub.s32 1, %s2
  %s5 = scalar_select 0, %s4, %s2
  loop: start=0, step=1, limit=4
  $region2: #{content_encoder_forward.24} parent=0 // loop_pre_header
    _
  $region3: #{content_encoder_forward.24} parent=0 // loop_header
    %s7 = sphi 0, %s11
    %p8 = scmp.ge.s32.totalorder %s7, 4
    %s17 = sphi 0, %s19
    %s20 = sphi 0, %s17
    %s21 = sphi 0, %s20
    %s37 = sphi 0, %s21
    %s43 = sphi 0, %s45
    %s46 = sphi 0, %s43
    %s47 = sphi 0, %s46
    %s63 = sphi 0, %s47
  $region4: #{content_encoder_forward.24} parent=0 // loop_header_branch
    %10 = sbr.rel (%p8) target = $region8
  $region5: #{content_encoder_forward.24} parent=0 // loop_body
    %s12 = ssub.s32 %s7, 1
    %s13 = ssub.s32 %s7, 2
    %s14 = sadd.s32 %s7, 1
    %s15 = ssub.s32 %s7, %s14
    %p16 = scmp.eq.s32.totalorder %s15, 0
    %s18 = sadd.s32 %s17, 1
    %s19 = scalar_select %p16, %s17, %s18
    %p22 = pneg %p16
    %p23 = scmp.eq.s32.totalorder %s7, 1
    %p24 = por %p22, %p23
    %p25 = scmp.ne.s32.totalorder %s17, %s20
    %p26 = scmp.eq.s32.totalorder %s7, 0
    %p27 = por %p25, %p26
    %p28 = scmp.ne.s32.totalorder %s17, %s20
    %p29 = scmp.eq.s32.totalorder %s12, 1
    %p30 = por %p28, %p29
    %p31 = scmp.ne.s32.totalorder %s20, %s21
    %p32 = scmp.eq.s32.totalorder %s12, 0
    %p33 = por %p31, %p32
    %p34 = scmp.ne.s32.totalorder %s20, %s21
    %p35 = scmp.eq.s32.totalorder %s13, 1
    %p36 = por %p34, %p35
    %p38 = scmp.ne.s32.totalorder %s21, %s37
    %p39 = scmp.eq.s32.totalorder %s13, 0
    %p40 = por %p38, %p39
    %s41 = ssub.s32 %s7, %s14
    %p42 = scmp.eq.s32.totalorder %s41, 0
    %s44 = sadd.s32 %s43, 1
    %s45 = scalar_select %p42, %s43, %s44
    %p48 = pneg %p42
    %p49 = scmp.eq.s32.totalorder %s7, 1
    %p50 = por %p48, %p49
    %p51 = scmp.ne.s32.totalorder %s43, %s46
    %p52 = scmp.eq.s32.totalorder %s7, 0
    %p53 = por %p51, %p52
    %p54 = scmp.ne.s32.totalorder %s43, %s46
    %p55 = scmp.eq.s32.totalorder %s12, 1
    %p56 = por %p54, %p55
    %p57 = scmp.ne.s32.totalorder %s46, %s47
    %p58 = scmp.eq.s32.totalorder %s12, 0
    %p59 = por %p57, %p58
    %p60 = scmp.ne.s32.totalorder %s46, %s47
    %p61 = scmp.eq.s32.totalorder %s13, 1
    %p62 = por %p60, %p61
    %p64 = scmp.ne.s32.totalorder %s47, %s63
    %p65 = scmp.eq.s32.totalorder %s13, 0
    %p66 = por %p64, %p65
    %p67 = scmp.le.s32.totalorder 1, %s7
    %p68 = scmp.lt.s32.totalorder %s7, 3
    %p69 = pnand %p67, %p68
    %p70 = pneg %p69
    // Predicated region
    $region9: #{content_encoder_forward.24} parent=5 // pred_check
      _
    $region10: #{content_encoder_forward.24} parent=5 // pred_check_branch
      %72 = sbr.rel (%p69) target = $region12
    $region11: #{content_encoder_forward.24} parent=5 // pred_region
      %s73 = ssub.s32 %s7, 1
    $region12: #{content_encoder_forward.24} parent=5 // pred_fallthru
      _
    %p74 = scmp.lt.s32.totalorder %s7, 2
    // Predicated region
    $region13: #{content_encoder_forward.24} parent=5 // pred_check
      %p75 = pneg %p74
    $region14: #{content_encoder_forward.24} parent=5 // pred_check_branch
      %77 = sbr.rel (%p75) target = $region16
    $region15: #{content_encoder_forward.24} parent=5 // pred_region
      // Predicated region
      $region17: #{content_encoder_forward.24} parent=15 // pred_check
        %p78 = pneg %p27
      $region18: #{content_encoder_forward.24} parent=15 // pred_check_branch
        %80 = sbr.rel (%p78) target = $region20
      $region19: #{content_encoder_forward.24} parent=15 // pred_region
        %p81 = scmp.lt.s32.totalorder %s7, 1
        %s82 = scalar_select %p81, %s7, 1
        %s83 = smul.addr %s82, 2
        %s84 = smul.addr %s83, 8
        %s85 = scalar_lea.vmem %s0, %s84
      $region20: #{content_encoder_forward.24} parent=15 // pred_fallthru
        _
    $region16: #{content_encoder_forward.24} parent=5 // pred_fallthru
      _
    %p86 = scmp.le.s32.totalorder 1, %s7
    %p87 = scmp.lt.s32.totalorder %s7, 3
    %p88 = pnand %p86, %p87
    %p89 = pneg %p88
    // Predicated region
    $region21: #{content_encoder_forward.24} parent=5 // pred_check
      _
    $region22: #{content_encoder_forward.24} parent=5 // pred_check_branch
      %91 = sbr.rel (%p88) target = $region24
    $region23: #{content_encoder_forward.24} parent=5 // pred_region
      %s92 = ssub.s32 %s7, 1
      %p93 = scmp.lt.s32.totalorder %s12, 1
      %s94 = scalar_select %p93, %s12, 1
      %s95 = smul.addr %s94, 2
      %s96 = smul.addr %s95, 8
      %s97 = scalar_lea.vmem %s0, %s96
      %p98 = pneg %p33
      %p99 = pneg %p30
      %p100 = pneg %p59
      %p101 = pneg %p56
      %p102 = scmp.lt.s32.totalorder %s12, 1
      %s103 = scalar_select %p102, %s12, 1
      %s104 = smul.addr %s103, 2
      %s105 = smul.addr %s104, 8
      %s106 = scalar_lea.vmem %s1, %s105
      %p107 = scmp.lt.s32.totalorder %s12, 1
      %s108 = scalar_select %p107, %s12, 1
      %s109 = smul.addr %s108, 2
      %s110 = smul.addr %s109, 8
      %s111 = scalar_lea.vmem %s0, %s110
      %p112 = scmp.lt.s32.totalorder %s12, 1
      %s113 = scalar_select %p112, %s12, 1
      %s114 = smul.addr %s113, 2
      %s115 = smul.addr %s114, 8
      %s116 = scalar_lea.vmem %s1, %s115
      %v117 = vld [vmem:[%s111] sm:$0xff]
      %v118 = vld [vmem:[%s111 + $0x8] sm:$0xff]
      %vm119 = vcmask 130048
      %v120 = vsel %vm119, %v117, 0.0
      %v121 = vsel %vm119, %v118, 0.0
      %v122 = vadd.f32 %v120, %v121
      %v123 = vrot.slane %v122, 4
      %v124 = vadd.f32 %v122, %v123
      %v125 = vrot.slane %v124, 2
      %v126 = vadd.f32 %v124, %v125
      %v127 = vrot.slane %v126, 1
      %v128 = vadd.f32 %v126, %v127
      %v129 = vrcp.pop 16.0
      %v130 = vmul.f32 16.0, %v129
      %v131 = vsub.f32 1.0, %v130
      %v132 = vmul.f32 %v129, %v131
      %v133 = vadd.f32 %v129, %v132
      %vm134 = vweird.f32 %v129
      %v135 = vsel %vm134, %v129, %v133
      %v136 = vmul.f32 %v128, %v135
      %v137 = vsub.f32 %v117, %v136
      %v138 = vsub.f32 %v118, %v136
      %v139 = vmul.f32 %v137, %v137
      %v140 = vmul.f32 %v138, %v138
      %v141 = vsel %vm119, %v139, 0.0
      %v142 = vsel %vm119, %v140, 0.0
      %v143 = vadd.f32 %v141, %v142
      %v144 = vrot.slane %v143, 4
      %v145 = vadd.f32 %v143, %v144
      %v146 = vrot.slane %v145, 2
      %v147 = vadd.f32 %v145, %v146
      %v148 = vrot.slane %v147, 1
      %v149 = vadd.f32 %v147, %v148
      %v150 = vmul.f32 %v149, %v135
      %v151 = vadd.f32 %v150, 1e-05
      %v152 = vrsqrt.pop %v151
      %v153 = vmul.f32 %v152, %v151
      %v154 = vmul.f32 %v153, %v152
      %v155 = vmul.f32 0.5, %v154
      %v156 = vsub.f32 1.5, %v155
      %v157 = vmul.f32 %v152, %v156
      %vm158 = vweird.f32 %v151
      %vm159 = vweird.f32 %v152
      %vm160 = vmor %vm158, %vm159
      %v161 = vsel %vm160, %v152, %v157
      %v162 = vmul.f32 %v137, %v161
      %v163 = vmul.f32 %v138, %v161
      %v164 = vmax.f32 %v162, 0.0
      %v165 = vmax.f32 %v163, 0.0
      %166 = vst.msk [vmem:[%s116] sm:$0xff] %vm119, %v164
      %167 = vst.msk [vmem:[%s116 + $0x8] sm:$0xff] %vm119, %v165
      %p168 = scmp.lt.s32.totalorder %s12, 1
      %s169 = scalar_select %p168, %s12, 1
      %s170 = smul.addr %s169, 2
      %s171 = smul.addr %s170, 8
      %s172 = scalar_lea.vmem %s1, %s171
      // Predicated region
      $region25: #{content_encoder_forward.24} parent=23 // pred_check
        %p173 = pneg %p56
      $region26: #{content_encoder_forward.24} parent=23 // pred_check_branch
        %175 = sbr.rel (%p173) target = $region28
      $region27: #{content_encoder_forward.24} parent=23 // pred_region
        _
      $region28: #{content_encoder_forward.24} parent=23 // pred_fallthru
        _
    $region24: #{content_encoder_forward.24} parent=5 // pred_fallthru
      _
    %p176 = scmp.le.s32.totalorder 2, %s7
    // Predicated region
    $region29: #{content_encoder_forward.24} parent=5 // pred_check
      %p177 = pneg %p176
    $region30: #{content_encoder_forward.24} parent=5 // pred_check_branch
      %179 = sbr.rel (%p177) target = $region32
    $region31: #{content_encoder_forward.24} parent=5 // pred_region
      %s180 = ssub.s32 %s7, 2
      // Predicated region
      $region33: #{content_encoder_forward.24} parent=31 // pred_check
        %p181 = pneg %p62
      $region34: #{content_encoder_forward.24} parent=31 // pred_check_branch
        %183 = sbr.rel (%p181) target = $region36
      $region35: #{content_encoder_forward.24} parent=31 // pred_region
        %p184 = scmp.lt.s32.totalorder %s13, 1
        %s185 = scalar_select %p184, %s13, 1
        %s186 = smul.addr %s185, 2
        %s187 = smul.addr %s186, 8
        %s188 = scalar_lea.vmem %s1, %s187
      $region36: #{content_encoder_forward.24} parent=31 // pred_fallthru
        _
    $region32: #{content_encoder_forward.24} parent=5 // pred_fallthru
      _
  $region6: #{content_encoder_forward.24} parent=0 // loop_footer
    %s11 = sadd.s32 1, %s7
  $region7: #{content_encoder_forward.24} parent=0 // loop_footer_branch
    %6 = sbr.rel target = $region3
  $region8: #{content_encoder_forward.24} parent=0 // loop_exit
    _

// kernel: content_encoder_forward.23
$region0: #{content_encoder_forward.23}
  #allocation0 [shape = 'u32[]', space=smem, size = 0x4, offset = 0x4, fixed_abs, tag = 'smem constant byte address 0x4 - core index']
  #allocation1 [shape = 'u32[72,128]{1,0:T(1,128)}', space=vmem, size = 0x9000, scoped, tag = 'internal scratch']
  %s0 = inlined_call_operand.vmem [shape: bf16[32,128], index: 0, kind: input, shape index: {}]
  %s1 = inlined_call_operand.vmem [shape: f32[32,16], index: 1, kind: input, shape index: {}]
  %s2 = inlined_call_operand.vmem [shape: bf16[128,128], index: 2, kind: input, shape index: {}]
  %s3 = inlined_call_operand.vmem [shape: f32[1,128], index: 3, kind: input, shape index: {}]
  %s4 = inlined_call_operand.vmem [shape: f32[32,128], index: 4, kind: output, shape index: {}]
  %s5 = sld [smem:[#allocation0]]
  $region26: #{content_encoder_forward.23} parent=0
    _
  %s7 = ssub.s32 1, %s5
  %s8 = scalar_select 0, %s7, %s5
  // Predicated region
  $region2: #{content_encoder_forward.23} parent=0 // pred_check
    _
  $region3: #{content_encoder_forward.23} parent=0 // pred_check_branch
    %10 = sbr.rel (0) target = $region5
  $region4: #{content_encoder_forward.23} parent=0 // pred_region
    _
  $region5: #{content_encoder_forward.23} parent=0 // pred_fallthru
    _
  // Predicated region
  $region6: #{content_encoder_forward.23} parent=0 // pred_check
    _
  $region7: #{content_encoder_forward.23} parent=0 // pred_check_branch
    %12 = sbr.rel (0) target = $region9
  $region8: #{content_encoder_forward.23} parent=0 // pred_region
    _
  $region9: #{content_encoder_forward.23} parent=0 // pred_fallthru
    _
  // Predicated region
  $region10: #{content_encoder_forward.23} parent=0 // pred_check
    _
  $region11: #{content_encoder_forward.23} parent=0 // pred_check_branch
    %14 = sbr.rel (0) target = $region13
  $region12: #{content_encoder_forward.23} parent=0 // pred_region
    _
  $region13: #{content_encoder_forward.23} parent=0 // pred_fallthru
    _
  // Predicated region
  $region14: #{content_encoder_forward.23} parent=0 // pred_check
    _
  $region15: #{content_encoder_forward.23} parent=0 // pred_check_branch
    %16 = sbr.rel (0) target = $region17
  $region16: #{content_encoder_forward.23} parent=0 // pred_region
    _
  $region17: #{content_encoder_forward.23} parent=0 // pred_fallthru
    _
  %v17 = vld [vmem:[%s1] sm:$0xff]
  %v18 = vld [vmem:[%s1 + $0x8] sm:$0xff]
  %v19 = vld [vmem:[%s1 + $0x10] sm:$0xff]
  %v20 = vld [vmem:[%s1 + $0x18] sm:$0xff]
  %25 = vrot.lane.b32.xlu0 %v17, 16
  %v26 = vpop.permute.xlu0 %25
  %27 = vrot.lane.b32.xlu0 %v18, 16
  %v28 = vpop.permute.xlu0 %27
  %29 = vrot.lane.b32.xlu0 %v19, 16
  %v30 = vpop.permute.xlu0 %29
  %31 = vrot.lane.b32.xlu0 %v20, 16
  %v32 = vpop.permute.xlu0 %31
  %37 = vrot.lane.b32.xlu0 %v17, 32
  %v38 = vpop.permute.xlu0 %37
  %39 = vrot.lane.b32.xlu0 %v18, 32
  %v40 = vpop.permute.xlu0 %39
  %41 = vrot.lane.b32.xlu0 %v19, 32
  %v42 = vpop.permute.xlu0 %41
  %43 = vrot.lane.b32.xlu0 %v20, 32
  %v44 = vpop.permute.xlu0 %43
  %49 = vrot.lane.b32.xlu0 %v17, 48
  %v50 = vpop.permute.xlu0 %49
  %51 = vrot.lane.b32.xlu0 %v18, 48
  %v52 = vpop.permute.xlu0 %51
  %53 = vrot.lane.b32.xlu0 %v19, 48
  %v54 = vpop.permute.xlu0 %53
  %55 = vrot.lane.b32.xlu0 %v20, 48
  %v56 = vpop.permute.xlu0 %55
  %61 = vrot.lane.b32.xlu0 %v17, 64
  %v62 = vpop.permute.xlu0 %61
  %63 = vrot.lane.b32.xlu0 %v18, 64
  %v64 = vpop.permute.xlu0 %63
  %65 = vrot.lane.b32.xlu0 %v19, 64
  %v66 = vpop.permute.xlu0 %65
  %67 = vrot.lane.b32.xlu0 %v20, 64
  %v68 = vpop.permute.xlu0 %67
  %73 = vrot.lane.b32.xlu0 %v17, 80
  %v74 = vpop.permute.xlu0 %73
  %75 = vrot.lane.b32.xlu0 %v18, 80
  %v76 = vpop.permute.xlu0 %75
  %77 = vrot.lane.b32.xlu0 %v19, 80
  %v78 = vpop.permute.xlu0 %77
  %79 = vrot.lane.b32.xlu0 %v20, 80
  %v80 = vpop.permute.xlu0 %79
  %85 = vrot.lane.b32.xlu0 %v17, 96
  %v86 = vpop.permute.xlu0 %85
  %87 = vrot.lane.b32.xlu0 %v18, 96
  %v88 = vpop.permute.xlu0 %87
  %89 = vrot.lane.b32.xlu0 %v19, 96
  %v90 = vpop.permute.xlu0 %89
  %91 = vrot.lane.b32.xlu0 %v20, 96
  %v92 = vpop.permute.xlu0 %91
  %97 = vrot.lane.b32.xlu0 %v17, 112
  %v98 = vpop.permute.xlu0 %97
  %99 = vrot.lane.b32.xlu0 %v18, 112
  %v100 = vpop.permute.xlu0 %99
  %101 = vrot.lane.b32.xlu0 %v19, 112
  %v102 = vpop.permute.xlu0 %101
  %103 = vrot.lane.b32.xlu0 %v20, 112
  %v104 = vpop.permute.xlu0 %103
  %vm109 = vcmask 130048
  %v110 = vsel %vm109, %v17, %v26
  %v111 = vsel %vm109, %v18, %v28
  %v112 = vsel %vm109, %v19, %v30
  %v113 = vsel %vm109, %v20, %v32
  %vm114 = vcmask 261120
  %v115 = vsel %vm114, %v110, %v38
  %v116 = vsel %vm114, %v111, %v40
  %v117 = vsel %vm114, %v112, %v42
  %v118 = vsel %vm114, %v113, %v44
  %vm119 = vcmask 392192
  %v120 = vsel %vm119, %v115, %v50
  %v121 = vsel %vm119, %v116, %v52
  %v122 = vsel %vm119, %v117, %v54
  %v123 = vsel %vm119, %v118, %v56
  %vm124 = vcmask 523264
  %v125 = vsel %vm124, %v120, %v62
  %v126 = vsel %vm124, %v121, %v64
  %v127 = vsel %vm124, %v122, %v66
  %v128 = vsel %vm124, %v123, %v68
  %vm129 = vcmask 654336
  %v130 = vsel %vm129, %v125, %v74
  %v131 = vsel %vm129, %v126, %v76
  %v132 = vsel %vm129, %v127, %v78
  %v133 = vsel %vm129, %v128, %v80
  %vm134 = vcmask 785408
  %v135 = vsel %vm134, %v130, %v86
  %v136 = vsel %vm134, %v131, %v88
  %v137 = vsel %vm134, %v132, %v90
  %v138 = vsel %vm134, %v133, %v92
  %vm139 = vcmask 916480
  %v140 = vsel %vm139, %v135, %v98
  %v141 = vsel %vm139, %v136, %v100
  %v142 = vsel %vm139, %v137, %v102
  %v143 = vsel %vm139, %v138, %v104
  %v144 = vld [vmem:[%s0] sm:$0xf]
  %v145 = vld [vmem:[%s0 + $0x4] sm:$0xf]
  %v146 = vld [vmem:[%s0 + $0x8] sm:$0xf]
  %v147 = vld [vmem:[%s0 + $0xc] sm:$0xf]
  %v148 = vunpack.c.l.bf16 %v144
  %v149 = vunpack.c.l.bf16 %v145
  %v150 = vunpack.c.l.bf16 %v146
  %v151 = vunpack.c.l.bf16 %v147
  %v152 = vmul.f32 %v148, %v140
  %v153 = vmul.f32 %v149, %v141
  %v154 = vmul.f32 %v150, %v142
  %v155 = vmul.f32 %v151, %v143
  %v156 = vpack.c.bf16 %v153, %v152
  %v157 = vpack.c.bf16 %v155, %v154
  %v158 = vld [vmem:[%s2] sm:$0xf]
  %v159 = vld [vmem:[%s2 + $0x4] sm:$0xf]
  %v160 = vld [vmem:[%s2 + $0x8] sm:$0xf]
  %v161 = vld [vmem:[%s2 + $0xc] sm:$0xf]
  %v162 = vld [vmem:[%s2 + $0x10] sm:$0xf]
  %v163 = vld [vmem:[%s2 + $0x14] sm:$0xf]
  %v164 = vld [vmem:[%s2 + $0x18] sm:$0xf]
  %v165 = vld [vmem:[%s2 + $0x1c] sm:$0xf]
  %v166 = vld [vmem:[%s2 + $0x20] sm:$0xf]
  %v167 = vld [vmem:[%s2 + $0x24] sm:$0xf]
  %v168 = vld [vmem:[%s2 + $0x28] sm:$0xf]
  %v169 = vld [vmem:[%s2 + $0x2c] sm:$0xf]
  %v170 = vld [vmem:[%s2 + $0x30] sm:$0xf]
  %v171 = vld [vmem:[%s2 + $0x34] sm:$0xf]
  %v172 = vld [vmem:[%s2 + $0x38] sm:$0xf]
  %v173 = vld [vmem:[%s2 + $0x3c] sm:$0xf]
  %v174 = vld [vmem:[%s3] sm:$0x1]
  %v176 = vperm.slane %v174, 0
  %v194 = vunpack.c.l.b16 %v158
  %v195 = vunpack.c.l.b16 %v159
  %v196 = vunpack.c.l.b16 %v160
  %v197 = vunpack.c.l.b16 %v161
  %v198 = vunpack.c.l.b16 %v162
  %v199 = vunpack.c.l.b16 %v163
  %v200 = vunpack.c.l.b16 %v164
  %v201 = vunpack.c.l.b16 %v165
  %v202 = vunpack.c.l.b16 %v166
  %v203 = vunpack.c.l.b16 %v167
  %v204 = vunpack.c.l.b16 %v168
  %v205 = vunpack.c.l.b16 %v169
  %v206 = vunpack.c.l.b16 %v170
  %v207 = vunpack.c.l.b16 %v171
  %v208 = vunpack.c.l.b16 %v172
  %v209 = vunpack.c.l.b16 %v173
  %v210 = vpack.c.b16 %v195, %v194
  %v211 = vpack.c.b16 %v197, %v196
  %v212 = vpack.c.b16 %v199, %v198
  %v213 = vpack.c.b16 %v201, %v200
  %v214 = vpack.c.b16 %v203, %v202
  %v215 = vpack.c.b16 %v205, %v204
  %v216 = vpack.c.b16 %v207, %v206
  %v217 = vpack.c.b16 %v209, %v208
  %226 = vmatpush.bf16.msra.mxu0 %v217
  %227 = vmatpush.bf16.msra.mxu0 %v216
  %228 = vmatpush.bf16.msra.mxu0 %v215
  %229 = vmatpush.bf16.msra.mxu0 %v214
  %230 = vmatpush.bf16.msra.mxu0 %v213
  %231 = vmatpush.bf16.msra.mxu0 %v212
  %232 = vmatpush.bf16.msra.mxu0 %v211
  %233 = vmatpush.bf16.msra.mxu0 %v210
  %234 = vmatmul.bf16.gmra.mxu0 %v156
  %v235 = vpop.f32.mrf.mxu0
  %v236 = vadd.f32 %v176, %v235
  %v237 = vpop.f32.mrf.mxu0
  %v238 = vadd.f32 %v176, %v237
  %239 = vmatmul.bf16.gmra.mxu0 %v157
  %v240 = vpop.f32.mrf.mxu0
  %v241 = vadd.f32 %v176, %v240
  %v242 = vpop.f32.mrf.mxu0
  %v243 = vadd.f32 %v176, %v242
  %244 = vdwg.mxu0
  %245 = vst [vmem:[%s4] sm:$0xff] %v236
  %246 = vst [vmem:[%s4 + $0x8] sm:$0xff] %v238
  %247 = vst [vmem:[%s4 + $0x10] sm:$0xff] %v241
  %248 = vst [vmem:[%s4 + $0x18] sm:$0xff] %v243
  // Predicated region
  $region18: #{content_encoder_forward.23} parent=0 // pred_check
    _
  $region19: #{content_encoder_forward.23} parent=0 // pred_check_branch
    %250 = sbr.rel (0) target = $region21
  $region20: #{content_encoder_forward.23} parent=0 // pred_region
    _
  $region21: #{content_encoder_forward.23} parent=0 // pred_fallthru
    _
  // Predicated region
  $region22: #{content_encoder_forward.23} parent=0 // pred_check
    _
  $region23: #{content_encoder_forward.23} parent=0 // pred_check_branch
    %252 = sbr.rel (0) target = $region25
  $region24: #{content_encoder_forward.23} parent=0 // pred_region
    _
  $region25: #{content_encoder_forward.23} parent=0 // pred_fallthru
    _

// kernel: content_encoder_forward.25
$region0: #{content_encoder_forward.25}
  #allocation0 [shape = 'u32[]', space=smem, size = 0x4, offset = 0x4, fixed_abs, tag = 'smem constant byte address 0x4 - core index']
  #allocation1 [shape = 'u32[72,128]{1,0:T(1,128)}', space=vmem, size = 0x9000, scoped, tag = 'internal scratch']
  %s0 = inlined_call_operand.vmem [shape: bf16[8,256], index: 0, kind: input, shape index: {}]
  %s1 = inlined_call_operand.vmem [shape: bf16[256,128], index: 1, kind: input, shape index: {}]
  %s2 = inlined_call_operand.vmem [shape: f32[1,128], index: 2, kind: input, shape index: {}]
  %s3 = inlined_call_operand.vmem [shape: f32[8,128], index: 3, kind: output, shape index: {}]
  %s4 = sld [smem:[#allocation0]]
  $region22: #{content_encoder_forward.25} parent=0
    _
  %s6 = ssub.s32 1, %s4
  %s7 = scalar_select 0, %s6, %s4
  // Predicated region
  $region2: #{content_encoder_forward.25} parent=0 // pred_check
    _
  $region3: #{content_encoder_forward.25} parent=0 // pred_check_branch
    %9 = sbr.rel (0) target = $region5
  $region4: #{content_encoder_forward.25} parent=0 // pred_region
    _
  $region5: #{content_encoder_forward.25} parent=0 // pred_fallthru
    _
  // Predicated region
  $region6: #{content_encoder_forward.25} parent=0 // pred_check
    _
  $region7: #{content_encoder_forward.25} parent=0 // pred_check_branch
    %11 = sbr.rel (0) target = $region9
  $region8: #{content_encoder_forward.25} parent=0 // pred_region
    _
  $region9: #{content_encoder_forward.25} parent=0 // pred_fallthru
    _
  // Predicated region
  $region10: #{content_encoder_forward.25} parent=0 // pred_check
    _
  $region11: #{content_encoder_forward.25} parent=0 // pred_check_branch
    %13 = sbr.rel (0) target = $region13
  $region12: #{content_encoder_forward.25} parent=0 // pred_region
    _
  $region13: #{content_encoder_forward.25} parent=0 // pred_fallthru
    _
  %v14 = vld [vmem:[%s0] sm:$0xff]
  %v15 = vld [vmem:[%s1] sm:$0xf]
  %v16 = vld [vmem:[%s1 + $0x4] sm:$0xf]
  %v17 = vld [vmem:[%s1 + $0x8] sm:$0xf]
  %v18 = vld [vmem:[%s1 + $0xc] sm:$0xf]
  %v19 = vld [vmem:[%s1 + $0x10] sm:$0xf]
  %v20 = vld [vmem:[%s1 + $0x14] sm:$0xf]
  %v21 = vld [vmem:[%s1 + $0x18] sm:$0xf]
  %v22 = vld [vmem:[%s1 + $0x1c] sm:$0xf]
  %v23 = vld [vmem:[%s1 + $0x20] sm:$0xf]
  %v24 = vld [vmem:[%s1 + $0x24] sm:$0xf]
  %v25 = vld [vmem:[%s1 + $0x28] sm:$0xf]
  %v26 = vld [vmem:[%s1 + $0x2c] sm:$0xf]
  %v27 = vld [vmem:[%s1 + $0x30] sm:$0xf]
  %v28 = vld [vmem:[%s1 + $0x34] sm:$0xf]
  %v29 = vld [vmem:[%s1 + $0x38] sm:$0xf]
  %v30 = vld [vmem:[%s1 + $0x3c] sm:$0xf]
  %v31 = vld [vmem:[%s1 + $0x40] sm:$0xf]
  %v32 = vld [vmem:[%s1 + $0x44] sm:$0xf]
  %v33 = vld [vmem:[%s1 + $0x48] sm:$0xf]
  %v34 = vld [vmem:[%s1 + $0x4c] sm:$0xf]
  %v35 = vld [vmem:[%s1 + $0x50] sm:$0xf]
  %v36 = vld [vmem:[%s1 + $0x54] sm:$0xf]
  %v37 = vld [vmem:[%s1 + $0x58] sm:$0xf]
  %v38 = vld [vmem:[%s1 + $0x5c] sm:$0xf]
  %v39 = vld [vmem:[%s1 + $0x60] sm:$0xf]
  %v40 = vld [vmem:[%s1 + $0x64] sm:$0xf]
  %v41 = vld [vmem:[%s1 + $0x68] sm:$0xf]
  %v42 = vld [vmem:[%s1 + $0x6c] sm:$0xf]
  %v43 = vld [vmem:[%s1 + $0x70] sm:$0xf]
  %v44 = vld [vmem:[%s1 + $0x74] sm:$0xf]
  %v45 = vld [vmem:[%s1 + $0x78] sm:$0xf]
  %v46 = vld [vmem:[%s1 + $0x7c] sm:$0xf]
  %v47 = vld [vmem:[%s2] sm:$0x1]
  %v49 = vperm.slane %v47, 0
  %v52 = vunpack.c.l.b16 %v14
  %v53 = vunpack.c.h.b16 %v14
  %v54 = vpack.c.b16 %v52, %v52
  %v55 = vpack.c.b16 %v53, %v53
  %v90 = vunpack.c.l.b16 %v15
  %v91 = vunpack.c.l.b16 %v16
  %v92 = vunpack.c.l.b16 %v17
  %v93 = vunpack.c.l.b16 %v18
  %v94 = vunpack.c.l.b16 %v19
  %v95 = vunpack.c.l.b16 %v20
  %v96 = vunpack.c.l.b16 %v21
  %v97 = vunpack.c.l.b16 %v22
  %v98 = vunpack.c.l.b16 %v23
  %v99 = vunpack.c.l.b16 %v24
  %v100 = vunpack.c.l.b16 %v25
  %v101 = vunpack.c.l.b16 %v26
  %v102 = vunpack.c.l.b16 %v27
  %v103 = vunpack.c.l.b16 %v28
  %v104 = vunpack.c.l.b16 %v29
  %v105 = vunpack.c.l.b16 %v30
  %v106 = vunpack.c.l.b16 %v31
  %v107 = vunpack.c.l.b16 %v32
  %v108 = vunpack.c.l.b16 %v33
  %v109 = vunpack.c.l.b16 %v34
  %v110 = vunpack.c.l.b16 %v35
  %v111 = vunpack.c.l.b16 %v36
  %v112 = vunpack.c.l.b16 %v37
  %v113 = vunpack.c.l.b16 %v38
  %v114 = vunpack.c.l.b16 %v39
  %v115 = vunpack.c.l.b16 %v40
  %v116 = vunpack.c.l.b16 %v41
  %v117 = vunpack.c.l.b16 %v42
  %v118 = vunpack.c.l.b16 %v43
  %v119 = vunpack.c.l.b16 %v44
  %v120 = vunpack.c.l.b16 %v45
  %v121 = vunpack.c.l.b16 %v46
  %v122 = vpack.c.b16 %v91, %v90
  %v123 = vpack.c.b16 %v93, %v92
  %v124 = vpack.c.b16 %v95, %v94
  %v125 = vpack.c.b16 %v97, %v96
  %v126 = vpack.c.b16 %v99, %v98
  %v127 = vpack.c.b16 %v101, %v100
  %v128 = vpack.c.b16 %v103, %v102
  %v129 = vpack.c.b16 %v105, %v104
  %v130 = vpack.c.b16 %v107, %v106
  %v131 = vpack.c.b16 %v109, %v108
  %v132 = vpack.c.b16 %v111, %v110
  %v133 = vpack.c.b16 %v113, %v112
  %v134 = vpack.c.b16 %v115, %v114
  %v135 = vpack.c.b16 %v117, %v116
  %v136 = vpack.c.b16 %v119, %v118
  %v137 = vpack.c.b16 %v121, %v120
  %154 = vmatpush.bf16.msra.mxu0 %v129
  %155 = vmatpush.bf16.msra.mxu0 %v128
  %156 = vmatpush.bf16.msra.mxu0 %v127
  %157 = vmatpush.bf16.msra.mxu0 %v126
  %158 = vmatpush.bf16.msra.mxu0 %v125
  %159 = vmatpush.bf16.msra.mxu0 %v124
  %160 = vmatpush.bf16.msra.mxu0 %v123
  %161 = vmatpush.bf16.msra.mxu0 %v122
  %162 = vmatmul.bf16.gmra.mxu0 %v54
  %v163 = vpop.f32.mrf.mxu0
  %v164 = vadd.f32 %v49, %v163
  %v165 = vpop.f32.mrf.mxu0
  %166 = vdwg.mxu0
  %167 = vmatpush.bf16.msra.mxu0 %v137
  %168 = vmatpush.bf16.msra.mxu0 %v136
  %169 = vmatpush.bf16.msra.mxu0 %v135
  %170 = vmatpush.bf16.msra.mxu0 %v134
  %171 = vmatpush.bf16.msra.mxu0 %v133
  %172 = vmatpush.bf16.msra.mxu0 %v132
  %173 = vmatpush.bf16.msra.mxu0 %v131
  %174 = vmatpush.bf16.msra.mxu0 %v130
  %175 = vmatmul.bf16.gmra.mxu0 %v55
  %v176 = vpop.f32.mrf.mxu0
  %v177 = vadd.f32 %v164, %v176
  %v178 = vpop.f32.mrf.mxu0
  %179 = vdwg.mxu0
  %180 = vst [vmem:[%s3] sm:$0xff] %v177
  // Predicated region
  $region14: #{content_encoder_forward.25} parent=0 // pred_check
    _
  $region15: #{content_encoder_forward.25} parent=0 // pred_check_branch
    %182 = sbr.rel (0) target = $region17
  $region16: #{content_encoder_forward.25} parent=0 // pred_region
    _
  $region17: #{content_encoder_forward.25} parent=0 // pred_fallthru
    _
  // Predicated region
  $region18: #{content_encoder_forward.25} parent=0 // pred_check
    _
  $region19: #{content_encoder_forward.25} parent=0 // pred_check_branch
    %184 = sbr.rel (0) target = $region21
  $region20: #{content_encoder_forward.25} parent=0 // pred_region
    _
  $region21: #{content_encoder_forward.25} parent=0 // pred_fallthru
    _

// kernel: content_encoder_forward.26
$region0: #{content_encoder_forward.26}
  #allocation0 [shape = 'u32[]', space=smem, size = 0x4, offset = 0x4, fixed_abs, tag = 'smem constant byte address 0x4 - core index']
  #allocation1 [shape = 'u32[72,128]{1,0:T(1,128)}', space=vmem, size = 0x9000, scoped, tag = 'internal scratch']
  %s0 = inlined_call_operand.vmem [shape: bf16[8,256], index: 0, kind: input, shape index: {}]
  %s1 = inlined_call_operand.vmem [shape: f32[8,16], index: 1, kind: input, shape index: {}]
  %s2 = inlined_call_operand.vmem [shape: bf16[256,128], index: 2, kind: input, shape index: {}]
  %s3 = inlined_call_operand.vmem [shape: f32[1,128], index: 3, kind: input, shape index: {}]
  %s4 = inlined_call_operand.vmem [shape: f32[8,128], index: 4, kind: output, shape index: {}]
  %s5 = sld [smem:[#allocation0]]
  $region26: #{content_encoder_forward.26} parent=0
    _
  %s7 = ssub.s32 1, %s5
  %s8 = scalar_select 0, %s7, %s5
  // Predicated region
  $region2: #{content_encoder_forward.26} parent=0 // pred_check
    _
  $region3: #{content_encoder_forward.26} parent=0 // pred_check_branch
    %10 = sbr.rel (0) target = $region5
  $region4: #{content_encoder_forward.26} parent=0 // pred_region
    _
  $region5: #{content_encoder_forward.26} parent=0 // pred_fallthru
    _
  // Predicated region
  $region6: #{content_encoder_forward.26} parent=0 // pred_check
    _
  $region7: #{content_encoder_forward.26} parent=0 // pred_check_branch
    %12 = sbr.rel (0) target = $region9
  $region8: #{content_encoder_forward.26} parent=0 // pred_region
    _
  $region9: #{content_encoder_forward.26} parent=0 // pred_fallthru
    _
  // Predicated region
  $region10: #{content_encoder_forward.26} parent=0 // pred_check
    _
  $region11: #{content_encoder_forward.26} parent=0 // pred_check_branch
    %14 = sbr.rel (0) target = $region13
  $region12: #{content_encoder_forward.26} parent=0 // pred_region
    _
  $region13: #{content_encoder_forward.26} parent=0 // pred_fallthru
    _
  // Predicated region
  $region14: #{content_encoder_forward.26} parent=0 // pred_check
    _
  $region15: #{content_encoder_forward.26} parent=0 // pred_check_branch
    %16 = sbr.rel (0) target = $region17
  $region16: #{content_encoder_forward.26} parent=0 // pred_region
    _
  $region17: #{content_encoder_forward.26} parent=0 // pred_fallthru
    _
  %v17 = vld [vmem:[%s1] sm:$0xff]
  %19 = vrot.lane.b32.xlu0 %v17, 16
  %v20 = vpop.permute.xlu0 %19
  %22 = vrot.lane.b32.xlu0 %v17, 32
  %v23 = vpop.permute.xlu0 %22
  %25 = vrot.lane.b32.xlu0 %v17, 48
  %v26 = vpop.permute.xlu0 %25
  %28 = vrot.lane.b32.xlu0 %v17, 64
  %v29 = vpop.permute.xlu0 %28
  %31 = vrot.lane.b32.xlu0 %v17, 80
  %v32 = vpop.permute.xlu0 %31
  %34 = vrot.lane.b32.xlu0 %v17, 96
  %v35 = vpop.permute.xlu0 %34
  %37 = vrot.lane.b32.xlu0 %v17, 112
  %v38 = vpop.permute.xlu0 %37
  %vm40 = vcmask 130048
  %v41 = vsel %vm40, %v17, %v20
  %vm42 = vcmask 261120
  %v43 = vsel %vm42, %v41, %v23
  %vm44 = vcmask 392192
  %v45 = vsel %vm44, %v43, %v26
  %vm46 = vcmask 523264
  %v47 = vsel %vm46, %v45, %v29
  %vm48 = vcmask 654336
  %v49 = vsel %vm48, %v47, %v32
  %vm50 = vcmask 785408
  %v51 = vsel %vm50, %v49, %v35
  %vm52 = vcmask 916480
  %v53 = vsel %vm52, %v51, %v38
  %v54 = vld [vmem:[%s0] sm:$0xff]
  %v55 = vunpack.c.l.bf16 %v54
  %v56 = vunpack.c.h.bf16 %v54
  %v57 = vmul.f32 %v55, %v53
  %v58 = vmul.f32 %v56, %v53
  %v59 = vpack.c.bf16 %v57, %v57
  %v60 = vpack.c.bf16 %v58, %v58
  %v61 = vld [vmem:[%s2] sm:$0xf]
  %v62 = vld [vmem:[%s2 + $0x4] sm:$0xf]
  %v63 = vld [vmem:[%s2 + $0x8] sm:$0xf]
  %v64 = vld [vmem:[%s2 + $0xc] sm:$0xf]
  %v65 = vld [vmem:[%s2 + $0x10] sm:$0xf]
  %v66 = vld [vmem:[%s2 + $0x14] sm:$0xf]
  %v67 = vld [vmem:[%s2 + $0x18] sm:$0xf]
  %v68 = vld [vmem:[%s2 + $0x1c] sm:$0xf]
  %v69 = vld [vmem:[%s2 + $0x20] sm:$0xf]
  %v70 = vld [vmem:[%s2 + $0x24] sm:$0xf]
  %v71 = vld [vmem:[%s2 + $0x28] sm:$0xf]
  %v72 = vld [vmem:[%s2 + $0x2c] sm:$0xf]
  %v73 = vld [vmem:[%s2 + $0x30] sm:$0xf]
  %v74 = vld [vmem:[%s2 + $0x34] sm:$0xf]
  %v75 = vld [vmem:[%s2 + $0x38] sm:$0xf]
  %v76 = vld [vmem:[%s2 + $0x3c] sm:$0xf]
  %v77 = vld [vmem:[%s2 + $0x40] sm:$0xf]
  %v78 = vld [vmem:[%s2 + $0x44] sm:$0xf]
  %v79 = vld [vmem:[%s2 + $0x48] sm:$0xf]
  %v80 = vld [vmem:[%s2 + $0x4c] sm:$0xf]
  %v81 = vld [vmem:[%s2 + $0x50] sm:$0xf]
  %v82 = vld [vmem:[%s2 + $0x54] sm:$0xf]
  %v83 = vld [vmem:[%s2 + $0x58] sm:$0xf]
  %v84 = vld [vmem:[%s2 + $0x5c] sm:$0xf]
  %v85 = vld [vmem:[%s2 + $0x60] sm:$0xf]
  %v86 = vld [vmem:[%s2 + $0x64] sm:$0xf]
  %v87 = vld [vmem:[%s2 + $0x68] sm:$0xf]
  %v88 = vld [vmem:[%s2 + $0x6c] sm:$0xf]
  %v89 = vld [vmem:[%s2 + $0x70] sm:$0xf]
  %v90 = vld [vmem:[%s2 + $0x74] sm:$0xf]
  %v91 = vld [vmem:[%s2 + $0x78] sm:$0xf]
  %v92 = vld [vmem:[%s2 + $0x7c] sm:$0xf]
  %v93 = vld [vmem:[%s3] sm:$0x1]
  %v95 = vperm.slane %v93, 0
  %v129 = vunpack.c.l.b16 %v61
  %v130 = vunpack.c.l.b16 %v62
  %v131 = vunpack.c.l.b16 %v63
  %v132 = vunpack.c.l.b16 %v64
  %v133 = vunpack.c.l.b16 %v65
  %v134 = vunpack.c.l.b16 %v66
  %v135 = vunpack.c.l.b16 %v67
  %v136 = vunpack.c.l.b16 %v68
  %v137 = vunpack.c.l.b16 %v69
  %v138 = vunpack.c.l.b16 %v70
  %v139 = vunpack.c.l.b16 %v71
  %v140 = vunpack.c.l.b16 %v72
  %v141 = vunpack.c.l.b16 %v73
  %v142 = vunpack.c.l.b16 %v74
  %v143 = vunpack.c.l.b16 %v75
  %v144 = vunpack.c.l.b16 %v76
  %v145 = vunpack.c.l.b16 %v77
  %v146 = vunpack.c.l.b16 %v78
  %v147 = vunpack.c.l.b16 %v79
  %v148 = vunpack.c.l.b16 %v80
  %v149 = vunpack.c.l.b16 %v81
  %v150 = vunpack.c.l.b16 %v82
  %v151 = vunpack.c.l.b16 %v83
  %v152 = vunpack.c.l.b16 %v84
  %v153 = vunpack.c.l.b16 %v85
  %v154 = vunpack.c.l.b16 %v86
  %v155 = vunpack.c.l.b16 %v87
  %v156 = vunpack.c.l.b16 %v88
  %v157 = vunpack.c.l.b16 %v89
  %v158 = vunpack.c.l.b16 %v90
  %v159 = vunpack.c.l.b16 %v91
  %v160 = vunpack.c.l.b16 %v92
  %v161 = vpack.c.b16 %v130, %v129
  %v162 = vpack.c.b16 %v132, %v131
  %v163 = vpack.c.b16 %v134, %v133
  %v164 = vpack.c.b16 %v136, %v135
  %v165 = vpack.c.b16 %v138, %v137
  %v166 = vpack.c.b16 %v140, %v139
  %v167 = vpack.c.b16 %v142, %v141
  %v168 = vpack.c.b16 %v144, %v143
  %v169 = vpack.c.b16 %v146, %v145
  %v170 = vpack.c.b16 %v148, %v147
  %v171 = vpack.c.b16 %v150, %v149
  %v172 = vpack.c.b16 %v152, %v151
  %v173 = vpack.c.b16 %v154, %v153
  %v174 = vpack.c.b16 %v156, %v155
  %v175 = vpack.c.b16 %v158, %v157
  %v176 = vpack.c.b16 %v160, %v159
  %193 = vmatpush.bf16.msra.mxu0 %v168
  %194 = vmatpush.bf16.msra.mxu0 %v167
  %195 = vmatpush.bf16.msra.mxu0 %v166
  %196 = vmatpush.bf16.msra.mxu0 %v165
  %197 = vmatpush.bf16.msra.mxu0 %v164
  %198 = vmatpush.bf16.msra.mxu0 %v163
  %199 = vmatpush.bf16.msra.mxu0 %v162
  %200 = vmatpush.bf16.msra.mxu0 %v161
  %201 = vmatmul.bf16.gmra.mxu0 %v59
  %v202 = vpop.f32.mrf.mxu0
  %v203 = vadd.f32 %v95, %v202
  %v204 = vpop.f32.mrf.mxu0
  %205 = vdwg.mxu0
  %206 = vmatpush.bf16.msra.mxu0 %v176
  %207 = vmatpush.bf16.msra.mxu0 %v175
  %208 = vmatpush.bf16.msra.mxu0 %v174
  %209 = vmatpush.bf16.msra.mxu0 %v173
  %210 = vmatpush.bf16.msra.mxu0 %v172
  %211 = vmatpush.bf16.msra.mxu0 %v171
  %212 = vmatpush.bf16.msra.mxu0 %v170
  %213 = vmatpush.bf16.msra.mxu0 %v169
  %214 = vmatmul.bf16.gmra.mxu0 %v60
  %v215 = vpop.f32.mrf.mxu0
  %v216 = vadd.f32 %v203, %v215
  %v217 = vpop.f32.mrf.mxu0
  %218 = vdwg.mxu0
  %219 = vst [vmem:[%s4] sm:$0xff] %v216
  // Predicated region
  $region18: #{content_encoder_forward.26} parent=0 // pred_check
    _
  $region19: #{content_encoder_forward.26} parent=0 // pred_check_branch
    %221 = sbr.rel (0) target = $region21
  $region20: #{content_encoder_forward.26} parent=0 // pred_region
    _
  $region21: #{content_encoder_forward.26} parent=0 // pred_fallthru
    _
  // Predicated region
  $region22: #{content_encoder_forward.26} parent=0 // pred_check
    _
  $region23: #{content_encoder_forward.26} parent=0 // pred_check_branch
    %223 = sbr.rel (0) target = $region25
  $region24: #{content_encoder_forward.26} parent=0 // pred_region
    _
  $region25: #{content_encoder_forward.26} parent=0 // pred_fallthru
    _

// kernel: content_encoder_forward.27
$region0: #{content_encoder_forward.27}
  #allocation0 [shape = 'u32[]', space=smem, size = 0x4, offset = 0x4, fixed_abs, tag = 'smem constant byte address 0x4 - core index']
  #allocation1 [shape = 'u32[72,128]{1,0:T(1,128)}', space=vmem, size = 0x9000, scoped, tag = 'internal scratch']
  %s0 = inlined_call_operand.vmem [shape: f32[2,4,32], index: 0, kind: input, shape index: {}]
  %s1 = inlined_call_operand.vmem [shape: f32[2,4,32], index: 1, kind: output, shape index: {}]
  %s2 = sld [smem:[#allocation0]]
  $region37: #{content_encoder_forward.27} parent=0
    _
  %s4 = ssub.s32 1, %s2
  %s5 = scalar_select 0, %s4, %s2
  loop: start=0, step=1, limit=4
  $region2: #{content_encoder_forward.27} parent=0 // loop_pre_header
    _
  $region3: #{content_encoder_forward.27} parent=0 // loop_header
    %s7 = sphi 0, %s11
    %p8 = scmp.ge.s32.totalorder %s7, 4
    %s17 = sphi 0, %s19
    %s20 = sphi 0, %s17
    %s21 = sphi 0, %s20
    %s37 = sphi 0, %s21
    %s43 = sphi 0, %s45
    %s46 = sphi 0, %s43
    %s47 = sphi 0, %s46
    %s63 = sphi 0, %s47
  $region4: #{content_encoder_forward.27} parent=0 // loop_header_branch
    %10 = sbr.rel (%p8) target = $region8
  $region5: #{content_encoder_forward.27} parent=0 // loop_body
    %s12 = ssub.s32 %s7, 1
    %s13 = ssub.s32 %s7, 2
    %s14 = sadd.s32 %s7, 1
    %s15 = ssub.s32 %s7, %s14
    %p16 = scmp.eq.s32.totalorder %s15, 0
    %s18 = sadd.s32 %s17, 1
    %s19 = scalar_select %p16, %s17, %s18
    %p22 = pneg %p16
    %p23 = scmp.eq.s32.totalorder %s7, 1
    %p24 = por %p22, %p23
    %p25 = scmp.ne.s32.totalorder %s17, %s20
    %p26 = scmp.eq.s32.totalorder %s7, 0
    %p27 = por %p25, %p26
    %p28 = scmp.ne.s32.totalorder %s17, %s20
    %p29 = scmp.eq.s32.totalorder %s12, 1
    %p30 = por %p28, %p29
    %p31 = scmp.ne.s32.totalorder %s20, %s21
    %p32 = scmp.eq.s32.totalorder %s12, 0
    %p33 = por %p31, %p32
    %p34 = scmp.ne.s32.totalorder %s20, %s21
    %p35 = scmp.eq.s32.totalorder %s13, 1
    %p36 = por %p34, %p35
    %p38 = scmp.ne.s32.totalorder %s21, %s37
    %p39 = scmp.eq.s32.totalorder %s13, 0
    %p40 = por %p38, %p39
    %s41 = ssub.s32 %s7, %s14
    %p42 = scmp.eq.s32.totalorder %s41, 0
    %s44 = sadd.s32 %s43, 1
    %s45 = scalar_select %p42, %s43, %s44
    %p48 = pneg %p42
    %p49 = scmp.eq.s32.totalorder %s7, 1
    %p50 = por %p48, %p49
    %p51 = scmp.ne.s32.totalorder %s43, %s46
    %p52 = scmp.eq.s32.totalorder %s7, 0
    %p53 = por %p51, %p52
    %p54 = scmp.ne.s32.totalorder %s43, %s46
    %p55 = scmp.eq.s32.totalorder %s12, 1
    %p56 = por %p54, %p55
    %p57 = scmp.ne.s32.totalorder %s46, %s47
    %p58 = scmp.eq.s32.totalorder %s12, 0
    %p59 = por %p57, %p58
    %p60 = scmp.ne.s32.totalorder %s46, %s47
    %p61 = scmp.eq.s32.totalorder %s13, 1
    %p62 = por %p60, %p61
    %p64 = scmp.ne.s32.totalorder %s47, %s63
    %p65 = scmp.eq.s32.totalorder %s13, 0
    %p66 = por %p64, %p65
    %p67 = scmp.le.s32.totalorder 1, %s7
    %p68 = scmp.lt.s32.totalorder %s7, 3
    %p69 = pnand %p67, %p68
    %p70 = pneg %p69
    // Predicated region
    $region9: #{content_encoder_forward.27} parent=5 // pred_check
      _
    $region10: #{content_encoder_forward.27} parent=5 // pred_check_branch
      %72 = sbr.rel (%p69) target = $region12
    $region11: #{content_encoder_forward.27} parent=5 // pred_region
      %s73 = ssub.s32 %s7, 1
    $region12: #{content_encoder_forward.27} parent=5 // pred_fallthru
      _
    %p74 = scmp.lt.s32.totalorder %s7, 2
    // Predicated region
    $region13: #{content_encoder_forward.27} parent=5 // pred_check
      %p75 = pneg %p74
    $region14: #{content_encoder_forward.27} parent=5 // pred_check_branch
      %77 = sbr.rel (%p75) target = $region16
    $region15: #{content_encoder_forward.27} parent=5 // pred_region
      // Predicated region
      $region17: #{content_encoder_forward.27} parent=15 // pred_check
        %p78 = pneg %p27
      $region18: #{content_encoder_forward.27} parent=15 // pred_check_branch
        %80 = sbr.rel (%p78) target = $region20
      $region19: #{content_encoder_forward.27} parent=15 // pred_region
        %p81 = scmp.lt.s32.totalorder %s7, 1
        %s82 = scalar_select %p81, %s7, 1
        %s83 = smul.addr %s82, 4
        %s84 = scalar_lea.vmem %s0, %s83
      $region20: #{content_encoder_forward.27} parent=15 // pred_fallthru
        _
    $region16: #{content_encoder_forward.27} parent=5 // pred_fallthru
      _
    %p85 = scmp.le.s32.totalorder 1, %s7
    %p86 = scmp.lt.s32.totalorder %s7, 3
    %p87 = pnand %p85, %p86
    %p88 = pneg %p87
    // Predicated region
    $region21: #{content_encoder_forward.27} parent=5 // pred_check
      _
    $region22: #{content_encoder_forward.27} parent=5 // pred_check_branch
      %90 = sbr.rel (%p87) target = $region24
    $region23: #{content_encoder_forward.27} parent=5 // pred_region
      %s91 = ssub.s32 %s7, 1
      %p92 = scmp.lt.s32.totalorder %s12, 1
      %s93 = scalar_select %p92, %s12, 1
      %s94 = smul.addr %s93, 4
      %s95 = scalar_lea.vmem %s0, %s94
      %p96 = pneg %p33
      %p97 = pneg %p30
      %p98 = pneg %p59
      %p99 = pneg %p56
      %p100 = scmp.lt.s32.totalorder %s12, 1
      %s101 = scalar_select %p100, %s12, 1
      %s102 = smul.addr %s101, 4
      %s103 = scalar_lea.vmem %s1, %s102
      %p104 = scmp.lt.s32.totalorder %s12, 1
      %s105 = scalar_select %p104, %s12, 1
      %s106 = smul.addr %s105, 4
      %s107 = scalar_lea.vmem %s0, %s106
      %p108 = scmp.lt.s32.totalorder %s12, 1
      %s109 = scalar_select %p108, %s12, 1
      %s110 = smul.addr %s109, 4
      %s111 = scalar_lea.vmem %s1, %s110
      %v112 = vld [vmem:[%s107] sm:$0xf]
      %vm113 = vcmask 257024
      %v114 = vsel %vm113, %v112, 0.0
      %v115 = vrot.slane %v114, 4
      %v116 = vadd.f32 %v114, %v115
      %v117 = vrot.slane %v116, 2
      %v118 = vadd.f32 %v116, %v117
      %v119 = vrot.slane %v118, 1
      %v120 = vadd.f32 %v118, %v119
      %v121 = vrcp.pop 4.0
      %v122 = vmul.f32 4.0, %v121
      %v123 = vsub.f32 1.0, %v122
      %v124 = vmul.f32 %v121, %v123
      %v125 = vadd.f32 %v121, %v124
      %vm126 = vweird.f32 %v121
      %v127 = vsel %vm126, %v121, %v125
      %v128 = vmul.f32 %v120, %v127
      %v129 = vsub.f32 %v112, %v128
      %v130 = vmul.f32 %v129, %v129
      %v131 = vsel %vm113, %v130, 0.0
      %v132 = vrot.slane %v131, 4
      %v133 = vadd.f32 %v131, %v132
      %v134 = vrot.slane %v133, 2
      %v135 = vadd.f32 %v133, %v134
      %v136 = vrot.slane %v135, 1
      %v137 = vadd.f32 %v135, %v136
      %v138 = vmul.f32 %v137, %v127
      %v139 = vadd.f32 %v138, 1e-05
      %v140 = vrsqrt.pop %v139
      %v141 = vmul.f32 %v140, %v139
      %v142 = vmul.f32 %v141, %v140
      %v143 = vmul.f32 0.5, %v142
      %v144 = vsub.f32 1.5, %v143
      %v145 = vmul.f32 %v140, %v144
      %vm146 = vweird.f32 %v139
      %vm147 = vweird.f32 %v140
      %vm148 = vmor %vm146, %vm147
      %v149 = vsel %vm148, %v140, %v145
      %v150 = vmul.f32 %v129, %v149
      %v151 = vmax.f32 %v150, 0.0
      %152 = vst.msk [vmem:[%s111] sm:$0xf] %vm113, %v151
      %p153 = scmp.lt.s32.totalorder %s12, 1
      %s154 = scalar_select %p153, %s12, 1
      %s155 = smul.addr %s154, 4
      %s156 = scalar_lea.vmem %s1, %s155
      // Predicated region
      $region25: #{content_encoder_forward.27} parent=23 // pred_check
        %p157 = pneg %p56
      $region26: #{content_encoder_forward.27} parent=23 // pred_check_branch
        %159 = sbr.rel (%p157) target = $region28
      $region27: #{content_encoder_forward.27} parent=23 // pred_region
        _
      $region28: #{content_encoder_forward.27} parent=23 // pred_fallthru
        _
    $region24: #{content_encoder_forward.27} parent=5 // pred_fallthru
      _
    %p160 = scmp.le.s32.totalorder 2, %s7
    // Predicated region
    $region29: #{content_encoder_forward.27} parent=5 // pred_check
      %p161 = pneg %p160
    $region30: #{content_encoder_forward.27} parent=5 // pred_check_branch
      %163 = sbr.rel (%p161) target = $region32
    $region31: #{content_encoder_forward.27} parent=5 // pred_region
      %s164 = ssub.s32 %s7, 2
      // Predicated region
      $region33: #{content_encoder_forward.27} parent=31 // pred_check
        %p165 = pneg %p62
      $region34: #{content_encoder_forward.27} parent=31 // pred_check_branch
        %167 = sbr.rel (%p165) target = $region36
      $region35: #{content_encoder_forward.27} parent=31 // pred_region
        %p168 = scmp.lt.s32.totalorder %s13, 1
        %s169 = scalar_select %p168, %s13, 1
        %s170 = smul.addr %s169, 4
        %s171 = scalar_lea.vmem %s1, %s170
      $region36: #{content_encoder_forward.27} parent=31 // pred_fallthru
        _
    $region32: #{content_encoder_forward.27} parent=5 // pred_fallthru
      _
  $region6: #{content_encoder_forward.27} parent=0 // loop_footer
    %s11 = sadd.s32 1, %s7
  $region7: #{content_encoder_forward.27} parent=0 // loop_footer_branch
    %6 = sbr.rel target = $region3
  $region8: #{content_encoder_forward.27} parent=0 // loop_exit
    _

// kernel: content_encoder_forward.28
$region0: #{content_encoder_forward.28}
  #allocation0 [shape = 'u32[]', space=smem, size = 0x4, offset = 0x4, fixed_abs, tag = 'smem constant byte address 0x4 - core index']
  #allocation1 [shape = 'u32[72,128]{1,0:T(1,128)}', space=vmem, size = 0x9000, scoped, tag = 'internal scratch']
  %s0 = inlined_call_operand.vmem [shape: bf16[8,288], index: 0, kind: input, shape index: {}]
  %s1 = inlined_call_operand.vmem [shape: bf16[288,128], index: 1, kind: input, shape index: {}]
  %s2 = inlined_call_operand.vmem [shape: f32[1,128], index: 2, kind: input, shape index: {}]
  %s3 = inlined_call_operand.vmem [shape: f32[8,128], index: 3, kind: output, shape index: {}]
  %s4 = sld [smem:[#allocation0]]
  $region22: #{content_encoder_forward.28} parent=0
    _
  %s6 = ssub.s32 1, %s4
  %s7 = scalar_select 0, %s6, %s4
  // Predicated region
  $region2: #{content_encoder_forward.28} parent=0 // pred_check
    _
  $region3: #{content_encoder_forward.28} parent=0 // pred_check_branch
    %9 = sbr.rel (0) target = $region5
  $region4: #{content_encoder_forward.28} parent=0 // pred_region
    _
  $region5: #{content_encoder_forward.28} parent=0 // pred_fallthru
    _
  // Predicated region
  $region6: #{content_encoder_forward.28} parent=0 // pred_check
    _
  $region7: #{content_encoder_forward.28} parent=0 // pred_check_branch
    %11 = sbr.rel (0) target = $region9
  $region8: #{content_encoder_forward.28} parent=0 // pred_region
    _
  $region9: #{content_encoder_forward.28} parent=0 // pred_fallthru
    _
  // Predicated region
  $region10: #{content_encoder_forward.28} parent=0 // pred_check
    _
  $region11: #{content_encoder_forward.28} parent=0 // pred_check_branch
    %13 = sbr.rel (0) target = $region13
  $region12: #{content_encoder_forward.28} parent=0 // pred_region
    _
  $region13: #{content_encoder_forward.28} parent=0 // pred_fallthru
    _
  %v15 = vld [vmem:[%s0] sm:$0xff]
  %v16 = vld [vmem:[%s0 + $0x8] sm:$0xf]
  %v17 = vld [vmem:[%s1] sm:$0xf]
  %v18 = vld [vmem:[%s1 + $0x4] sm:$0xf]
  %v19 = vld [vmem:[%s1 + $0x8] sm:$0xf]
  %v20 = vld [vmem:[%s1 + $0xc] sm:$0xf]
  %v21 = vld [vmem:[%s1 + $0x10] sm:$0xf]
  %v22 = vld [vmem:[%s1 + $0x14] sm:$0xf]
  %v23 = vld [vmem:[%s1 + $0x18] sm:$0xf]
  %v24 = vld [vmem:[%s1 + $0x1c] sm:$0xf]
  %v25 = vld [vmem:[%s1 + $0x20] sm:$0xf]
  %v26 = vld [vmem:[%s1 + $0x24] sm:$0xf]
  %v27 = vld [vmem:[%s1 + $0x28] sm:$0xf]
  %v28 = vld [vmem:[%s1 + $0x2c] sm:$0xf]
  %v29 = vld [vmem:[%s1 + $0x30] sm:$0xf]
  %v30 = vld [vmem:[%s1 + $0x34] sm:$0xf]
  %v31 = vld [vmem:[%s1 + $0x38] sm:$0xf]
  %v32 = vld [vmem:[%s1 + $0x3c] sm:$0xf]
  %v33 = vld [vmem:[%s1 + $0x40] sm:$0xf]
  %v34 = vld [vmem:[%s1 + $0x44] sm:$0xf]
  %v35 = vld [vmem:[%s1 + $0x48] sm:$0xf]
  %v36 = vld [vmem:[%s1 + $0x4c] sm:$0xf]
  %v37 = vld [vmem:[%s1 + $0x50] sm:$0xf]
  %v38 = vld [vmem:[%s1 + $0x54] sm:$0xf]
  %v39 = vld [vmem:[%s1 + $0x58] sm:$0xf]
  %v40 = vld [vmem:[%s1 + $0x5c] sm:$0xf]
  %v41 = vld [vmem:[%s1 + $0x60] sm:$0xf]
  %v42 = vld [vmem:[%s1 + $0x64] sm:$0xf]
  %v43 = vld [vmem:[%s1 + $0x68] sm:$0xf]
  %v44 = vld [vmem:[%s1 + $0x6c] sm:$0xf]
  %v45 = vld [vmem:[%s1 + $0x70] sm:$0xf]
  %v46 = vld [vmem:[%s1 + $0x74] sm:$0xf]
  %v47 = vld [vmem:[%s1 + $0x78] sm:$0xf]
  %v48 = vld [vmem:[%s1 + $0x7c] sm:$0xf]
  %v49 = vld [vmem:[%s1 + $0x80] sm:$0xf]
  %v50 = vld [vmem:[%s1 + $0x84] sm:$0xf]
  %v51 = vld [vmem:[%s1 + $0x88] sm:$0xf]
  %v52 = vld [vmem:[%s1 + $0x8c] sm:$0xf]
  %v53 = vld [vmem:[%s2] sm:$0x1]
  %v55 = vperm.slane %v53, 0
  %v59 = vunpack.c.l.b16 %v15
  %v60 = vunpack.c.h.b16 %v15
  %v61 = vunpack.c.l.b16 %v16
  %v62 = vpack.c.b16 %v59, %v59
  %v63 = vpack.c.b16 %v60, %v60
  %v64 = vpack.c.b16 %v61, %v61
  %v103 = vunpack.c.l.b16 %v17
  %v104 = vunpack.c.l.b16 %v18
  %v105 = vunpack.c.l.b16 %v19
  %v106 = vunpack.c.l.b16 %v20
  %v107 = vunpack.c.l.b16 %v21
  %v108 = vunpack.c.l.b16 %v22
  %v109 = vunpack.c.l.b16 %v23
  %v110 = vunpack.c.l.b16 %v24
  %v111 = vunpack.c.l.b16 %v25
  %v112 = vunpack.c.l.b16 %v26
  %v113 = vunpack.c.l.b16 %v27
  %v114 = vunpack.c.l.b16 %v28
  %v115 = vunpack.c.l.b16 %v29
  %v116 = vunpack.c.l.b16 %v30
  %v117 = vunpack.c.l.b16 %v31
  %v118 = vunpack.c.l.b16 %v32
  %v119 = vunpack.c.l.b16 %v33
  %v120 = vunpack.c.l.b16 %v34
  %v121 = vunpack.c.l.b16 %v35
  %v122 = vunpack.c.l.b16 %v36
  %v123 = vunpack.c.l.b16 %v37
  %v124 = vunpack.c.l.b16 %v38
  %v125 = vunpack.c.l.b16 %v39
  %v126 = vunpack.c.l.b16 %v40
  %v127 = vunpack.c.l.b16 %v41
  %v128 = vunpack.c.l.b16 %v42
  %v129 = vunpack.c.l.b16 %v43
  %v130 = vunpack.c.l.b16 %v44
  %v131 = vunpack.c.l.b16 %v45
  %v132 = vunpack.c.l.b16 %v46
  %v133 = vunpack.c.l.b16 %v47
  %v134 = vunpack.c.l.b16 %v48
  %v135 = vunpack.c.l.b16 %v49
  %v136 = vunpack.c.l.b16 %v50
  %v137 = vunpack.c.l.b16 %v51
  %v138 = vunpack.c.l.b16 %v52
  %v139 = vpack.c.b16 %v104, %v103
  %v140 = vpack.c.b16 %v106, %v105
  %v141 = vpack.c.b16 %v108, %v107
  %v142 = vpack.c.b16 %v110, %v109
  %v143 = vpack.c.b16 %v112, %v111
  %v144 = vpack.c.b16 %v114, %v113
  %v145 = vpack.c.b16 %v116, %v115
  %v146 = vpack.c.b16 %v118, %v117
  %v147 = vpack.c.b16 %v120, %v119
  %v148 = vpack.c.b16 %v122, %v121
  %v149 = vpack.c.b16 %v124, %v123
  %v150 = vpack.c.b16 %v126, %v125
  %v151 = vpack.c.b16 %v128, %v127
  %v152 = vpack.c.b16 %v130, %v129
  %v153 = vpack.c.b16 %v132, %v131
  %v154 = vpack.c.b16 %v134, %v133
  %v155 = vpack.c.b16 %v136, %v135
  %v156 = vpack.c.b16 %v138, %v137
  %vm175 = vcmask 261120
  %v177 = vsel %vm175, %v64, 0
  %179 = vmatpush.bf16.msra.mxu0 %v146
  %180 = vmatpush.bf16.msra.mxu0 %v145
  %181 = vmatpush.bf16.msra.mxu0 %v144
  %182 = vmatpush.bf16.msra.mxu0 %v143
  %183 = vmatpush.bf16.msra.mxu0 %v142
  %184 = vmatpush.bf16.msra.mxu0 %v141
  %185 = vmatpush.bf16.msra.mxu0 %v140
  %186 = vmatpush.bf16.msra.mxu0 %v139
  %187 = vmatmul.bf16.gmra.mxu0 %v62
  %v188 = vpop.f32.mrf.mxu0
  %v189 = vadd.f32 %v55, %v188
  %v190 = vpop.f32.mrf.mxu0
  %191 = vdwg.mxu0
  %192 = vmatpush.bf16.msra.mxu0 %v154
  %193 = vmatpush.bf16.msra.mxu0 %v153
  %194 = vmatpush.bf16.msra.mxu0 %v152
  %195 = vmatpush.bf16.msra.mxu0 %v151
  %196 = vmatpush.bf16.msra.mxu0 %v150
  %197 = vmatpush.bf16.msra.mxu0 %v149
  %198 = vmatpush.bf16.msra.mxu0 %v148
  %199 = vmatpush.bf16.msra.mxu0 %v147
  %200 = vmatmul.bf16.gmra.mxu0 %v63
  %v201 = vpop.f32.mrf.mxu0
  %v202 = vadd.f32 %v189, %v201
  %v203 = vpop.f32.mrf.mxu0
  %204 = vdwg.mxu0
  %205 = vmatpush.bf16.msra.mxu0 0
  %206 = vmatpush.bf16.msra.mxu0 0
  %207 = vmatpush.bf16.msra.mxu0 0
  %208 = vmatpush.bf16.msra.mxu0 0
  %209 = vmatpush.bf16.msra.mxu0 0
  %210 = vmatpush.bf16.msra.mxu0 0
  %211 = vmatpush.bf16.msra.mxu0 %v156
  %212 = vmatpush.bf16.msra.mxu0 %v155
  %213 = vmatmul.bf16.gmra.mxu0 %v177
  %v214 = vpop.f32.mrf.mxu0
  %v215 = vadd.f32 %v202, %v214
  %v216 = vpop.f32.mrf.mxu0
  %217 = vdwg.mxu0
  %218 = vst [vmem:[%s3] sm:$0xff] %v215
  // Predicated region
  $region14: #{content_encoder_forward.28} parent=0 // pred_check
    _
  $region15: #{content_encoder_forward.28} parent=0 // pred_check_branch
    %220 = sbr.rel (0) target = $region17
  $region16: #{content_encoder_forward.28} parent=0 // pred_region
    _
  $region17: #{content_encoder_forward.28} parent=0 // pred_fallthru
    _
  // Predicated region
  $region18: #{content_encoder_forward.28} parent=0 // pred_check
    _
  $region19: #{content_encoder_forward.28} parent=0 // pred_check_branch
    %222 = sbr.rel (0) target = $region21
  $region20: #{content_encoder_forward.28} parent=0 // pred_region
    _
  $region21: #{content_encoder_forward.28} parent=0 // pred_fallthru
    _

// kernel: content_encoder_forward.31
$region0: #{content_encoder_forward.31}
  #allocation0 [shape = 'u32[]', space=smem, size = 0x4, offset = 0x4, fixed_abs, tag = 'smem constant byte address 0x4 - core index']
  #allocation1 [shape = 'u32[72,128]{1,0:T(1,128)}', space=vmem, size = 0x9000, scoped, tag = 'internal scratch']
  %s0 = inlined_call_operand.vmem [shape: f32[2,4,32], index: 0, kind: input, shape index: {}]
  %s1 = inlined_call_operand.vmem [shape: f32[2,4,32], index: 1, kind: input, shape index: {}]
  %s2 = inlined_call_operand.hbm [shape: f32[2,4,32], index: 2, kind: output, shape index: {}]
  %s3 = sld [smem:[#allocation0]]
  $region41: #{content_encoder_forward.31} parent=0
    _
  %s5 = ssub.s32 1, %s3
  %s6 = scalar_select 0, %s5, %s3
  $region1: #{content_encoder_forward.31} parent=0
    #allocation2 [shape = 'u8[4096]{0}', space=vmem, size = 0x1000, scoped, tag = 'output window, operand 0']
    #allocation3 [shape = 's32[2]{0}', space=sflag, size = 0x8, scoped, tag = 'scoped memory for content_encoder_forward.31']
    %7 = vsyncpa [#allocation3], 0
    %s8 = scalar_lea.sflag [#allocation3], 1
    %9 = vsyncpa %s8, 0
    loop: start=0, step=1, limit=4
    $region2: #{content_encoder_forward.31} parent=1 // loop_pre_header
      _
    $region3: #{content_encoder_forward.31} parent=1 // loop_header
      %s11 = sphi 0, %s15
      %p12 = scmp.ge.s32.totalorder %s11, 4
      %s21 = sphi 0, %s23
      %s24 = sphi 0, %s21
      %s25 = sphi 0, %s24
      %s41 = sphi 0, %s25
      %s47 = sphi 0, %s49
      %s50 = sphi 0, %s47
      %s51 = sphi 0, %s50
      %s67 = sphi 0, %s51
      %s73 = sphi 0, %s75
      %s76 = sphi 0, %s73
      %s77 = sphi 0, %s76
      %s93 = sphi 0, %s77
    $region4: #{content_encoder_forward.31} parent=1 // loop_header_branch
      %14 = sbr.rel (%p12) target = $region8
    $region5: #{content_encoder_forward.31} parent=1 // loop_body
      %s16 = ssub.s32 %s11, 1
      %s17 = ssub.s32 %s11, 2
      %s18 = sadd.s32 %s11, 1
      %s19 = ssub.s32 %s11, %s18
      %p20 = scmp.eq.s32.totalorder %s19, 0
      %s22 = sadd.s32 %s21, 1
      %s23 = scalar_select %p20, %s21, %s22
      %p26 = pneg %p20
      %p27 = scmp.eq.s32.totalorder %s11, 1
      %p28 = por %p26, %p27
      %p29 = scmp.ne.s32.totalorder %s21, %s24
      %p30 = scmp.eq.s32.totalorder %s11, 0
      %p31 = por %p29, %p30
      %p32 = scmp.ne.s32.totalorder %s21, %s24
      %p33 = scmp.eq.s32.totalorder %s16, 1
      %p34 = por %p32, %p33
      %p35 = scmp.ne.s32.totalorder %s24, %s25
      %p36 = scmp.eq.s32.totalorder %s16, 0
      %p37 = por %p35, %p36
      %p38 = scmp.ne.s32.totalorder %s24, %s25
      %p39 = scmp.eq.s32.totalorder %s17, 1
      %p40 = por %p38, %p39
      %p42 = scmp.ne.s32.totalorder %s25, %s41
      %p43 = scmp.eq.s32.totalorder %s17, 0
      %p44 = por %p42, %p43
      %s45 = ssub.s32 %s11, %s18
      %p46 = scmp.eq.s32.totalorder %s45, 0
      %s48 = sadd.s32 %s47, 1
      %s49 = scalar_select %p46, %s47, %s48
      %p52 = pneg %p46
      %p53 = scmp.eq.s32.totalorder %s11, 1
      %p54 = por %p52, %p53
      %p55 = scmp.ne.s32.totalorder %s47, %s50
      %p56 = scmp.eq.s32.totalorder %s11, 0
      %p57 = por %p55, %p56
      %p58 = scmp.ne.s32.totalorder %s47, %s50
      %p59 = scmp.eq.s32.totalorder %s16, 1
      %p60 = por %p58, %p59
      %p61 = scmp.ne.s32.totalorder %s50, %s51
      %p62 = scmp.eq.s32.totalorder %s16, 0
      %p63 = por %p61, %p62
      %p64 = scmp.ne.s32.totalorder %s50, %s51
      %p65 = scmp.eq.s32.totalorder %s17, 1
      %p66 = por %p64, %p65
      %p68 = scmp.ne.s32.totalorder %s51, %s67
      %p69 = scmp.eq.s32.totalorder %s17, 0
      %p70 = por %p68, %p69
      %s71 = ssub.s32 %s11, %s18
      %p72 = scmp.eq.s32.totalorder %s71, 0
      %s74 = sadd.s32 %s73, 1
      %s75 = scalar_select %p72, %s73, %s74
      %p78 = pneg %p72
      %p79 = scmp.eq.s32.totalorder %s11, 1
      %p80 = por %p78, %p79
      %p81 = scmp.ne.s32.totalorder %s73, %s76
      %p82 = scmp.eq.s32.totalorder %s11, 0
      %p83 = por %p81, %p82
      %p84 = scmp.ne.s32.totalorder %s73, %s76
      %p85 = scmp.eq.s32.totalorder %s16, 1
      %p86 = por %p84, %p85
      %p87 = scmp.ne.s32.totalorder %s76, %s77
      %p88 = scmp.eq.s32.totalorder %s16, 0
      %p89 = por %p87, %p88
      %p90 = scmp.ne.s32.totalorder %s76, %s77
      %p91 = scmp.eq.s32.totalorder %s17, 1
      %p92 = por %p90, %p91
      %p94 = scmp.ne.s32.totalorder %s77, %s93
      %p95 = scmp.eq.s32.totalorder %s17, 0
      %p96 = por %p94, %p95
      %p97 = scmp.le.s32.totalorder 1, %s11
      %p98 = scmp.lt.s32.totalorder %s11, 3
      %p99 = pnand %p97, %p98
      %p100 = pneg %p99
      // Predicated region
      $region9: #{content_encoder_forward.31} parent=5 // pred_check
        _
      $region10: #{content_encoder_forward.31} parent=5 // pred_check_branch
        %102 = sbr.rel (%p99) target = $region12
      $region11: #{content_encoder_forward.31} parent=5 // pred_region
        %s103 = ssub.s32 %s11, 1
      $region12: #{content_encoder_forward.31} parent=5 // pred_fallthru
        _
      %p104 = scmp.lt.s32.totalorder %s11, 2
      // Predicated region
      $region13: #{content_encoder_forward.31} parent=5 // pred_check
        %p105 = pneg %p104
      $region14: #{content_encoder_forward.31} parent=5 // pred_check_branch
        %107 = sbr.rel (%p105) target = $region16
      $region15: #{content_encoder_forward.31} parent=5 // pred_region
        // Predicated region
        $region17: #{content_encoder_forward.31} parent=15 // pred_check
          %p108 = pneg %p31
        $region18: #{content_encoder_forward.31} parent=15 // pred_check_branch
          %110 = sbr.rel (%p108) target = $region20
        $region19: #{content_encoder_forward.31} parent=15 // pred_region
          %p111 = scmp.lt.s32.totalorder %s11, 1
          %s112 = scalar_select %p111, %s11, 1
          %s113 = smul.addr %s112, 4
          %s114 = scalar_lea.vmem %s0, %s113
        $region20: #{content_encoder_forward.31} parent=15 // pred_fallthru
          _
        // Predicated region
        $region21: #{content_encoder_forward.31} parent=15 // pred_check
          %p115 = pneg %p57
        $region22: #{content_encoder_forward.31} parent=15 // pred_check_branch
          %117 = sbr.rel (%p115) target = $region24
        $region23: #{content_encoder_forward.31} parent=15 // pred_region
          %p118 = scmp.lt.s32.totalorder %s11, 1
          %s119 = scalar_select %p118, %s11, 1
          %s120 = smul.addr %s119, 4
          %s121 = scalar_lea.vmem %s1, %s120
        $region24: #{content_encoder_forward.31} parent=15 // pred_fallthru
          _
      $region16: #{content_encoder_forward.31} parent=5 // pred_fallthru
        _
      %p122 = scmp.le.s32.totalorder 1, %s11
      %p123 = scmp.lt.s32.totalorder %s11, 3
      %p124 = pnand %p122, %p123
      %p125 = pneg %p124
      // Predicated region
      $region25: #{content_encoder_forward.31} parent=5 // pred_check
        _
      $region26: #{content_encoder_forward.31} parent=5 // pred_check_branch
        %127 = sbr.rel (%p124) target = $region28
      $region27: #{content_encoder_forward.31} parent=5 // pred_region
        %s128 = ssub.s32 %s11, 1
        %p129 = scmp.lt.s32.totalorder %s16, 1
        %s130 = scalar_select %p129, %s16, 1
        %s131 = smul.addr %s130, 4
        %s132 = scalar_lea.vmem %s0, %s131
        %p133 = pneg %p37
        %p134 = pneg %p34
        %p135 = scmp.lt.s32.totalorder %s16, 1
        %s136 = scalar_select %p135, %s16, 1
        %s137 = smul.addr %s136, 4
        %s138 = scalar_lea.vmem %s1, %s137
        %p139 = pneg %p63
        %p140 = pneg %p60
        %p141 = pneg %p89
        %p142 = pneg %p86
        %s143 = sand.u32 %s76, 1
        %s144 = scalar_lea.sflag [#allocation3], %s143
        %s145 = sand.u32 %s76, 1
        %s146 = smul.addr %s145, 4
        %s147 = scalar_lea.vmem [#allocation2], %s146
        %p148 = scmp.lt.s32.totalorder %s16, 1
        %s149 = scalar_select %p148, %s16, 1
        %s150 = smul.addr %s149, 4
        %s151 = scalar_lea.vmem %s0, %s150
        %p152 = scmp.lt.s32.totalorder %s16, 1
        %s153 = scalar_select %p152, %s16, 1
        %s154 = smul.addr %s153, 4
        %s155 = scalar_lea.vmem %s1, %s154
        %v156 = vld [vmem:[%s151] sm:$0xf]
        %vm157 = vcmask 257024
        %v158 = vsel %vm157, %v156, 0.0
        %v159 = vrot.slane %v158, 4
        %v160 = vadd.f32 %v158, %v159
        %v161 = vrot.slane %v160, 2
        %v162 = vadd.f32 %v160, %v161
        %v163 = vrot.slane %v162, 1
        %v164 = vadd.f32 %v162, %v163
        %v165 = vrcp.pop 4.0
        %v166 = vmul.f32 4.0, %v165
        %v167 = vsub.f32 1.0, %v166
        %v168 = vmul.f32 %v165, %v167
        %v169 = vadd.f32 %v165, %v168
        %vm170 = vweird.f32 %v165
        %v171 = vsel %vm170, %v165, %v169
        %v172 = vmul.f32 %v164, %v171
        %v173 = vsub.f32 %v156, %v172
        %v174 = vmul.f32 %v173, %v173
        %v175 = vsel %vm157, %v174, 0.0
        %v176 = vrot.slane %v175, 4
        %v177 = vadd.f32 %v175, %v176
        %v178 = vrot.slane %v177, 2
        %v179 = vadd.f32 %v177, %v178
        %v180 = vrot.slane %v179, 1
        %v181 = vadd.f32 %v179, %v180
        %v182 = vmul.f32 %v181, %v171
        %v183 = vadd.f32 %v182, 1e-05
        %v184 = vrsqrt.pop %v183
        %v185 = vmul.f32 %v184, %v183
        %v186 = vmul.f32 %v185, %v184
        %v187 = vmul.f32 0.5, %v186
        %v188 = vsub.f32 1.5, %v187
        %v189 = vmul.f32 %v184, %v188
        %vm190 = vweird.f32 %v183
        %vm191 = vweird.f32 %v184
        %vm192 = vmor %vm190, %vm191
        %v193 = vsel %vm192, %v184, %v189
        %v194 = vmul.f32 %v173, %v193
        %v195 = vld [vmem:[%s155] sm:$0xf]
        %v196 = vmul.f32 %v194, 0.1
        %v197 = vadd.f32 %v195, %v196
        %198 = vst.msk [vmem:[%s147] sm:$0xf] %vm157, %v197
        %s199 = sand.u32 %s76, 1
        %s200 = scalar_lea.sflag [#allocation3], %s199
        %s201 = sand.u32 %s76, 1
        %s202 = smul.addr %s201, 4
        %s203 = scalar_lea.vmem [#allocation2], %s202
        // Predicated region
        $region29: #{content_encoder_forward.31} parent=27 // pred_check
          %p204 = pneg %p86
        $region30: #{content_encoder_forward.31} parent=27 // pred_check_branch
          %206 = sbr.rel (%p204) target = $region32
        $region31: #{content_encoder_forward.31} parent=27 // pred_region
          %208 = vsyncadd %s200, 0
          %s209 = smul.addr %s16, 4
          %s210 = scalar_lea.hbm %s2, %s209
          %s212 = sshll.u32 %s203, 4
          %s213 = int_to_ptr.vmem [resolvable:$true] %s212
          %s214 = sshll.u32 %s210, 4
          %s215 = int_to_ptr.hbm [resolvable:$true] %s214
          %217 = dma.vmem_to_hbm [thread:$0]  %s213, 64, %s215, %s200
        $region32: #{content_encoder_forward.31} parent=27 // pred_fallthru
          _
      $region28: #{content_encoder_forward.31} parent=5 // pred_fallthru
        _
      %p218 = scmp.le.s32.totalorder 2, %s11
      // Predicated region
      $region33: #{content_encoder_forward.31} parent=5 // pred_check
        %p219 = pneg %p218
      $region34: #{content_encoder_forward.31} parent=5 // pred_check_branch
        %221 = sbr.rel (%p219) target = $region36
      $region35: #{content_encoder_forward.31} parent=5 // pred_region
        %s222 = ssub.s32 %s11, 2
        // Predicated region
        $region37: #{content_encoder_forward.31} parent=35 // pred_check
          %p223 = pneg %p92
        $region38: #{content_encoder_forward.31} parent=35 // pred_check_branch
          %225 = sbr.rel (%p223) target = $region40
        $region39: #{content_encoder_forward.31} parent=35 // pred_region
          %s226 = sand.u32 %s77, 1
          %s227 = scalar_lea.sflag [#allocation3], %s226
          %s228 = sand.u32 %s77, 1
          %s229 = smul.addr %s228, 4
          %s230 = scalar_lea.vmem [#allocation2], %s229
          %232 = dma.done %s227, 64
        $region40: #{content_encoder_forward.31} parent=35 // pred_fallthru
          _
      $region36: #{content_encoder_forward.31} parent=5 // pred_fallthru
        _
    $region6: #{content_encoder_forward.31} parent=1 // loop_footer
      %s15 = sadd.s32 1, %s11
    $region7: #{content_encoder_forward.31} parent=1 // loop_footer_branch
      %10 = sbr.rel target = $region3
    $region8: #{content_encoder_forward.31} parent=1 // loop_exit
      _
    %233 = vsyncpa [#allocation3], 1
    %s234 = scalar_lea.sflag [#allocation3], 1
    %235 = vsyncpa %s234, 1

</llo_original>
